<compile_context>
chip_gen: v7x
topology: tpu7x:2x2x1
jax: 0.10.0
libtpu: 0.0.40
codegen_flags: <defaults>
</compile_context>

<pallas_src>
import functools
import math

import jax
import jax.numpy as jnp
from jax.experimental import pallas as pl
from jax.experimental.pallas import tpu as pltpu

VMEM = pltpu.MemorySpace.VMEM
HEAD_PAD = 128  # lane-dense classification-head output, sliced to n_way outside


def _vmem_spec():
    # whole-array block, resident in VMEM (all tensors here are tiny)
    return pl.BlockSpec(memory_space=VMEM)


def _round_up(x, m):
    return ((x + m - 1) // m) * m


# --------------------------- fused forward kernel ----------------------------

def fused_vit_kernel(
        patches_ref, patch_w_ref, embed_add_ref,
        ln1_g_ref, ln1_b_ref, qkv_w_ref, qkv_b_ref, lora_a_ref, lora_b_ref,
        proj_w_ref, proj_b_ref, ln2_g_ref, ln2_b_ref,
        fc1_w_ref, fc1_b_ref, fc2_w_ref, fc2_b_ref,
        lnf_g_ref, lnf_b_ref, head_w_ref, head_b_ref,
        scores_ref, attn_ref,
        *, B, n_valid, n_pad, D, heads, depth, eps):
    f32 = jnp.float32
    bf16 = jnp.bfloat16
    dh = D // heads
    att_scale = 1.0 / math.sqrt(dh)

    def layer_norm(v, g, b):
        mu = jnp.mean(v, axis=-1, keepdims=True)
        var = jnp.mean((v - mu) ** 2, axis=-1, keepdims=True)
        return (v - mu) * jax.lax.rsqrt(var + eps) * g + b

    # key-padding mask shared by all (head, batch) score blocks: key slots
    # >= n_valid are zero-padding rows.  Built once, full shape (no broadcast
    # inside the select).
    key_valid = (jax.lax.broadcasted_iota(
        jnp.int32, (heads * B, n_pad, n_pad), 2) < n_valid)

    # --- patch embedding; CLS token, positional embedding and patch bias are
    #     pre-folded into `embed_add` (padding rows are exactly zero) ---
    x = (jnp.dot(patches_ref[...].astype(bf16), patch_w_ref[...],
                 preferred_element_type=f32)
         + embed_add_ref[...])                                    # (B*n_pad, D)

    # --- transformer blocks (statically unrolled, fully VMEM resident) ---
    for d in range(depth):
        is_last = d == depth - 1

        # attention sub-block (LoRA adapter on the qkv projection; the LoRA
        # alpha/rank scale is pre-folded into lora_b).
        h = layer_norm(x, ln1_g_ref[d], ln1_b_ref[d])
        hb = h.astype(bf16)
        lora_mid = jnp.dot(hb, lora_a_ref[d], preferred_element_type=f32)
        qkv = (jnp.dot(hb, qkv_w_ref[d], preferred_element_type=f32)
               + qkv_b_ref[d]
               + jnp.dot(lora_mid.astype(bf16), lora_b_ref[d],
                         preferred_element_type=f32))             # (B*n_pad, 3D)
        qkv_bf = qkv.astype(bf16)

        # Batched QK^T per head (batch dim = B), stacked over heads so the
        # masked softmax runs exactly once per layer.
        s_list = []
        v_list = []
        for hh in range(heads):
            c = hh * dh
            q = qkv_bf[:, c:c + dh].reshape(B, n_pad, dh)
            k = qkv_bf[:, D + c:D + c + dh].reshape(B, n_pad, dh)
            v_list.append(
                qkv_bf[:, 2 * D + c:2 * D + c + dh].reshape(B, n_pad, dh))
            s_list.append(jnp.einsum('bqd,bkd->bqk', q, k,
                                     preferred_element_type=f32))
        s = jnp.concatenate(s_list, axis=0) * att_scale  # (heads*B, n_pad, n_pad)
        s = jnp.where(key_valid, s, -1e30)               # mask padded key slots
        s = s - jnp.max(s, axis=-1, keepdims=True)
        p = jnp.exp(s)
        p = p / jnp.sum(p, axis=-1, keepdims=True)       # exact; once per layer

        # Per-head PV, kept as register values and concatenated along lanes.
        p_bf = p.astype(bf16)
        o_list = []
        for hh in range(heads):
            o_h = jnp.einsum('bqk,bkd->bqd', p_bf[hh * B:(hh + 1) * B],
                             v_list[hh], preferred_element_type=f32)
            o_list.append(o_h.reshape(B * n_pad, dh))
        o = jnp.concatenate(o_list, axis=-1)             # (B*n_pad, D)

        x = x + (jnp.dot(o.astype(bf16), proj_w_ref[d],
                         preferred_element_type=f32) + proj_b_ref[d])
        # NOTE: attn_drop / proj_drop are eval-mode no-ops.

        if is_last:
            # attn.mean(1): mean over heads of the block whose attention the
            # encoder returns (the last); one dense store for all batch items.
            acc = p[0:B]
            for hh in range(1, heads):
                acc = acc + p[hh * B:(hh + 1) * B]
            attn_ref[...] = (acc * (1.0 / heads)).astype(attn_ref.dtype)

        # MLP sub-block
        h = layer_norm(x, ln2_g_ref[d], ln2_b_ref[d])
        h = (jnp.dot(h.astype(bf16), fc1_w_ref[d], preferred_element_type=f32)
             + fc1_b_ref[d])
        # GELU (tanh approximation), f32 VPU math.
        # TODO(synk): switch to exact erf if the reference encoder uses nn.GELU's default.
        h = 0.5 * h * (1.0 + jnp.tanh(0.7978845608028654 *
                                      (h + 0.044715 * h * h * h)))
        h = (jnp.dot(h.astype(bf16), fc2_w_ref[d], preferred_element_type=f32)
             + fc2_b_ref[d])
        x = x + h

    # --- final LayerNorm + classification head on the CLS rows only ---
    cls = x.reshape(B, n_pad, D)[:, 0:1, :].reshape(B, D)
    cls = layer_norm(cls, lnf_g_ref[...], lnf_b_ref[...])
    scores = (jnp.dot(cls.astype(bf16), head_w_ref[...],
                      preferred_element_type=f32) + head_b_ref[...])   # (B, 128)
    scores_ref[...] = scores.astype(scores_ref.dtype)


# --------------------------- parameters / config -----------------------------

CFG = dict(img_ch=3, img_size=16, patch=8, dim=32, depth=2, heads=4,
           mlp_ratio=2, lora_rank=4, lora_alpha=8, n_way=5)
CFG['lora_scale'] = CFG['lora_alpha'] / CFG['lora_rank']


def init_params(key, cfg):
    """Parameters in PyTorch layout ((out, in) weights), as the reference module."""
    D = cfg['dim']
    p = cfg['patch']
    C = cfg['img_ch']
    hidden = cfg['mlp_ratio'] * D
    r = cfg['lora_rank']
    n_patches = (cfg['img_size'] // p) ** 2
    N = n_patches + 1  # + CLS token

    keys = iter(jax.random.split(key, 64))
    nrm = lambda shape, s=0.02: (s * jax.random.normal(next(keys), shape)).astype(jnp.float32)

    params = dict(
        patch_w=nrm((D, C * p * p)), patch_b=jnp.zeros((D,), jnp.float32),
        cls=nrm((1, 1, D)), pos=nrm((1, N, D)),
        ln_g=jnp.ones((D,), jnp.float32), ln_b=jnp.zeros((D,), jnp.float32),
        head_w=nrm((cfg['n_way'], D)), head_b=jnp.zeros((cfg['n_way'],), jnp.float32),
        blocks=[],
    )
    for _ in range(cfg['depth']):
        params['blocks'].append(dict(
            ln1_g=jnp.ones((D,), jnp.float32), ln1_b=jnp.zeros((D,), jnp.float32),
            qkv_w=nrm((3 * D, D)), qkv_b=jnp.zeros((3 * D,), jnp.float32),
            lora_a=nrm((r, D)), lora_b=nrm((3 * D, r)),
            proj_w=nrm((D, D)), proj_b=jnp.zeros((D,), jnp.float32),
            ln2_g=jnp.ones((D,), jnp.float32), ln2_b=jnp.zeros((D,), jnp.float32),
            fc1_w=nrm((hidden, D)), fc1_b=jnp.zeros((hidden,), jnp.float32),
            fc2_w=nrm((D, hidden)), fc2_b=jnp.zeros((D,), jnp.float32),
        ))
    return params


def prepare_params(params, cfg, batch_size):
    """One-time prep: pre-transpose to (in,out), stack per-block weights over a
    leading depth axis, fold CLS+pos+patch-bias into a single additive matrix,
    fold the LoRA scale into lora_b, cast matmul weights to bf16 (f32 MXU
    accumulation in-kernel), and pad the head to a lane-dense 128-wide output."""
    D = cfg['dim']
    n_way = cfg['n_way']
    n_patches = (cfg['img_size'] // cfg['patch']) ** 2
    N = n_patches + 1
    n_pad = _round_up(N, 8)
    blocks = params['blocks']
    bf16 = jnp.bfloat16

    def stack_vec(name):   # (depth, 1, out) biases / LN params, kept f32
        return jnp.stack([blk[name] for blk in blocks], axis=0)[:, None, :]

    def stack_t(name):     # (depth, in, out) pre-transposed bf16 weights
        return jnp.stack([blk[name].T for blk in blocks], axis=0).astype(bf16)

    pos = params['pos'].reshape(N, D)
    emb = jnp.zeros((n_pad, D), jnp.float32)
    emb = emb.at[0, :].set(params['cls'].reshape(D) + pos[0])
    emb = emb.at[1:N, :].set(pos[1:] + params['patch_b'][None, :])
    embed_add = jnp.broadcast_to(emb[None], (batch_size, n_pad, D)).reshape(
        batch_size * n_pad, D)

    head_w_t = jnp.zeros((D, HEAD_PAD), jnp.float32).at[:, :n_way].set(
        params['head_w'].T)
    head_b = jnp.zeros((1, HEAD_PAD), jnp.float32).at[0, :n_way].set(
        params['head_b'])

    # LoRA alpha/rank scale folded into lora_b so the kernel needs no extra mul.
    lora_b_t = (jnp.stack([blk['lora_b'].T for blk in blocks], axis=0)
                * cfg['lora_scale']).astype(bf16)

    return dict(
        patch_w_t=params['patch_w'].T.astype(bf16),   # (C*p*p, D)
        embed_add=embed_add,                          # (B*n_pad, D) f32
        ln1_g=stack_vec('ln1_g'), ln1_b=stack_vec('ln1_b'),
        qkv_w_t=stack_t('qkv_w'), qkv_b=stack_vec('qkv_b'),
        lora_a_t=stack_t('lora_a'), lora_b_t=lora_b_t,
        proj_w_t=stack_t('proj_w'), proj_b=stack_vec('proj_b'),
        ln2_g=stack_vec('ln2_g'), ln2_b=stack_vec('ln2_b'),
        fc1_w_t=stack_t('fc1_w'), fc1_b=stack_vec('fc1_b'),
        fc2_w_t=stack_t('fc2_w'), fc2_b=stack_vec('fc2_b'),
        lnf_g=params['ln_g'][None, :], lnf_b=params['ln_b'][None, :],
        head_w_t=head_w_t.astype(bf16), head_b=head_b,
    )


# --------------------------- forward ------------------------------------------

def net_forward(prep, img, cfg):
    """Equivalent of net.forward(img) -> (scores, attn.mean(1)). One pallas_call."""
    B, C, Himg, Wimg = img.shape
    p, D, heads, depth = cfg['patch'], cfg['dim'], cfg['heads'], cfg['depth']
    nh, nw = Himg // p, Wimg // p
    n_patches = nh * nw
    N = n_patches + 1
    n_pad = _round_up(N, 8)

    # Patchify (XLA glue) and insert a zero row per batch item for the CLS slot
    # plus zero rows padding the token count up to a sublane multiple.
    patches = img.reshape(B, C, nh, p, nw, p).transpose(0, 2, 4, 1, 3, 5)
    patches = patches.reshape(B, n_patches, C * p * p)
    patches_ext = jnp.zeros((B, n_pad, C * p * p), jnp.float32)
    patches_ext = patches_ext.at[:, 1:1 + n_patches, :].set(patches)
    patches_ext = patches_ext.reshape(B * n_pad, C * p * p)

    kernel = functools.partial(
        fused_vit_kernel, B=B, n_valid=N, n_pad=n_pad, D=D, heads=heads,
        depth=depth, eps=1e-6)

    args = (patches_ext, prep['patch_w_t'], prep['embed_add'],
            prep['ln1_g'], prep['ln1_b'], prep['qkv_w_t'], prep['qkv_b'],
            prep['lora_a_t'], prep['lora_b_t'], prep['proj_w_t'], prep['proj_b'],
            prep['ln2_g'], prep['ln2_b'], prep['fc1_w_t'], prep['fc1_b'],
            prep['fc2_w_t'], prep['fc2_b'], prep['lnf_g'], prep['lnf_b'],
            prep['head_w_t'], prep['head_b'])

    scores_pad, attn_pad = pl.pallas_call(
        kernel,
        out_shape=(jax.ShapeDtypeStruct((B, HEAD_PAD), jnp.float32),
                   jax.ShapeDtypeStruct((B, n_pad, n_pad), jnp.float32)),
        in_specs=[_vmem_spec()] * len(args),
        out_specs=(_vmem_spec(), _vmem_spec()),
    )(*args)

    # Slice lane-dense / sublane-padded outputs back to the logical shapes.
    return scores_pad[:, :cfg['n_way']], attn_pad[:, :N, :N]


# TODO(synk): forward/backward hooks (attn_drop capture, blocks.11.norm1 grad
# capture) and the head-reset routines (torch.solve / QPFunction) are
# host-side / training-time utilities with no role in the forward pass.
# NOTE: a multi-episode workload would add a leading ("parallel",) grid axis
# over episodes (near-2x on v7x's two TensorCores and amortized launch overhead
# elsewhere); the single-forward case here stays one invocation.

# --------------------------- main ---------------------------------------------

if __name__ == "__main__":
    key = jax.random.PRNGKey(0)
    pkey, xkey = jax.random.split(key)
    params = init_params(pkey, CFG)

    B = 2
    prep = prepare_params(params, CFG, B)
    img = jax.random.normal(
        xkey, (B, CFG['img_ch'], CFG['img_size'], CFG['img_size']), jnp.float32)

    fwd = jax.jit(functools.partial(net_forward, cfg=CFG))
    scores, attn_mean = fwd(prep, img)
    jax.block_until_ready((scores, attn_mean))

    assert scores.shape == (B, CFG['n_way'])
    N = (CFG['img_size'] // CFG['patch']) ** 2 + 1
    assert attn_mean.shape == (B, N, N)
    print("KERNEL_OK")
</pallas_src>

<mosaic_0001>
module attributes {stable_mosaic.version = 11 : i64} {
  func.func @fused_vit_kernel(%arg0: memref<16x192xf32, #tpu.memory_space<vmem>>, %arg1: memref<192x32xbf16, #tpu.memory_space<vmem>>, %arg2: memref<16x32xf32, #tpu.memory_space<vmem>>, %arg3: memref<2x1x32xf32, #tpu.memory_space<vmem>>, %arg4: memref<2x1x32xf32, #tpu.memory_space<vmem>>, %arg5: memref<2x32x96xbf16, #tpu.memory_space<vmem>>, %arg6: memref<2x1x96xf32, #tpu.memory_space<vmem>>, %arg7: memref<2x32x4xbf16, #tpu.memory_space<vmem>>, %arg8: memref<2x4x96xbf16, #tpu.memory_space<vmem>>, %arg9: memref<2x32x32xbf16, #tpu.memory_space<vmem>>, %arg10: memref<2x1x32xf32, #tpu.memory_space<vmem>>, %arg11: memref<2x1x32xf32, #tpu.memory_space<vmem>>, %arg12: memref<2x1x32xf32, #tpu.memory_space<vmem>>, %arg13: memref<2x32x64xbf16, #tpu.memory_space<vmem>>, %arg14: memref<2x1x64xf32, #tpu.memory_space<vmem>>, %arg15: memref<2x64x32xbf16, #tpu.memory_space<vmem>>, %arg16: memref<2x1x32xf32, #tpu.memory_space<vmem>>, %arg17: memref<1x32xf32, #tpu.memory_space<vmem>>, %arg18: memref<1x32xf32, #tpu.memory_space<vmem>>, %arg19: memref<32x128xbf16, #tpu.memory_space<vmem>>, %arg20: memref<1x128xf32, #tpu.memory_space<vmem>>, %arg21: memref<2x128xf32, #tpu.memory_space<vmem>>, %arg22: memref<2x8x8xf32, #tpu.memory_space<vmem>>) attributes {dimension_semantics = [], scalar_prefetch = 0 : i64, scratch_operands = 0 : i64, tpu.core_type = #tpu.core_type<tc>} {
    %0 = tpu.iota {dimensions = array<i32: 2>} : vector<8x8x8xi32>
    %c5_i32 = arith.constant 5 : i32
    %1 = vector.broadcast %c5_i32 : i32 to vector<8x8x8xi32>
    %2 = arith.cmpi slt, %0, %1 : vector<8x8x8xi32>
    %c0 = arith.constant 0 : index
    %c0_0 = arith.constant 0 : index
    %3 = vector.load %arg0[%c0, %c0_0] : memref<16x192xf32, #tpu.memory_space<vmem>>, vector<16x192xf32>
    %4 = arith.truncf %3 : vector<16x192xf32> to vector<16x192xbf16>
    %c0_1 = arith.constant 0 : index
    %c0_2 = arith.constant 0 : index
    %5 = vector.load %arg1[%c0_1, %c0_2] : memref<192x32xbf16, #tpu.memory_space<vmem>>, vector<192x32xbf16>
    %cst = arith.constant dense<0.000000e+00> : vector<16x32xf32>
    %6 = tpu.matmul %4, %5, %cst {dimension_numbers = #tpu.dot_dimension_numbers<[1], [0], [0], [1], [0, 0, 1, 1], [], []>} : vector<16x192xbf16>, vector<192x32xbf16>, vector<16x32xf32> -> vector<16x32xf32>
    %c0_3 = arith.constant 0 : index
    %c0_4 = arith.constant 0 : index
    %7 = vector.load %arg2[%c0_3, %c0_4] : memref<16x32xf32, #tpu.memory_space<vmem>>, vector<16x32xf32>
    %8 = arith.addf %6, %7 : vector<16x32xf32>
    %c0_5 = arith.constant 0 : index
    %c0_6 = arith.constant 0 : index
    %c0_7 = arith.constant 0 : index
    %9 = vector.load %arg3[%c0_5, %c0_6, %c0_7] : memref<2x1x32xf32, #tpu.memory_space<vmem>>, vector<1x1x32xf32>
    %10 = vector.shape_cast %9 : vector<1x1x32xf32> to vector<1x32xf32>
    %c0_8 = arith.constant 0 : index
    %c0_9 = arith.constant 0 : index
    %c0_10 = arith.constant 0 : index
    %11 = vector.load %arg4[%c0_8, %c0_9, %c0_10] : memref<2x1x32xf32, #tpu.memory_space<vmem>>, vector<1x1x32xf32>
    %12 = vector.shape_cast %11 : vector<1x1x32xf32> to vector<1x32xf32>
    %cst_11 = arith.constant dense<0.000000e+00> : vector<16xf32>
    %13 = vector.multi_reduction <add>, %8, %cst_11 [1] : vector<16x32xf32> to vector<16xf32>
    %14 = vector.shape_cast %13 : vector<16xf32> to vector<16x1xf32>
    %cst_12 = arith.constant 3.200000e+01 : f32
    %15 = vector.broadcast %cst_12 : f32 to vector<16x1xf32>
    %16 = arith.divf %14, %15 : vector<16x1xf32>
    %17 = vector.broadcast %16 : vector<16x1xf32> to vector<16x32xf32>
    %18 = arith.subf %8, %17 : vector<16x32xf32>
    %19 = arith.mulf %18, %18 : vector<16x32xf32>
    %cst_13 = arith.constant dense<0.000000e+00> : vector<16xf32>
    %20 = vector.multi_reduction <add>, %19, %cst_13 [1] : vector<16x32xf32> to vector<16xf32>
    %21 = vector.shape_cast %20 : vector<16xf32> to vector<16x1xf32>
    %cst_14 = arith.constant 3.200000e+01 : f32
    %22 = vector.broadcast %cst_14 : f32 to vector<16x1xf32>
    %23 = arith.divf %21, %22 : vector<16x1xf32>
    %24 = vector.broadcast %16 : vector<16x1xf32> to vector<16x32xf32>
    %25 = arith.subf %8, %24 : vector<16x32xf32>
    %cst_15 = arith.constant 9.99999997E-7 : f32
    %26 = vector.broadcast %cst_15 : f32 to vector<16x1xf32>
    %27 = arith.addf %23, %26 : vector<16x1xf32>
    %28 = math.rsqrt %27 : vector<16x1xf32>
    %29 = vector.broadcast %28 : vector<16x1xf32> to vector<16x32xf32>
    %30 = arith.mulf %25, %29 : vector<16x32xf32>
    %31 = vector.broadcast %10 : vector<1x32xf32> to vector<16x32xf32>
    %32 = arith.mulf %30, %31 : vector<16x32xf32>
    %33 = vector.broadcast %12 : vector<1x32xf32> to vector<16x32xf32>
    %34 = arith.addf %32, %33 : vector<16x32xf32>
    %35 = arith.truncf %34 : vector<16x32xf32> to vector<16x32xbf16>
    %c0_16 = arith.constant 0 : index
    %c0_17 = arith.constant 0 : index
    %c0_18 = arith.constant 0 : index
    %36 = vector.load %arg7[%c0_16, %c0_17, %c0_18] : memref<2x32x4xbf16, #tpu.memory_space<vmem>>, vector<1x32x4xbf16>
    %37 = vector.shape_cast %36 : vector<1x32x4xbf16> to vector<32x4xbf16>
    %cst_19 = arith.constant dense<0.000000e+00> : vector<16x4xf32>
    %38 = tpu.matmul %35, %37, %cst_19 {dimension_numbers = #tpu.dot_dimension_numbers<[1], [0], [0], [1], [0, 0, 1, 1], [], []>} : vector<16x32xbf16>, vector<32x4xbf16>, vector<16x4xf32> -> vector<16x4xf32>
    %c0_20 = arith.constant 0 : index
    %c0_21 = arith.constant 0 : index
    %c0_22 = arith.constant 0 : index
    %39 = vector.load %arg5[%c0_20, %c0_21, %c0_22] : memref<2x32x96xbf16, #tpu.memory_space<vmem>>, vector<1x32x96xbf16>
    %40 = vector.shape_cast %39 : vector<1x32x96xbf16> to vector<32x96xbf16>
    %cst_23 = arith.constant dense<0.000000e+00> : vector<16x96xf32>
    %41 = tpu.matmul %35, %40, %cst_23 {dimension_numbers = #tpu.dot_dimension_numbers<[1], [0], [0], [1], [0, 0, 1, 1], [], []>} : vector<16x32xbf16>, vector<32x96xbf16>, vector<16x96xf32> -> vector<16x96xf32>
    %c0_24 = arith.constant 0 : index
    %c0_25 = arith.constant 0 : index
    %c0_26 = arith.constant 0 : index
    %42 = vector.load %arg6[%c0_24, %c0_25, %c0_26] : memref<2x1x96xf32, #tpu.memory_space<vmem>>, vector<1x1x96xf32>
    %43 = vector.shape_cast %42 : vector<1x1x96xf32> to vector<1x96xf32>
    %44 = vector.broadcast %43 : vector<1x96xf32> to vector<16x96xf32>
    %45 = arith.addf %41, %44 : vector<16x96xf32>
    %46 = arith.truncf %38 : vector<16x4xf32> to vector<16x4xbf16>
    %c0_27 = arith.constant 0 : index
    %c0_28 = arith.constant 0 : index
    %c0_29 = arith.constant 0 : index
    %47 = vector.load %arg8[%c0_27, %c0_28, %c0_29] : memref<2x4x96xbf16, #tpu.memory_space<vmem>>, vector<1x4x96xbf16>
    %48 = vector.shape_cast %47 : vector<1x4x96xbf16> to vector<4x96xbf16>
    %cst_30 = arith.constant dense<0.000000e+00> : vector<16x96xf32>
    %49 = tpu.matmul %46, %48, %cst_30 {dimension_numbers = #tpu.dot_dimension_numbers<[1], [0], [0], [1], [0, 0, 1, 1], [], []>} : vector<16x4xbf16>, vector<4x96xbf16>, vector<16x96xf32> -> vector<16x96xf32>
    %50 = arith.addf %45, %49 : vector<16x96xf32>
    %51 = arith.truncf %50 : vector<16x96xf32> to vector<16x96xbf16>
    %52 = vector.extract_strided_slice %51 {offsets = [0, 0], sizes = [16, 8], strides = [1, 1]} : vector<16x96xbf16> to vector<16x8xbf16>
    %53 = vector.shape_cast %52 : vector<16x8xbf16> to vector<2x8x8xbf16>
    %54 = vector.extract_strided_slice %51 {offsets = [0, 32], sizes = [16, 8], strides = [1, 1]} : vector<16x96xbf16> to vector<16x8xbf16>
    %55 = vector.shape_cast %54 : vector<16x8xbf16> to vector<2x8x8xbf16>
    %56 = vector.extract_strided_slice %51 {offsets = [0, 64], sizes = [16, 8], strides = [1, 1]} : vector<16x96xbf16> to vector<16x8xbf16>
    %57 = vector.shape_cast %56 : vector<16x8xbf16> to vector<2x8x8xbf16>
    "tpu.trace_start"() <{level = 10 : i32, message = "bqd,bkd->bqk"}> : () -> ()
    %cst_31 = arith.constant dense<0.000000e+00> : vector<2x8x8xf32>
    %58 = tpu.matmul %53, %55, %cst_31 {dimension_numbers = #tpu.dot_dimension_numbers<[2], [2], [1], [1], [0, 0, 0, 1, 1, 1], [0], [0]>} : vector<2x8x8xbf16>, vector<2x8x8xbf16>, vector<2x8x8xf32> -> vector<2x8x8xf32>
    "tpu.trace_stop"() : () -> ()
    %59 = vector.extract_strided_slice %51 {offsets = [0, 8], sizes = [16, 8], strides = [1, 1]} : vector<16x96xbf16> to vector<16x8xbf16>
    %60 = vector.shape_cast %59 : vector<16x8xbf16> to vector<2x8x8xbf16>
    %61 = vector.extract_strided_slice %51 {offsets = [0, 40], sizes = [16, 8], strides = [1, 1]} : vector<16x96xbf16> to vector<16x8xbf16>
    %62 = vector.shape_cast %61 : vector<16x8xbf16> to vector<2x8x8xbf16>
    %63 = vector.extract_strided_slice %51 {offsets = [0, 72], sizes = [16, 8], strides = [1, 1]} : vector<16x96xbf16> to vector<16x8xbf16>
    %64 = vector.shape_cast %63 : vector<16x8xbf16> to vector<2x8x8xbf16>
    "tpu.trace_start"() <{level = 10 : i32, message = "bqd,bkd->bqk"}> : () -> ()
    %cst_32 = arith.constant dense<0.000000e+00> : vector<2x8x8xf32>
    %65 = tpu.matmul %60, %62, %cst_32 {dimension_numbers = #tpu.dot_dimension_numbers<[2], [2], [1], [1], [0, 0, 0, 1, 1, 1], [0], [0]>} : vector<2x8x8xbf16>, vector<2x8x8xbf16>, vector<2x8x8xf32> -> vector<2x8x8xf32>
    "tpu.trace_stop"() : () -> ()
    %66 = vector.extract_strided_slice %51 {offsets = [0, 16], sizes = [16, 8], strides = [1, 1]} : vector<16x96xbf16> to vector<16x8xbf16>
    %67 = vector.shape_cast %66 : vector<16x8xbf16> to vector<2x8x8xbf16>
    %68 = vector.extract_strided_slice %51 {offsets = [0, 48], sizes = [16, 8], strides = [1, 1]} : vector<16x96xbf16> to vector<16x8xbf16>
    %69 = vector.shape_cast %68 : vector<16x8xbf16> to vector<2x8x8xbf16>
    %70 = vector.extract_strided_slice %51 {offsets = [0, 80], sizes = [16, 8], strides = [1, 1]} : vector<16x96xbf16> to vector<16x8xbf16>
    %71 = vector.shape_cast %70 : vector<16x8xbf16> to vector<2x8x8xbf16>
    "tpu.trace_start"() <{level = 10 : i32, message = "bqd,bkd->bqk"}> : () -> ()
    %cst_33 = arith.constant dense<0.000000e+00> : vector<2x8x8xf32>
    %72 = tpu.matmul %67, %69, %cst_33 {dimension_numbers = #tpu.dot_dimension_numbers<[2], [2], [1], [1], [0, 0, 0, 1, 1, 1], [0], [0]>} : vector<2x8x8xbf16>, vector<2x8x8xbf16>, vector<2x8x8xf32> -> vector<2x8x8xf32>
    "tpu.trace_stop"() : () -> ()
    %73 = vector.extract_strided_slice %51 {offsets = [0, 24], sizes = [16, 8], strides = [1, 1]} : vector<16x96xbf16> to vector<16x8xbf16>
    %74 = vector.shape_cast %73 : vector<16x8xbf16> to vector<2x8x8xbf16>
    %75 = vector.extract_strided_slice %51 {offsets = [0, 56], sizes = [16, 8], strides = [1, 1]} : vector<16x96xbf16> to vector<16x8xbf16>
    %76 = vector.shape_cast %75 : vector<16x8xbf16> to vector<2x8x8xbf16>
    %77 = vector.extract_strided_slice %51 {offsets = [0, 88], sizes = [16, 8], strides = [1, 1]} : vector<16x96xbf16> to vector<16x8xbf16>
    %78 = vector.shape_cast %77 : vector<16x8xbf16> to vector<2x8x8xbf16>
    "tpu.trace_start"() <{level = 10 : i32, message = "bqd,bkd->bqk"}> : () -> ()
    %cst_34 = arith.constant dense<0.000000e+00> : vector<2x8x8xf32>
    %79 = tpu.matmul %74, %76, %cst_34 {dimension_numbers = #tpu.dot_dimension_numbers<[2], [2], [1], [1], [0, 0, 0, 1, 1, 1], [0], [0]>} : vector<2x8x8xbf16>, vector<2x8x8xbf16>, vector<2x8x8xf32> -> vector<2x8x8xf32>
    "tpu.trace_stop"() : () -> ()
    %80 = tpu.concatenate %58, %65, %72, %79 in 0 : vector<2x8x8xf32>, vector<2x8x8xf32>, vector<2x8x8xf32>, vector<2x8x8xf32> -> vector<8x8x8xf32>
    %cst_35 = arith.constant 0.353553385 : f32
    %81 = vector.broadcast %cst_35 : f32 to vector<8x8x8xf32>
    %82 = arith.mulf %80, %81 : vector<8x8x8xf32>
    %cst_36 = arith.constant -1.000000e+30 : f32
    %83 = vector.broadcast %cst_36 : f32 to vector<8x8x8xf32>
    %84 = arith.select %2, %82, %83 : vector<8x8x8xi1>, vector<8x8x8xf32>
    %cst_37 = arith.constant dense<0xFF800000> : vector<8x8xf32>
    %85 = vector.multi_reduction <maximumf>, %84, %cst_37 [2] : vector<8x8x8xf32> to vector<8x8xf32>
    %86 = vector.shape_cast %85 : vector<8x8xf32> to vector<8x8x1xf32>
    %87 = vector.broadcast %86 : vector<8x8x1xf32> to vector<8x8x8xf32>
    %88 = arith.subf %84, %87 : vector<8x8x8xf32>
    %89 = math.exp %88 : vector<8x8x8xf32>
    %cst_38 = arith.constant dense<0.000000e+00> : vector<8x8xf32>
    %90 = vector.multi_reduction <add>, %89, %cst_38 [2] : vector<8x8x8xf32> to vector<8x8xf32>
    %91 = vector.shape_cast %90 : vector<8x8xf32> to vector<8x8x1xf32>
    %92 = vector.broadcast %91 : vector<8x8x1xf32> to vector<8x8x8xf32>
    %93 = arith.divf %89, %92 : vector<8x8x8xf32>
    %94 = arith.truncf %93 : vector<8x8x8xf32> to vector<8x8x8xbf16>
    %95 = vector.extract_strided_slice %94 {offsets = [0, 0, 0], sizes = [2, 8, 8], strides = [1, 1, 1]} : vector<8x8x8xbf16> to vector<2x8x8xbf16>
    "tpu.trace_start"() <{level = 10 : i32, message = "bqk,bkd->bqd"}> : () -> ()
    %cst_39 = arith.constant dense<0.000000e+00> : vector<2x8x8xf32>
    %96 = tpu.matmul %95, %57, %cst_39 {dimension_numbers = #tpu.dot_dimension_numbers<[2], [1], [1], [2], [0, 0, 0, 1, 1, 2], [0], [0]>} : vector<2x8x8xbf16>, vector<2x8x8xbf16>, vector<2x8x8xf32> -> vector<2x8x8xf32>
    "tpu.trace_stop"() : () -> ()
    %97 = vector.shape_cast %96 : vector<2x8x8xf32> to vector<16x8xf32>
    %98 = vector.extract_strided_slice %94 {offsets = [2, 0, 0], sizes = [2, 8, 8], strides = [1, 1, 1]} : vector<8x8x8xbf16> to vector<2x8x8xbf16>
    "tpu.trace_start"() <{level = 10 : i32, message = "bqk,bkd->bqd"}> : () -> ()
    %cst_40 = arith.constant dense<0.000000e+00> : vector<2x8x8xf32>
    %99 = tpu.matmul %98, %64, %cst_40 {dimension_numbers = #tpu.dot_dimension_numbers<[2], [1], [1], [2], [0, 0, 0, 1, 1, 2], [0], [0]>} : vector<2x8x8xbf16>, vector<2x8x8xbf16>, vector<2x8x8xf32> -> vector<2x8x8xf32>
    "tpu.trace_stop"() : () -> ()
    %100 = vector.shape_cast %99 : vector<2x8x8xf32> to vector<16x8xf32>
    %101 = vector.extract_strided_slice %94 {offsets = [4, 0, 0], sizes = [2, 8, 8], strides = [1, 1, 1]} : vector<8x8x8xbf16> to vector<2x8x8xbf16>
    "tpu.trace_start"() <{level = 10 : i32, message = "bqk,bkd->bqd"}> : () -> ()
    %cst_41 = arith.constant dense<0.000000e+00> : vector<2x8x8xf32>
    %102 = tpu.matmul %101, %71, %cst_41 {dimension_numbers = #tpu.dot_dimension_numbers<[2], [1], [1], [2], [0, 0, 0, 1, 1, 2], [0], [0]>} : vector<2x8x8xbf16>, vector<2x8x8xbf16>, vector<2x8x8xf32> -> vector<2x8x8xf32>
    "tpu.trace_stop"() : () -> ()
    %103 = vector.shape_cast %102 : vector<2x8x8xf32> to vector<16x8xf32>
    %104 = vector.extract_strided_slice %94 {offsets = [6, 0, 0], sizes = [2, 8, 8], strides = [1, 1, 1]} : vector<8x8x8xbf16> to vector<2x8x8xbf16>
    "tpu.trace_start"() <{level = 10 : i32, message = "bqk,bkd->bqd"}> : () -> ()
    %cst_42 = arith.constant dense<0.000000e+00> : vector<2x8x8xf32>
    %105 = tpu.matmul %104, %78, %cst_42 {dimension_numbers = #tpu.dot_dimension_numbers<[2], [1], [1], [2], [0, 0, 0, 1, 1, 2], [0], [0]>} : vector<2x8x8xbf16>, vector<2x8x8xbf16>, vector<2x8x8xf32> -> vector<2x8x8xf32>
    "tpu.trace_stop"() : () -> ()
    %106 = vector.shape_cast %105 : vector<2x8x8xf32> to vector<16x8xf32>
    %107 = tpu.concatenate %97, %100, %103, %106 in 1 : vector<16x8xf32>, vector<16x8xf32>, vector<16x8xf32>, vector<16x8xf32> -> vector<16x32xf32>
    %108 = arith.truncf %107 : vector<16x32xf32> to vector<16x32xbf16>
    %c0_43 = arith.constant 0 : index
    %c0_44 = arith.constant 0 : index
    %c0_45 = arith.constant 0 : index
    %109 = vector.load %arg9[%c0_43, %c0_44, %c0_45] : memref<2x32x32xbf16, #tpu.memory_space<vmem>>, vector<1x32x32xbf16>
    %110 = vector.shape_cast %109 : vector<1x32x32xbf16> to vector<32x32xbf16>
    %cst_46 = arith.constant dense<0.000000e+00> : vector<16x32xf32>
    %111 = tpu.matmul %108, %110, %cst_46 {dimension_numbers = #tpu.dot_dimension_numbers<[1], [0], [0], [1], [0, 0, 1, 1], [], []>} : vector<16x32xbf16>, vector<32x32xbf16>, vector<16x32xf32> -> vector<16x32xf32>
    %c0_47 = arith.constant 0 : index
    %c0_48 = arith.constant 0 : index
    %c0_49 = arith.constant 0 : index
    %112 = vector.load %arg10[%c0_47, %c0_48, %c0_49] : memref<2x1x32xf32, #tpu.memory_space<vmem>>, vector<1x1x32xf32>
    %113 = vector.shape_cast %112 : vector<1x1x32xf32> to vector<1x32xf32>
    %114 = vector.broadcast %113 : vector<1x32xf32> to vector<16x32xf32>
    %115 = arith.addf %111, %114 : vector<16x32xf32>
    %116 = arith.addf %8, %115 : vector<16x32xf32>
    %c0_50 = arith.constant 0 : index
    %c0_51 = arith.constant 0 : index
    %c0_52 = arith.constant 0 : index
    %117 = vector.load %arg11[%c0_50, %c0_51, %c0_52] : memref<2x1x32xf32, #tpu.memory_space<vmem>>, vector<1x1x32xf32>
    %118 = vector.shape_cast %117 : vector<1x1x32xf32> to vector<1x32xf32>
    %c0_53 = arith.constant 0 : index
    %c0_54 = arith.constant 0 : index
    %c0_55 = arith.constant 0 : index
    %119 = vector.load %arg12[%c0_53, %c0_54, %c0_55] : memref<2x1x32xf32, #tpu.memory_space<vmem>>, vector<1x1x32xf32>
    %120 = vector.shape_cast %119 : vector<1x1x32xf32> to vector<1x32xf32>
    %cst_56 = arith.constant dense<0.000000e+00> : vector<16xf32>
    %121 = vector.multi_reduction <add>, %116, %cst_56 [1] : vector<16x32xf32> to vector<16xf32>
    %122 = vector.shape_cast %121 : vector<16xf32> to vector<16x1xf32>
    %cst_57 = arith.constant 3.200000e+01 : f32
    %123 = vector.broadcast %cst_57 : f32 to vector<16x1xf32>
    %124 = arith.divf %122, %123 : vector<16x1xf32>
    %125 = vector.broadcast %124 : vector<16x1xf32> to vector<16x32xf32>
    %126 = arith.subf %116, %125 : vector<16x32xf32>
    %127 = arith.mulf %126, %126 : vector<16x32xf32>
    %cst_58 = arith.constant dense<0.000000e+00> : vector<16xf32>
    %128 = vector.multi_reduction <add>, %127, %cst_58 [1] : vector<16x32xf32> to vector<16xf32>
    %129 = vector.shape_cast %128 : vector<16xf32> to vector<16x1xf32>
    %cst_59 = arith.constant 3.200000e+01 : f32
    %130 = vector.broadcast %cst_59 : f32 to vector<16x1xf32>
    %131 = arith.divf %129, %130 : vector<16x1xf32>
    %132 = vector.broadcast %124 : vector<16x1xf32> to vector<16x32xf32>
    %133 = arith.subf %116, %132 : vector<16x32xf32>
    %cst_60 = arith.constant 9.99999997E-7 : f32
    %134 = vector.broadcast %cst_60 : f32 to vector<16x1xf32>
    %135 = arith.addf %131, %134 : vector<16x1xf32>
    %136 = math.rsqrt %135 : vector<16x1xf32>
    %137 = vector.broadcast %136 : vector<16x1xf32> to vector<16x32xf32>
    %138 = arith.mulf %133, %137 : vector<16x32xf32>
    %139 = vector.broadcast %118 : vector<1x32xf32> to vector<16x32xf32>
    %140 = arith.mulf %138, %139 : vector<16x32xf32>
    %141 = vector.broadcast %120 : vector<1x32xf32> to vector<16x32xf32>
    %142 = arith.addf %140, %141 : vector<16x32xf32>
    %143 = arith.truncf %142 : vector<16x32xf32> to vector<16x32xbf16>
    %c0_61 = arith.constant 0 : index
    %c0_62 = arith.constant 0 : index
    %c0_63 = arith.constant 0 : index
    %144 = vector.load %arg13[%c0_61, %c0_62, %c0_63] : memref<2x32x64xbf16, #tpu.memory_space<vmem>>, vector<1x32x64xbf16>
    %145 = vector.shape_cast %144 : vector<1x32x64xbf16> to vector<32x64xbf16>
    %cst_64 = arith.constant dense<0.000000e+00> : vector<16x64xf32>
    %146 = tpu.matmul %143, %145, %cst_64 {dimension_numbers = #tpu.dot_dimension_numbers<[1], [0], [0], [1], [0, 0, 1, 1], [], []>} : vector<16x32xbf16>, vector<32x64xbf16>, vector<16x64xf32> -> vector<16x64xf32>
    %c0_65 = arith.constant 0 : index
    %c0_66 = arith.constant 0 : index
    %c0_67 = arith.constant 0 : index
    %147 = vector.load %arg14[%c0_65, %c0_66, %c0_67] : memref<2x1x64xf32, #tpu.memory_space<vmem>>, vector<1x1x64xf32>
    %148 = vector.shape_cast %147 : vector<1x1x64xf32> to vector<1x64xf32>
    %149 = vector.broadcast %148 : vector<1x64xf32> to vector<16x64xf32>
    %150 = arith.addf %146, %149 : vector<16x64xf32>
    %cst_68 = arith.constant 5.000000e-01 : f32
    %151 = vector.broadcast %cst_68 : f32 to vector<16x64xf32>
    %152 = arith.mulf %151, %150 : vector<16x64xf32>
    %cst_69 = arith.constant 4.471500e-02 : f32
    %153 = vector.broadcast %cst_69 : f32 to vector<16x64xf32>
    %154 = arith.mulf %153, %150 : vector<16x64xf32>
    %155 = arith.mulf %154, %150 : vector<16x64xf32>
    %156 = arith.mulf %155, %150 : vector<16x64xf32>
    %157 = arith.addf %150, %156 : vector<16x64xf32>
    %cst_70 = arith.constant 0.797884583 : f32
    %158 = vector.broadcast %cst_70 : f32 to vector<16x64xf32>
    %159 = arith.mulf %158, %157 : vector<16x64xf32>
    %160 = math.tanh %159 : vector<16x64xf32>
    %cst_71 = arith.constant 1.000000e+00 : f32
    %161 = vector.broadcast %cst_71 : f32 to vector<16x64xf32>
    %162 = arith.addf %161, %160 : vector<16x64xf32>
    %163 = arith.mulf %152, %162 : vector<16x64xf32>
    %164 = arith.truncf %163 : vector<16x64xf32> to vector<16x64xbf16>
    %c0_72 = arith.constant 0 : index
    %c0_73 = arith.constant 0 : index
    %c0_74 = arith.constant 0 : index
    %165 = vector.load %arg15[%c0_72, %c0_73, %c0_74] : memref<2x64x32xbf16, #tpu.memory_space<vmem>>, vector<1x64x32xbf16>
    %166 = vector.shape_cast %165 : vector<1x64x32xbf16> to vector<64x32xbf16>
    %cst_75 = arith.constant dense<0.000000e+00> : vector<16x32xf32>
    %167 = tpu.matmul %164, %166, %cst_75 {dimension_numbers = #tpu.dot_dimension_numbers<[1], [0], [0], [1], [0, 0, 1, 1], [], []>} : vector<16x64xbf16>, vector<64x32xbf16>, vector<16x32xf32> -> vector<16x32xf32>
    %c0_76 = arith.constant 0 : index
    %c0_77 = arith.constant 0 : index
    %c0_78 = arith.constant 0 : index
    %168 = vector.load %arg16[%c0_76, %c0_77, %c0_78] : memref<2x1x32xf32, #tpu.memory_space<vmem>>, vector<1x1x32xf32>
    %169 = vector.shape_cast %168 : vector<1x1x32xf32> to vector<1x32xf32>
    %170 = vector.broadcast %169 : vector<1x32xf32> to vector<16x32xf32>
    %171 = arith.addf %167, %170 : vector<16x32xf32>
    %172 = arith.addf %116, %171 : vector<16x32xf32>
    %c1 = arith.constant 1 : index
    %c0_79 = arith.constant 0 : index
    %c0_80 = arith.constant 0 : index
    %173 = vector.load %arg3[%c1, %c0_79, %c0_80] : memref<2x1x32xf32, #tpu.memory_space<vmem>>, vector<1x1x32xf32>
    %174 = vector.shape_cast %173 : vector<1x1x32xf32> to vector<1x32xf32>
    %c1_81 = arith.constant 1 : index
    %c0_82 = arith.constant 0 : index
    %c0_83 = arith.constant 0 : index
    %175 = vector.load %arg4[%c1_81, %c0_82, %c0_83] : memref<2x1x32xf32, #tpu.memory_space<vmem>>, vector<1x1x32xf32>
    %176 = vector.shape_cast %175 : vector<1x1x32xf32> to vector<1x32xf32>
    %cst_84 = arith.constant dense<0.000000e+00> : vector<16xf32>
    %177 = vector.multi_reduction <add>, %172, %cst_84 [1] : vector<16x32xf32> to vector<16xf32>
    %178 = vector.shape_cast %177 : vector<16xf32> to vector<16x1xf32>
    %cst_85 = arith.constant 3.200000e+01 : f32
    %179 = vector.broadcast %cst_85 : f32 to vector<16x1xf32>
    %180 = arith.divf %178, %179 : vector<16x1xf32>
    %181 = vector.broadcast %180 : vector<16x1xf32> to vector<16x32xf32>
    %182 = arith.subf %172, %181 : vector<16x32xf32>
    %183 = arith.mulf %182, %182 : vector<16x32xf32>
    %cst_86 = arith.constant dense<0.000000e+00> : vector<16xf32>
    %184 = vector.multi_reduction <add>, %183, %cst_86 [1] : vector<16x32xf32> to vector<16xf32>
    %185 = vector.shape_cast %184 : vector<16xf32> to vector<16x1xf32>
    %cst_87 = arith.constant 3.200000e+01 : f32
    %186 = vector.broadcast %cst_87 : f32 to vector<16x1xf32>
    %187 = arith.divf %185, %186 : vector<16x1xf32>
    %188 = vector.broadcast %180 : vector<16x1xf32> to vector<16x32xf32>
    %189 = arith.subf %172, %188 : vector<16x32xf32>
    %cst_88 = arith.constant 9.99999997E-7 : f32
    %190 = vector.broadcast %cst_88 : f32 to vector<16x1xf32>
    %191 = arith.addf %187, %190 : vector<16x1xf32>
    %192 = math.rsqrt %191 : vector<16x1xf32>
    %193 = vector.broadcast %192 : vector<16x1xf32> to vector<16x32xf32>
    %194 = arith.mulf %189, %193 : vector<16x32xf32>
    %195 = vector.broadcast %174 : vector<1x32xf32> to vector<16x32xf32>
    %196 = arith.mulf %194, %195 : vector<16x32xf32>
    %197 = vector.broadcast %176 : vector<1x32xf32> to vector<16x32xf32>
    %198 = arith.addf %196, %197 : vector<16x32xf32>
    %199 = arith.truncf %198 : vector<16x32xf32> to vector<16x32xbf16>
    %c1_89 = arith.constant 1 : index
    %c0_90 = arith.constant 0 : index
    %c0_91 = arith.constant 0 : index
    %200 = vector.load %arg7[%c1_89, %c0_90, %c0_91] : memref<2x32x4xbf16, #tpu.memory_space<vmem>>, vector<1x32x4xbf16>
    %201 = vector.shape_cast %200 : vector<1x32x4xbf16> to vector<32x4xbf16>
    %cst_92 = arith.constant dense<0.000000e+00> : vector<16x4xf32>
    %202 = tpu.matmul %199, %201, %cst_92 {dimension_numbers = #tpu.dot_dimension_numbers<[1], [0], [0], [1], [0, 0, 1, 1], [], []>} : vector<16x32xbf16>, vector<32x4xbf16>, vector<16x4xf32> -> vector<16x4xf32>
    %c1_93 = arith.constant 1 : index
    %c0_94 = arith.constant 0 : index
    %c0_95 = arith.constant 0 : index
    %203 = vector.load %arg5[%c1_93, %c0_94, %c0_95] : memref<2x32x96xbf16, #tpu.memory_space<vmem>>, vector<1x32x96xbf16>
    %204 = vector.shape_cast %203 : vector<1x32x96xbf16> to vector<32x96xbf16>
    %cst_96 = arith.constant dense<0.000000e+00> : vector<16x96xf32>
    %205 = tpu.matmul %199, %204, %cst_96 {dimension_numbers = #tpu.dot_dimension_numbers<[1], [0], [0], [1], [0, 0, 1, 1], [], []>} : vector<16x32xbf16>, vector<32x96xbf16>, vector<16x96xf32> -> vector<16x96xf32>
    %c1_97 = arith.constant 1 : index
    %c0_98 = arith.constant 0 : index
    %c0_99 = arith.constant 0 : index
    %206 = vector.load %arg6[%c1_97, %c0_98, %c0_99] : memref<2x1x96xf32, #tpu.memory_space<vmem>>, vector<1x1x96xf32>
    %207 = vector.shape_cast %206 : vector<1x1x96xf32> to vector<1x96xf32>
    %208 = vector.broadcast %207 : vector<1x96xf32> to vector<16x96xf32>
    %209 = arith.addf %205, %208 : vector<16x96xf32>
    %210 = arith.truncf %202 : vector<16x4xf32> to vector<16x4xbf16>
    %c1_100 = arith.constant 1 : index
    %c0_101 = arith.constant 0 : index
    %c0_102 = arith.constant 0 : index
    %211 = vector.load %arg8[%c1_100, %c0_101, %c0_102] : memref<2x4x96xbf16, #tpu.memory_space<vmem>>, vector<1x4x96xbf16>
    %212 = vector.shape_cast %211 : vector<1x4x96xbf16> to vector<4x96xbf16>
    %cst_103 = arith.constant dense<0.000000e+00> : vector<16x96xf32>
    %213 = tpu.matmul %210, %212, %cst_103 {dimension_numbers = #tpu.dot_dimension_numbers<[1], [0], [0], [1], [0, 0, 1, 1], [], []>} : vector<16x4xbf16>, vector<4x96xbf16>, vector<16x96xf32> -> vector<16x96xf32>
    %214 = arith.addf %209, %213 : vector<16x96xf32>
    %215 = arith.truncf %214 : vector<16x96xf32> to vector<16x96xbf16>
    %216 = vector.extract_strided_slice %215 {offsets = [0, 0], sizes = [16, 8], strides = [1, 1]} : vector<16x96xbf16> to vector<16x8xbf16>
    %217 = vector.shape_cast %216 : vector<16x8xbf16> to vector<2x8x8xbf16>
    %218 = vector.extract_strided_slice %215 {offsets = [0, 32], sizes = [16, 8], strides = [1, 1]} : vector<16x96xbf16> to vector<16x8xbf16>
    %219 = vector.shape_cast %218 : vector<16x8xbf16> to vector<2x8x8xbf16>
    %220 = vector.extract_strided_slice %215 {offsets = [0, 64], sizes = [16, 8], strides = [1, 1]} : vector<16x96xbf16> to vector<16x8xbf16>
    %221 = vector.shape_cast %220 : vector<16x8xbf16> to vector<2x8x8xbf16>
    "tpu.trace_start"() <{level = 10 : i32, message = "bqd,bkd->bqk"}> : () -> ()
    %cst_104 = arith.constant dense<0.000000e+00> : vector<2x8x8xf32>
    %222 = tpu.matmul %217, %219, %cst_104 {dimension_numbers = #tpu.dot_dimension_numbers<[2], [2], [1], [1], [0, 0, 0, 1, 1, 1], [0], [0]>} : vector<2x8x8xbf16>, vector<2x8x8xbf16>, vector<2x8x8xf32> -> vector<2x8x8xf32>
    "tpu.trace_stop"() : () -> ()
    %223 = vector.extract_strided_slice %215 {offsets = [0, 8], sizes = [16, 8], strides = [1, 1]} : vector<16x96xbf16> to vector<16x8xbf16>
    %224 = vector.shape_cast %223 : vector<16x8xbf16> to vector<2x8x8xbf16>
    %225 = vector.extract_strided_slice %215 {offsets = [0, 40], sizes = [16, 8], strides = [1, 1]} : vector<16x96xbf16> to vector<16x8xbf16>
    %226 = vector.shape_cast %225 : vector<16x8xbf16> to vector<2x8x8xbf16>
    %227 = vector.extract_strided_slice %215 {offsets = [0, 72], sizes = [16, 8], strides = [1, 1]} : vector<16x96xbf16> to vector<16x8xbf16>
    %228 = vector.shape_cast %227 : vector<16x8xbf16> to vector<2x8x8xbf16>
    "tpu.trace_start"() <{level = 10 : i32, message = "bqd,bkd->bqk"}> : () -> ()
    %cst_105 = arith.constant dense<0.000000e+00> : vector<2x8x8xf32>
    %229 = tpu.matmul %224, %226, %cst_105 {dimension_numbers = #tpu.dot_dimension_numbers<[2], [2], [1], [1], [0, 0, 0, 1, 1, 1], [0], [0]>} : vector<2x8x8xbf16>, vector<2x8x8xbf16>, vector<2x8x8xf32> -> vector<2x8x8xf32>
    "tpu.trace_stop"() : () -> ()
    %230 = vector.extract_strided_slice %215 {offsets = [0, 16], sizes = [16, 8], strides = [1, 1]} : vector<16x96xbf16> to vector<16x8xbf16>
    %231 = vector.shape_cast %230 : vector<16x8xbf16> to vector<2x8x8xbf16>
    %232 = vector.extract_strided_slice %215 {offsets = [0, 48], sizes = [16, 8], strides = [1, 1]} : vector<16x96xbf16> to vector<16x8xbf16>
    %233 = vector.shape_cast %232 : vector<16x8xbf16> to vector<2x8x8xbf16>
    %234 = vector.extract_strided_slice %215 {offsets = [0, 80], sizes = [16, 8], strides = [1, 1]} : vector<16x96xbf16> to vector<16x8xbf16>
    %235 = vector.shape_cast %234 : vector<16x8xbf16> to vector<2x8x8xbf16>
    "tpu.trace_start"() <{level = 10 : i32, message = "bqd,bkd->bqk"}> : () -> ()
    %cst_106 = arith.constant dense<0.000000e+00> : vector<2x8x8xf32>
    %236 = tpu.matmul %231, %233, %cst_106 {dimension_numbers = #tpu.dot_dimension_numbers<[2], [2], [1], [1], [0, 0, 0, 1, 1, 1], [0], [0]>} : vector<2x8x8xbf16>, vector<2x8x8xbf16>, vector<2x8x8xf32> -> vector<2x8x8xf32>
    "tpu.trace_stop"() : () -> ()
    %237 = vector.extract_strided_slice %215 {offsets = [0, 24], sizes = [16, 8], strides = [1, 1]} : vector<16x96xbf16> to vector<16x8xbf16>
    %238 = vector.shape_cast %237 : vector<16x8xbf16> to vector<2x8x8xbf16>
    %239 = vector.extract_strided_slice %215 {offsets = [0, 56], sizes = [16, 8], strides = [1, 1]} : vector<16x96xbf16> to vector<16x8xbf16>
    %240 = vector.shape_cast %239 : vector<16x8xbf16> to vector<2x8x8xbf16>
    %241 = vector.extract_strided_slice %215 {offsets = [0, 88], sizes = [16, 8], strides = [1, 1]} : vector<16x96xbf16> to vector<16x8xbf16>
    %242 = vector.shape_cast %241 : vector<16x8xbf16> to vector<2x8x8xbf16>
    "tpu.trace_start"() <{level = 10 : i32, message = "bqd,bkd->bqk"}> : () -> ()
    %cst_107 = arith.constant dense<0.000000e+00> : vector<2x8x8xf32>
    %243 = tpu.matmul %238, %240, %cst_107 {dimension_numbers = #tpu.dot_dimension_numbers<[2], [2], [1], [1], [0, 0, 0, 1, 1, 1], [0], [0]>} : vector<2x8x8xbf16>, vector<2x8x8xbf16>, vector<2x8x8xf32> -> vector<2x8x8xf32>
    "tpu.trace_stop"() : () -> ()
    %244 = tpu.concatenate %222, %229, %236, %243 in 0 : vector<2x8x8xf32>, vector<2x8x8xf32>, vector<2x8x8xf32>, vector<2x8x8xf32> -> vector<8x8x8xf32>
    %cst_108 = arith.constant 0.353553385 : f32
    %245 = vector.broadcast %cst_108 : f32 to vector<8x8x8xf32>
    %246 = arith.mulf %244, %245 : vector<8x8x8xf32>
    %cst_109 = arith.constant -1.000000e+30 : f32
    %247 = vector.broadcast %cst_109 : f32 to vector<8x8x8xf32>
    %248 = arith.select %2, %246, %247 : vector<8x8x8xi1>, vector<8x8x8xf32>
    %cst_110 = arith.constant dense<0xFF800000> : vector<8x8xf32>
    %249 = vector.multi_reduction <maximumf>, %248, %cst_110 [2] : vector<8x8x8xf32> to vector<8x8xf32>
    %250 = vector.shape_cast %249 : vector<8x8xf32> to vector<8x8x1xf32>
    %251 = vector.broadcast %250 : vector<8x8x1xf32> to vector<8x8x8xf32>
    %252 = arith.subf %248, %251 : vector<8x8x8xf32>
    %253 = math.exp %252 : vector<8x8x8xf32>
    %cst_111 = arith.constant dense<0.000000e+00> : vector<8x8xf32>
    %254 = vector.multi_reduction <add>, %253, %cst_111 [2] : vector<8x8x8xf32> to vector<8x8xf32>
    %255 = vector.shape_cast %254 : vector<8x8xf32> to vector<8x8x1xf32>
    %256 = vector.broadcast %255 : vector<8x8x1xf32> to vector<8x8x8xf32>
    %257 = arith.divf %253, %256 : vector<8x8x8xf32>
    %258 = arith.truncf %257 : vector<8x8x8xf32> to vector<8x8x8xbf16>
    %259 = vector.extract_strided_slice %258 {offsets = [0, 0, 0], sizes = [2, 8, 8], strides = [1, 1, 1]} : vector<8x8x8xbf16> to vector<2x8x8xbf16>
    "tpu.trace_start"() <{level = 10 : i32, message = "bqk,bkd->bqd"}> : () -> ()
    %cst_112 = arith.constant dense<0.000000e+00> : vector<2x8x8xf32>
    %260 = tpu.matmul %259, %221, %cst_112 {dimension_numbers = #tpu.dot_dimension_numbers<[2], [1], [1], [2], [0, 0, 0, 1, 1, 2], [0], [0]>} : vector<2x8x8xbf16>, vector<2x8x8xbf16>, vector<2x8x8xf32> -> vector<2x8x8xf32>
    "tpu.trace_stop"() : () -> ()
    %261 = vector.shape_cast %260 : vector<2x8x8xf32> to vector<16x8xf32>
    %262 = vector.extract_strided_slice %258 {offsets = [2, 0, 0], sizes = [2, 8, 8], strides = [1, 1, 1]} : vector<8x8x8xbf16> to vector<2x8x8xbf16>
    "tpu.trace_start"() <{level = 10 : i32, message = "bqk,bkd->bqd"}> : () -> ()
    %cst_113 = arith.constant dense<0.000000e+00> : vector<2x8x8xf32>
    %263 = tpu.matmul %262, %228, %cst_113 {dimension_numbers = #tpu.dot_dimension_numbers<[2], [1], [1], [2], [0, 0, 0, 1, 1, 2], [0], [0]>} : vector<2x8x8xbf16>, vector<2x8x8xbf16>, vector<2x8x8xf32> -> vector<2x8x8xf32>
    "tpu.trace_stop"() : () -> ()
    %264 = vector.shape_cast %263 : vector<2x8x8xf32> to vector<16x8xf32>
    %265 = vector.extract_strided_slice %258 {offsets = [4, 0, 0], sizes = [2, 8, 8], strides = [1, 1, 1]} : vector<8x8x8xbf16> to vector<2x8x8xbf16>
    "tpu.trace_start"() <{level = 10 : i32, message = "bqk,bkd->bqd"}> : () -> ()
    %cst_114 = arith.constant dense<0.000000e+00> : vector<2x8x8xf32>
    %266 = tpu.matmul %265, %235, %cst_114 {dimension_numbers = #tpu.dot_dimension_numbers<[2], [1], [1], [2], [0, 0, 0, 1, 1, 2], [0], [0]>} : vector<2x8x8xbf16>, vector<2x8x8xbf16>, vector<2x8x8xf32> -> vector<2x8x8xf32>
    "tpu.trace_stop"() : () -> ()
    %267 = vector.shape_cast %266 : vector<2x8x8xf32> to vector<16x8xf32>
    %268 = vector.extract_strided_slice %258 {offsets = [6, 0, 0], sizes = [2, 8, 8], strides = [1, 1, 1]} : vector<8x8x8xbf16> to vector<2x8x8xbf16>
    "tpu.trace_start"() <{level = 10 : i32, message = "bqk,bkd->bqd"}> : () -> ()
    %cst_115 = arith.constant dense<0.000000e+00> : vector<2x8x8xf32>
    %269 = tpu.matmul %268, %242, %cst_115 {dimension_numbers = #tpu.dot_dimension_numbers<[2], [1], [1], [2], [0, 0, 0, 1, 1, 2], [0], [0]>} : vector<2x8x8xbf16>, vector<2x8x8xbf16>, vector<2x8x8xf32> -> vector<2x8x8xf32>
    "tpu.trace_stop"() : () -> ()
    %270 = vector.shape_cast %269 : vector<2x8x8xf32> to vector<16x8xf32>
    %271 = tpu.concatenate %261, %264, %267, %270 in 1 : vector<16x8xf32>, vector<16x8xf32>, vector<16x8xf32>, vector<16x8xf32> -> vector<16x32xf32>
    %272 = arith.truncf %271 : vector<16x32xf32> to vector<16x32xbf16>
    %c1_116 = arith.constant 1 : index
    %c0_117 = arith.constant 0 : index
    %c0_118 = arith.constant 0 : index
    %273 = vector.load %arg9[%c1_116, %c0_117, %c0_118] : memref<2x32x32xbf16, #tpu.memory_space<vmem>>, vector<1x32x32xbf16>
    %274 = vector.shape_cast %273 : vector<1x32x32xbf16> to vector<32x32xbf16>
    %cst_119 = arith.constant dense<0.000000e+00> : vector<16x32xf32>
    %275 = tpu.matmul %272, %274, %cst_119 {dimension_numbers = #tpu.dot_dimension_numbers<[1], [0], [0], [1], [0, 0, 1, 1], [], []>} : vector<16x32xbf16>, vector<32x32xbf16>, vector<16x32xf32> -> vector<16x32xf32>
    %c1_120 = arith.constant 1 : index
    %c0_121 = arith.constant 0 : index
    %c0_122 = arith.constant 0 : index
    %276 = vector.load %arg10[%c1_120, %c0_121, %c0_122] : memref<2x1x32xf32, #tpu.memory_space<vmem>>, vector<1x1x32xf32>
    %277 = vector.shape_cast %276 : vector<1x1x32xf32> to vector<1x32xf32>
    %278 = vector.broadcast %277 : vector<1x32xf32> to vector<16x32xf32>
    %279 = arith.addf %275, %278 : vector<16x32xf32>
    %280 = arith.addf %172, %279 : vector<16x32xf32>
    %281 = vector.extract_strided_slice %257 {offsets = [0, 0, 0], sizes = [2, 8, 8], strides = [1, 1, 1]} : vector<8x8x8xf32> to vector<2x8x8xf32>
    %282 = vector.extract_strided_slice %257 {offsets = [2, 0, 0], sizes = [2, 8, 8], strides = [1, 1, 1]} : vector<8x8x8xf32> to vector<2x8x8xf32>
    %283 = arith.addf %281, %282 : vector<2x8x8xf32>
    %284 = vector.extract_strided_slice %257 {offsets = [4, 0, 0], sizes = [2, 8, 8], strides = [1, 1, 1]} : vector<8x8x8xf32> to vector<2x8x8xf32>
    %285 = arith.addf %283, %284 : vector<2x8x8xf32>
    %286 = vector.extract_strided_slice %257 {offsets = [6, 0, 0], sizes = [2, 8, 8], strides = [1, 1, 1]} : vector<8x8x8xf32> to vector<2x8x8xf32>
    %287 = arith.addf %285, %286 : vector<2x8x8xf32>
    %cst_123 = arith.constant 2.500000e-01 : f32
    %288 = vector.broadcast %cst_123 : f32 to vector<2x8x8xf32>
    %289 = arith.mulf %287, %288 : vector<2x8x8xf32>
    %c0_124 = arith.constant 0 : index
    %c0_125 = arith.constant 0 : index
    %c0_126 = arith.constant 0 : index
    %290 = vector.load %arg22[%c0_124, %c0_125, %c0_126] : memref<2x8x8xf32, #tpu.memory_space<vmem>>, vector<2x8x8xf32>
    tpu.vector_store %arg22[%c0_124, %c0_125, %c0_126], %289 {strides = array<i32>} : memref<2x8x8xf32, #tpu.memory_space<vmem>>, vector<2x8x8xf32>,
    %c1_127 = arith.constant 1 : index
    %c0_128 = arith.constant 0 : index
    %c0_129 = arith.constant 0 : index
    %291 = vector.load %arg11[%c1_127, %c0_128, %c0_129] : memref<2x1x32xf32, #tpu.memory_space<vmem>>, vector<1x1x32xf32>
    %292 = vector.shape_cast %291 : vector<1x1x32xf32> to vector<1x32xf32>
    %c1_130 = arith.constant 1 : index
    %c0_131 = arith.constant 0 : index
    %c0_132 = arith.constant 0 : index
    %293 = vector.load %arg12[%c1_130, %c0_131, %c0_132] : memref<2x1x32xf32, #tpu.memory_space<vmem>>, vector<1x1x32xf32>
    %294 = vector.shape_cast %293 : vector<1x1x32xf32> to vector<1x32xf32>
    %cst_133 = arith.constant dense<0.000000e+00> : vector<16xf32>
    %295 = vector.multi_reduction <add>, %280, %cst_133 [1] : vector<16x32xf32> to vector<16xf32>
    %296 = vector.shape_cast %295 : vector<16xf32> to vector<16x1xf32>
    %cst_134 = arith.constant 3.200000e+01 : f32
    %297 = vector.broadcast %cst_134 : f32 to vector<16x1xf32>
    %298 = arith.divf %296, %297 : vector<16x1xf32>
    %299 = vector.broadcast %298 : vector<16x1xf32> to vector<16x32xf32>
    %300 = arith.subf %280, %299 : vector<16x32xf32>
    %301 = arith.mulf %300, %300 : vector<16x32xf32>
    %cst_135 = arith.constant dense<0.000000e+00> : vector<16xf32>
    %302 = vector.multi_reduction <add>, %301, %cst_135 [1] : vector<16x32xf32> to vector<16xf32>
    %303 = vector.shape_cast %302 : vector<16xf32> to vector<16x1xf32>
    %cst_136 = arith.constant 3.200000e+01 : f32
    %304 = vector.broadcast %cst_136 : f32 to vector<16x1xf32>
    %305 = arith.divf %303, %304 : vector<16x1xf32>
    %306 = vector.broadcast %298 : vector<16x1xf32> to vector<16x32xf32>
    %307 = arith.subf %280, %306 : vector<16x32xf32>
    %cst_137 = arith.constant 9.99999997E-7 : f32
    %308 = vector.broadcast %cst_137 : f32 to vector<16x1xf32>
    %309 = arith.addf %305, %308 : vector<16x1xf32>
    %310 = math.rsqrt %309 : vector<16x1xf32>
    %311 = vector.broadcast %310 : vector<16x1xf32> to vector<16x32xf32>
    %312 = arith.mulf %307, %311 : vector<16x32xf32>
    %313 = vector.broadcast %292 : vector<1x32xf32> to vector<16x32xf32>
    %314 = arith.mulf %312, %313 : vector<16x32xf32>
    %315 = vector.broadcast %294 : vector<1x32xf32> to vector<16x32xf32>
    %316 = arith.addf %314, %315 : vector<16x32xf32>
    %317 = arith.truncf %316 : vector<16x32xf32> to vector<16x32xbf16>
    %c1_138 = arith.constant 1 : index
    %c0_139 = arith.constant 0 : index
    %c0_140 = arith.constant 0 : index
    %318 = vector.load %arg13[%c1_138, %c0_139, %c0_140] : memref<2x32x64xbf16, #tpu.memory_space<vmem>>, vector<1x32x64xbf16>
    %319 = vector.shape_cast %318 : vector<1x32x64xbf16> to vector<32x64xbf16>
    %cst_141 = arith.constant dense<0.000000e+00> : vector<16x64xf32>
    %320 = tpu.matmul %317, %319, %cst_141 {dimension_numbers = #tpu.dot_dimension_numbers<[1], [0], [0], [1], [0, 0, 1, 1], [], []>} : vector<16x32xbf16>, vector<32x64xbf16>, vector<16x64xf32> -> vector<16x64xf32>
    %c1_142 = arith.constant 1 : index
    %c0_143 = arith.constant 0 : index
    %c0_144 = arith.constant 0 : index
    %321 = vector.load %arg14[%c1_142, %c0_143, %c0_144] : memref<2x1x64xf32, #tpu.memory_space<vmem>>, vector<1x1x64xf32>
    %322 = vector.shape_cast %321 : vector<1x1x64xf32> to vector<1x64xf32>
    %323 = vector.broadcast %322 : vector<1x64xf32> to vector<16x64xf32>
    %324 = arith.addf %320, %323 : vector<16x64xf32>
    %cst_145 = arith.constant 5.000000e-01 : f32
    %325 = vector.broadcast %cst_145 : f32 to vector<16x64xf32>
    %326 = arith.mulf %325, %324 : vector<16x64xf32>
    %cst_146 = arith.constant 4.471500e-02 : f32
    %327 = vector.broadcast %cst_146 : f32 to vector<16x64xf32>
    %328 = arith.mulf %327, %324 : vector<16x64xf32>
    %329 = arith.mulf %328, %324 : vector<16x64xf32>
    %330 = arith.mulf %329, %324 : vector<16x64xf32>
    %331 = arith.addf %324, %330 : vector<16x64xf32>
    %cst_147 = arith.constant 0.797884583 : f32
    %332 = vector.broadcast %cst_147 : f32 to vector<16x64xf32>
    %333 = arith.mulf %332, %331 : vector<16x64xf32>
    %334 = math.tanh %333 : vector<16x64xf32>
    %cst_148 = arith.constant 1.000000e+00 : f32
    %335 = vector.broadcast %cst_148 : f32 to vector<16x64xf32>
    %336 = arith.addf %335, %334 : vector<16x64xf32>
    %337 = arith.mulf %326, %336 : vector<16x64xf32>
    %338 = arith.truncf %337 : vector<16x64xf32> to vector<16x64xbf16>
    %c1_149 = arith.constant 1 : index
    %c0_150 = arith.constant 0 : index
    %c0_151 = arith.constant 0 : index
    %339 = vector.load %arg15[%c1_149, %c0_150, %c0_151] : memref<2x64x32xbf16, #tpu.memory_space<vmem>>, vector<1x64x32xbf16>
    %340 = vector.shape_cast %339 : vector<1x64x32xbf16> to vector<64x32xbf16>
    %cst_152 = arith.constant dense<0.000000e+00> : vector<16x32xf32>
    %341 = tpu.matmul %338, %340, %cst_152 {dimension_numbers = #tpu.dot_dimension_numbers<[1], [0], [0], [1], [0, 0, 1, 1], [], []>} : vector<16x64xbf16>, vector<64x32xbf16>, vector<16x32xf32> -> vector<16x32xf32>
    %c1_153 = arith.constant 1 : index
    %c0_154 = arith.constant 0 : index
    %c0_155 = arith.constant 0 : index
    %342 = vector.load %arg16[%c1_153, %c0_154, %c0_155] : memref<2x1x32xf32, #tpu.memory_space<vmem>>, vector<1x1x32xf32>
    %343 = vector.shape_cast %342 : vector<1x1x32xf32> to vector<1x32xf32>
    %344 = vector.broadcast %343 : vector<1x32xf32> to vector<16x32xf32>
    %345 = arith.addf %341, %344 : vector<16x32xf32>
    %346 = arith.addf %280, %345 : vector<16x32xf32>
    %347 = vector.shape_cast %346 : vector<16x32xf32> to vector<2x8x32xf32>
    %348 = vector.extract_strided_slice %347 {offsets = [0, 0, 0], sizes = [2, 1, 32], strides = [1, 1, 1]} : vector<2x8x32xf32> to vector<2x1x32xf32>
    %349 = vector.shape_cast %348 : vector<2x1x32xf32> to vector<2x32xf32>
    %c0_156 = arith.constant 0 : index
    %c0_157 = arith.constant 0 : index
    %350 = vector.load %arg17[%c0_156, %c0_157] : memref<1x32xf32, #tpu.memory_space<vmem>>, vector<1x32xf32>
    %c0_158 = arith.constant 0 : index
    %c0_159 = arith.constant 0 : index
    %351 = vector.load %arg18[%c0_158, %c0_159] : memref<1x32xf32, #tpu.memory_space<vmem>>, vector<1x32xf32>
    %cst_160 = arith.constant dense<0.000000e+00> : vector<2xf32>
    %352 = vector.multi_reduction <add>, %349, %cst_160 [1] : vector<2x32xf32> to vector<2xf32>
    %353 = vector.shape_cast %352 : vector<2xf32> to vector<2x1xf32>
    %cst_161 = arith.constant 3.200000e+01 : f32
    %354 = vector.broadcast %cst_161 : f32 to vector<2x1xf32>
    %355 = arith.divf %353, %354 : vector<2x1xf32>
    %356 = vector.broadcast %355 : vector<2x1xf32> to vector<2x32xf32>
    %357 = arith.subf %349, %356 : vector<2x32xf32>
    %358 = arith.mulf %357, %357 : vector<2x32xf32>
    %cst_162 = arith.constant dense<0.000000e+00> : vector<2xf32>
    %359 = vector.multi_reduction <add>, %358, %cst_162 [1] : vector<2x32xf32> to vector<2xf32>
    %360 = vector.shape_cast %359 : vector<2xf32> to vector<2x1xf32>
    %cst_163 = arith.constant 3.200000e+01 : f32
    %361 = vector.broadcast %cst_163 : f32 to vector<2x1xf32>
    %362 = arith.divf %360, %361 : vector<2x1xf32>
    %363 = vector.broadcast %355 : vector<2x1xf32> to vector<2x32xf32>
    %364 = arith.subf %349, %363 : vector<2x32xf32>
    %cst_164 = arith.constant 9.99999997E-7 : f32
    %365 = vector.broadcast %cst_164 : f32 to vector<2x1xf32>
    %366 = arith.addf %362, %365 : vector<2x1xf32>
    %367 = math.rsqrt %366 : vector<2x1xf32>
    %368 = vector.broadcast %367 : vector<2x1xf32> to vector<2x32xf32>
    %369 = arith.mulf %364, %368 : vector<2x32xf32>
    %370 = vector.broadcast %350 : vector<1x32xf32> to vector<2x32xf32>
    %371 = arith.mulf %369, %370 : vector<2x32xf32>
    %372 = vector.broadcast %351 : vector<1x32xf32> to vector<2x32xf32>
    %373 = arith.addf %371, %372 : vector<2x32xf32>
    %374 = arith.truncf %373 : vector<2x32xf32> to vector<2x32xbf16>
    %c0_165 = arith.constant 0 : index
    %c0_166 = arith.constant 0 : index
    %375 = vector.load %arg19[%c0_165, %c0_166] : memref<32x128xbf16, #tpu.memory_space<vmem>>, vector<32x128xbf16>
    %cst_167 = arith.constant dense<0.000000e+00> : vector<2x128xf32>
    %376 = tpu.matmul %374, %375, %cst_167 {dimension_numbers = #tpu.dot_dimension_numbers<[1], [0], [0], [1], [0, 0, 1, 1], [], []>} : vector<2x32xbf16>, vector<32x128xbf16>, vector<2x128xf32> -> vector<2x128xf32>
    %c0_168 = arith.constant 0 : index
    %c0_169 = arith.constant 0 : index
    %377 = vector.load %arg20[%c0_168, %c0_169] : memref<1x128xf32, #tpu.memory_space<vmem>>, vector<1x128xf32>
    %378 = vector.broadcast %377 : vector<1x128xf32> to vector<2x128xf32>
    %379 = arith.addf %376, %378 : vector<2x128xf32>
    %c0_170 = arith.constant 0 : index
    %c0_171 = arith.constant 0 : index
    %380 = vector.load %arg21[%c0_170, %c0_171] : memref<2x128xf32, #tpu.memory_space<vmem>>, vector<2x128xf32>
    tpu.vector_store %arg21[%c0_170, %c0_171], %379 {strides = array<i32>} : memref<2x128xf32, #tpu.memory_space<vmem>>, vector<2x128xf32>,
    return
  }
}

</mosaic_0001>

<llo_original>
// kernel: net_forward.1
$region0: #{net_forward.1}
  #allocation0 [shape = 'u32[]', space=smem, size = 0x4, offset = 0x4, fixed_abs, tag = 'smem constant byte address 0x4 - core index']
  #allocation1 [shape = 'u32[144,128]{1,0:T(1,128)}', space=vmem, size = 0x12000, scoped, tag = 'internal scratch']
  %s0 = inlined_call_operand.vmem [shape: f32[16,192], index: 0, kind: input, shape index: {}]
  %s1 = inlined_call_operand.vmem [shape: bf16[192,32], index: 1, kind: input, shape index: {}]
  %s2 = inlined_call_operand.vmem [shape: f32[16,32], index: 2, kind: input, shape index: {}]
  %s3 = inlined_call_operand.vmem [shape: f32[2,1,32], index: 3, kind: input, shape index: {}]
  %s4 = inlined_call_operand.vmem [shape: f32[2,1,32], index: 4, kind: input, shape index: {}]
  %s5 = inlined_call_operand.vmem [shape: bf16[2,32,96], index: 5, kind: input, shape index: {}]
  %s6 = inlined_call_operand.vmem [shape: f32[2,1,96], index: 6, kind: input, shape index: {}]
  %s7 = inlined_call_operand.vmem [shape: bf16[2,32,4], index: 7, kind: input, shape index: {}]
  %s8 = inlined_call_operand.vmem [shape: bf16[2,4,96], index: 8, kind: input, shape index: {}]
  %s9 = inlined_call_operand.vmem [shape: bf16[2,32,32], index: 9, kind: input, shape index: {}]
  %s10 = inlined_call_operand.vmem [shape: f32[2,1,32], index: 10, kind: input, shape index: {}]
  %s11 = inlined_call_operand.vmem [shape: f32[2,1,32], index: 11, kind: input, shape index: {}]
  %s12 = inlined_call_operand.vmem [shape: f32[2,1,32], index: 12, kind: input, shape index: {}]
  %s13 = inlined_call_operand.vmem [shape: bf16[2,32,64], index: 13, kind: input, shape index: {}]
  %s14 = inlined_call_operand.vmem [shape: f32[2,1,64], index: 14, kind: input, shape index: {}]
  %s15 = inlined_call_operand.vmem [shape: bf16[2,64,32], index: 15, kind: input, shape index: {}]
  %s16 = inlined_call_operand.vmem [shape: f32[2,1,32], index: 16, kind: input, shape index: {}]
  %s17 = inlined_call_operand.vmem [shape: f32[1,32], index: 17, kind: input, shape index: {}]
  %s18 = inlined_call_operand.vmem [shape: f32[1,32], index: 18, kind: input, shape index: {}]
  %s19 = inlined_call_operand.vmem [shape: bf16[32,128], index: 19, kind: input, shape index: {}]
  %s20 = inlined_call_operand.vmem [shape: f32[1,128], index: 20, kind: input, shape index: {}]
  %s21 = inlined_call_operand.hbm [shape: f32[2,128], index: 21, kind: output, shape index: {0}]
  %s22 = inlined_call_operand.vmem [shape: f32[2,8,8], index: 22, kind: output, shape index: {1}]
  %23 = xla_tuple %s21, %s22
  %s24 = sld [smem:[#allocation0]]
  $region102: #{net_forward.1} parent=0
    _
  %s26 = ssub.s32 1, %s24
  %s27 = scalar_select 0, %s26, %s24
  $region1: #{net_forward.1} parent=0
    #allocation2 [shape = 'u8[1024]{0}', space=vmem, size = 0x400, scoped, tag = 'output window, operand 0, single buffered']
    #allocation3 [shape = 's32[1]{0}', space=sflag, size = 0x4, scoped, tag = 'scoped memory for net_forward.1']
    %28 = vsyncpa [#allocation3], 0
    // Predicated region
    $region2: #{net_forward.1} parent=1 // pred_check
      _
    $region3: #{net_forward.1} parent=1 // pred_check_branch
      %30 = sbr.rel (0) target = $region5
    $region4: #{net_forward.1} parent=1 // pred_region
      _
    $region5: #{net_forward.1} parent=1 // pred_fallthru
      _
    // Predicated region
    $region6: #{net_forward.1} parent=1 // pred_check
      _
    $region7: #{net_forward.1} parent=1 // pred_check_branch
      %32 = sbr.rel (0) target = $region9
    $region8: #{net_forward.1} parent=1 // pred_region
      _
    $region9: #{net_forward.1} parent=1 // pred_fallthru
      _
    // Predicated region
    $region10: #{net_forward.1} parent=1 // pred_check
      _
    $region11: #{net_forward.1} parent=1 // pred_check_branch
      %34 = sbr.rel (0) target = $region13
    $region12: #{net_forward.1} parent=1 // pred_region
      _
    $region13: #{net_forward.1} parent=1 // pred_fallthru
      _
    // Predicated region
    $region14: #{net_forward.1} parent=1 // pred_check
      _
    $region15: #{net_forward.1} parent=1 // pred_check_branch
      %36 = sbr.rel (0) target = $region17
    $region16: #{net_forward.1} parent=1 // pred_region
      _
    $region17: #{net_forward.1} parent=1 // pred_fallthru
      _
    // Predicated region
    $region18: #{net_forward.1} parent=1 // pred_check
      _
    $region19: #{net_forward.1} parent=1 // pred_check_branch
      %38 = sbr.rel (0) target = $region21
    $region20: #{net_forward.1} parent=1 // pred_region
      _
    $region21: #{net_forward.1} parent=1 // pred_fallthru
      _
    // Predicated region
    $region22: #{net_forward.1} parent=1 // pred_check
      _
    $region23: #{net_forward.1} parent=1 // pred_check_branch
      %40 = sbr.rel (0) target = $region25
    $region24: #{net_forward.1} parent=1 // pred_region
      _
    $region25: #{net_forward.1} parent=1 // pred_fallthru
      _
    // Predicated region
    $region26: #{net_forward.1} parent=1 // pred_check
      _
    $region27: #{net_forward.1} parent=1 // pred_check_branch
      %42 = sbr.rel (0) target = $region29
    $region28: #{net_forward.1} parent=1 // pred_region
      _
    $region29: #{net_forward.1} parent=1 // pred_fallthru
      _
    // Predicated region
    $region30: #{net_forward.1} parent=1 // pred_check
      _
    $region31: #{net_forward.1} parent=1 // pred_check_branch
      %44 = sbr.rel (0) target = $region33
    $region32: #{net_forward.1} parent=1 // pred_region
      _
    $region33: #{net_forward.1} parent=1 // pred_fallthru
      _
    // Predicated region
    $region34: #{net_forward.1} parent=1 // pred_check
      _
    $region35: #{net_forward.1} parent=1 // pred_check_branch
      %46 = sbr.rel (0) target = $region37
    $region36: #{net_forward.1} parent=1 // pred_region
      _
    $region37: #{net_forward.1} parent=1 // pred_fallthru
      _
    // Predicated region
    $region38: #{net_forward.1} parent=1 // pred_check
      _
    $region39: #{net_forward.1} parent=1 // pred_check_branch
      %48 = sbr.rel (0) target = $region41
    $region40: #{net_forward.1} parent=1 // pred_region
      _
    $region41: #{net_forward.1} parent=1 // pred_fallthru
      _
    // Predicated region
    $region42: #{net_forward.1} parent=1 // pred_check
      _
    $region43: #{net_forward.1} parent=1 // pred_check_branch
      %50 = sbr.rel (0) target = $region45
    $region44: #{net_forward.1} parent=1 // pred_region
      _
    $region45: #{net_forward.1} parent=1 // pred_fallthru
      _
    // Predicated region
    $region46: #{net_forward.1} parent=1 // pred_check
      _
    $region47: #{net_forward.1} parent=1 // pred_check_branch
      %52 = sbr.rel (0) target = $region49
    $region48: #{net_forward.1} parent=1 // pred_region
      _
    $region49: #{net_forward.1} parent=1 // pred_fallthru
      _
    // Predicated region
    $region50: #{net_forward.1} parent=1 // pred_check
      _
    $region51: #{net_forward.1} parent=1 // pred_check_branch
      %54 = sbr.rel (0) target = $region53
    $region52: #{net_forward.1} parent=1 // pred_region
      _
    $region53: #{net_forward.1} parent=1 // pred_fallthru
      _
    // Predicated region
    $region54: #{net_forward.1} parent=1 // pred_check
      _
    $region55: #{net_forward.1} parent=1 // pred_check_branch
      %56 = sbr.rel (0) target = $region57
    $region56: #{net_forward.1} parent=1 // pred_region
      _
    $region57: #{net_forward.1} parent=1 // pred_fallthru
      _
    // Predicated region
    $region58: #{net_forward.1} parent=1 // pred_check
      _
    $region59: #{net_forward.1} parent=1 // pred_check_branch
      %58 = sbr.rel (0) target = $region61
    $region60: #{net_forward.1} parent=1 // pred_region
      _
    $region61: #{net_forward.1} parent=1 // pred_fallthru
      _
    // Predicated region
    $region62: #{net_forward.1} parent=1 // pred_check
      _
    $region63: #{net_forward.1} parent=1 // pred_check_branch
      %60 = sbr.rel (0) target = $region65
    $region64: #{net_forward.1} parent=1 // pred_region
      _
    $region65: #{net_forward.1} parent=1 // pred_fallthru
      _
    // Predicated region
    $region66: #{net_forward.1} parent=1 // pred_check
      _
    $region67: #{net_forward.1} parent=1 // pred_check_branch
      %62 = sbr.rel (0) target = $region69
    $region68: #{net_forward.1} parent=1 // pred_region
      _
    $region69: #{net_forward.1} parent=1 // pred_fallthru
      _
    // Predicated region
    $region70: #{net_forward.1} parent=1 // pred_check
      _
    $region71: #{net_forward.1} parent=1 // pred_check_branch
      %64 = sbr.rel (0) target = $region73
    $region72: #{net_forward.1} parent=1 // pred_region
      _
    $region73: #{net_forward.1} parent=1 // pred_fallthru
      _
    // Predicated region
    $region74: #{net_forward.1} parent=1 // pred_check
      _
    $region75: #{net_forward.1} parent=1 // pred_check_branch
      %66 = sbr.rel (0) target = $region77
    $region76: #{net_forward.1} parent=1 // pred_region
      _
    $region77: #{net_forward.1} parent=1 // pred_fallthru
      _
    // Predicated region
    $region78: #{net_forward.1} parent=1 // pred_check
      _
    $region79: #{net_forward.1} parent=1 // pred_check_branch
      %68 = sbr.rel (0) target = $region81
    $region80: #{net_forward.1} parent=1 // pred_region
      _
    $region81: #{net_forward.1} parent=1 // pred_fallthru
      _
    // Predicated region
    $region82: #{net_forward.1} parent=1 // pred_check
      _
    $region83: #{net_forward.1} parent=1 // pred_check_branch
      %70 = sbr.rel (0) target = $region85
    $region84: #{net_forward.1} parent=1 // pred_region
      _
    $region85: #{net_forward.1} parent=1 // pred_fallthru
      _
    %v72 = vlaneseq
    %v73 = vand.u32 %v72, 127
    %vm74 = vcmp.lt.s32.totalorder %v73, 5
    %v75 = vld [vmem:[%s0] sm:$0xff]
    %v76 = vld [vmem:[%s0 + $0x8] sm:$0xff]
    %v77 = vld [vmem:[%s0 + $0x10] sm:$0xff]
    %v78 = vld [vmem:[%s0 + $0x18] sm:$0xff]
    %v79 = vpack.c.bf16 %v77, %v75
    %v80 = vpack.c.bf16 %v78, %v76
    %v81 = vld [vmem:[%s1] sm:$0xf]
    %v82 = vld [vmem:[%s1 + $0x4] sm:$0xf]
    %v83 = vld [vmem:[%s1 + $0x8] sm:$0xf]
    %v84 = vld [vmem:[%s1 + $0xc] sm:$0xf]
    %v85 = vld [vmem:[%s1 + $0x10] sm:$0xf]
    %v86 = vld [vmem:[%s1 + $0x14] sm:$0xf]
    %v87 = vld [vmem:[%s1 + $0x18] sm:$0xf]
    %v88 = vld [vmem:[%s1 + $0x1c] sm:$0xf]
    %v89 = vld [vmem:[%s1 + $0x20] sm:$0xf]
    %v90 = vld [vmem:[%s1 + $0x24] sm:$0xf]
    %v91 = vld [vmem:[%s1 + $0x28] sm:$0xf]
    %v92 = vld [vmem:[%s1 + $0x2c] sm:$0xf]
    %v93 = vld [vmem:[%s1 + $0x30] sm:$0xf]
    %v94 = vld [vmem:[%s1 + $0x34] sm:$0xf]
    %v95 = vld [vmem:[%s1 + $0x38] sm:$0xf]
    %v96 = vld [vmem:[%s1 + $0x3c] sm:$0xf]
    %v97 = vld [vmem:[%s1 + $0x40] sm:$0xf]
    %v98 = vld [vmem:[%s1 + $0x44] sm:$0xf]
    %v99 = vld [vmem:[%s1 + $0x48] sm:$0xf]
    %v100 = vld [vmem:[%s1 + $0x4c] sm:$0xf]
    %v101 = vld [vmem:[%s1 + $0x50] sm:$0xf]
    %v102 = vld [vmem:[%s1 + $0x54] sm:$0xf]
    %v103 = vld [vmem:[%s1 + $0x58] sm:$0xf]
    %v104 = vld [vmem:[%s1 + $0x5c] sm:$0xf]
    %v105 = vld [vmem:[%s2] sm:$0xff]
    %v106 = vld [vmem:[%s2 + $0x8] sm:$0xff]
    %v131 = vunpack.c.l.b16 %v81
    %v132 = vunpack.c.l.b16 %v82
    %v133 = vunpack.c.l.b16 %v83
    %v134 = vunpack.c.l.b16 %v84
    %v135 = vunpack.c.l.b16 %v85
    %v136 = vunpack.c.l.b16 %v86
    %v137 = vunpack.c.l.b16 %v87
    %v138 = vunpack.c.l.b16 %v88
    %v139 = vunpack.c.l.b16 %v89
    %v140 = vunpack.c.l.b16 %v90
    %v141 = vunpack.c.l.b16 %v91
    %v142 = vunpack.c.l.b16 %v92
    %v143 = vunpack.c.l.b16 %v93
    %v144 = vunpack.c.l.b16 %v94
    %v145 = vunpack.c.l.b16 %v95
    %v146 = vunpack.c.l.b16 %v96
    %v147 = vunpack.c.l.b16 %v97
    %v148 = vunpack.c.l.b16 %v98
    %v149 = vunpack.c.l.b16 %v99
    %v150 = vunpack.c.l.b16 %v100
    %v151 = vunpack.c.l.b16 %v101
    %v152 = vunpack.c.l.b16 %v102
    %v153 = vunpack.c.l.b16 %v103
    %v154 = vunpack.c.l.b16 %v104
    %v155 = vpack.c.b16 %v132, %v131
    %v156 = vpack.c.b16 %v134, %v133
    %v157 = vpack.c.b16 %v136, %v135
    %v158 = vpack.c.b16 %v138, %v137
    %v159 = vpack.c.b16 %v140, %v139
    %v160 = vpack.c.b16 %v142, %v141
    %v161 = vpack.c.b16 %v144, %v143
    %v162 = vpack.c.b16 %v146, %v145
    %v163 = vpack.c.b16 %v148, %v147
    %v164 = vpack.c.b16 %v150, %v149
    %v165 = vpack.c.b16 %v152, %v151
    %v166 = vpack.c.b16 %v154, %v153
    %vm179 = vcmask 523264
    %v181 = vsel %vm179, %v80, 0
    %183 = vmatprep.subr.bf16.mxu0 0
    %184 = vmatpush1.bf16.msra.mxu0 %v155
    %185 = vmatprep.subr.bf16.mxu0 0
    %186 = vmatpush1.bf16.msra.mxu0 %v156
    %187 = vmatprep.subr.bf16.mxu0 0
    %188 = vmatpush1.bf16.msra.mxu0 %v157
    %189 = vmatprep.subr.bf16.mxu0 0
    %190 = vmatpush1.bf16.msra.mxu0 %v158
    %191 = vmatprep.subr.bf16.mxu0 0
    %192 = vmatpush1.bf16.msra.mxu0 %v159
    %193 = vmatprep.subr.bf16.mxu0 0
    %194 = vmatpush1.bf16.msra.mxu0 %v160
    %195 = vmatprep.subr.bf16.mxu0 0
    %196 = vmatpush1.bf16.msra.mxu0 %v161
    %197 = vmatprep.subr.bf16.mxu0 0
    %198 = vmatpush1.bf16.msra.mxu0 %v162
    %199 = vmatprep.subr.bf16.mxu0 0
    %200 = vmatpush1.bf16.msra.mxu0 %v163
    %201 = vmatprep.subr.bf16.mxu0 0
    %202 = vmatpush1.bf16.msra.mxu0 %v164
    %203 = vmatprep.subr.bf16.mxu0 0
    %204 = vmatpush1.bf16.msra.mxu0 %v165
    %205 = vmatprep.subr.bf16.mxu0 0
    %206 = vmatpush1.bf16.msra.mxu0 %v166
    %207 = vmatprep.subr.bf16.mxu0 0
    %208 = vmatpush1.bf16.msra.mxu0 0
    %209 = vmatprep.subr.bf16.mxu0 0
    %210 = vmatpush1.bf16.msra.mxu0 0
    %211 = vmatprep.subr.bf16.mxu0 0
    %212 = vmatpush1.bf16.msra.mxu0 0
    %213 = vmatprep.subr.bf16.mxu0 0
    %214 = vmatpush1.bf16.msra.mxu0 0
    %215 = vmatprep.mubr.bf16.mxu0 %v181
    %216 = vmatmul.mubr.bf16.gmra.mrb[0].mxu0 %v79
    %v217 = vpop.f32.mrb[0].mxu0
    %v218 = vadd.f32 %v105, %v217
    %v219 = vpop.f32.mrb[0].mxu0
    %v220 = vpop.f32.mrb[0].mxu0
    %v221 = vadd.f32 %v106, %v220
    %v222 = vpop.f32.mrb[0].mxu0
    %223 = vdwg.mxu0
    %v224 = vld [vmem:[%s3] sm:$0x1]
    %v225 = vld [vmem:[%s4] sm:$0x1]
    %vm226 = vcmask 261120
    %v227 = vsel %vm226, %v218, 0.0
    %228 = vadd.xlane.f32.xlu0 %v227
    %v229 = vpop.xlane.xlu0 %228
    %v230 = vsel %vm226, %v221, 0.0
    %231 = vadd.xlane.f32.xlu0 %v230
    %v232 = vpop.xlane.xlu0 %231
    %v233 = vrcp.pop 32.0
    %v234 = vmul.f32 %v229, %v233
    %v235 = vmul.f32 %v232, %v233
    %v236 = vsub.f32 %v218, %v234
    %v237 = vsub.f32 %v221, %v235
    %v238 = vmul.f32 %v236, %v236
    %v239 = vmul.f32 %v237, %v237
    %v240 = vsel %vm226, %v238, 0.0
    %241 = vadd.xlane.f32.xlu0 %v240
    %v242 = vpop.xlane.xlu0 %241
    %v243 = vsel %vm226, %v239, 0.0
    %244 = vadd.xlane.f32.xlu0 %v243
    %v245 = vpop.xlane.xlu0 %244
    %v246 = vmul.f32 %v242, %v233
    %v247 = vmul.f32 %v245, %v233
    %v248 = vadd.f32 %v246, 1e-06
    %v249 = vadd.f32 %v247, 1e-06
    %v250 = vrsqrt.pop %v248
    %v251 = vrsqrt.pop %v249
    %v252 = vmul.f32 %v236, %v250
    %v253 = vmul.f32 %v237, %v251
    %v255 = vlaneseq
    %v256 = vshrl.u32 %v255, 7
    %v257 = vsub.s32 0, %v256
    %v258 = vrot.slane %v224, %v257
    %v260 = vmul.f32 %v252, %v258
    %v261 = vmul.f32 %v253, %v258
    %v263 = vlaneseq
    %v264 = vshrl.u32 %v263, 7
    %v265 = vsub.s32 0, %v264
    %v266 = vrot.slane %v225, %v265
    %v268 = vadd.f32 %v260, %v266
    %v269 = vadd.f32 %v261, %v266
    %v270 = vpack.c.bf16 %v269, %v268
    %v271 = vld [vmem:[%s7] sm:$0xf]
    %v272 = vld [vmem:[%s7 + $0x4] sm:$0xf]
    %v273 = vld [vmem:[%s7 + $0x8] sm:$0xf]
    %v274 = vld [vmem:[%s7 + $0xc] sm:$0xf]
    %v279 = vunpack.c.l.b16 %v271
    %v280 = vunpack.c.l.b16 %v272
    %v281 = vunpack.c.l.b16 %v273
    %v282 = vunpack.c.l.b16 %v274
    %v283 = vpack.c.b16 %v280, %v279
    %v284 = vpack.c.b16 %v282, %v281
    %v288 = vsel %vm226, %v270, 0
    %290 = vmatprep.subr.bf16.mxu0 0
    %291 = vmatpush1.bf16.msra.mxu0 %v283
    %292 = vmatprep.subr.bf16.mxu0 0
    %293 = vmatpush1.bf16.msra.mxu0 %v284
    %294 = vmatprep.subr.bf16.mxu0 0
    %295 = vmatpush1.bf16.msra.mxu0 0
    %296 = vmatprep.subr.bf16.mxu0 0
    %297 = vmatpush1.bf16.msra.mxu0 0
    %298 = vmatprep.subr.bf16.mxu0 0
    %299 = vmatpush1.bf16.msra.mxu0 0
    %300 = vmatprep.subr.bf16.mxu0 0
    %301 = vmatpush1.bf16.msra.mxu0 0
    %302 = vmatprep.subr.bf16.mxu0 0
    %303 = vmatpush1.bf16.msra.mxu0 0
    %304 = vmatprep.subr.bf16.mxu0 0
    %305 = vmatpush1.bf16.msra.mxu0 0
    %306 = vmatprep.subr.bf16.mxu0 0
    %307 = vmatpush1.bf16.msra.mxu0 0
    %308 = vmatprep.subr.bf16.mxu0 0
    %309 = vmatpush1.bf16.msra.mxu0 0
    %310 = vmatprep.subr.bf16.mxu0 0
    %311 = vmatpush1.bf16.msra.mxu0 0
    %312 = vmatprep.subr.bf16.mxu0 0
    %313 = vmatpush1.bf16.msra.mxu0 0
    %314 = vmatprep.subr.bf16.mxu0 0
    %315 = vmatpush1.bf16.msra.mxu0 0
    %316 = vmatprep.subr.bf16.mxu0 0
    %317 = vmatpush1.bf16.msra.mxu0 0
    %318 = vmatprep.subr.bf16.mxu0 0
    %319 = vmatpush1.bf16.msra.mxu0 0
    %320 = vmatprep.subr.bf16.mxu0 0
    %321 = vmatpush1.bf16.msra.mxu0 0
    %322 = vmatprep.mubr.bf16.mxu0 0
    %323 = vmatmul.mubr.bf16.gmra.mrb[0].mxu0 %v288
    %v324 = vpop.f32.mrb[0].mxu0
    %v325 = vadd.f32 0.0, %v324
    %v326 = vpop.f32.mrb[0].mxu0
    %v327 = vpop.f32.mrb[0].mxu0
    %v328 = vadd.f32 0.0, %v327
    %v329 = vpop.f32.mrb[0].mxu0
    %330 = vdwg.mxu0
    %v331 = vld [vmem:[%s5] sm:$0xf]
    %v332 = vld [vmem:[%s5 + $0x4] sm:$0xf]
    %v333 = vld [vmem:[%s5 + $0x8] sm:$0xf]
    %v334 = vld [vmem:[%s5 + $0xc] sm:$0xf]
    %v335 = vld [vmem:[%s6] sm:$0x1]
    %v337 = vlaneseq
    %v338 = vshrl.u32 %v337, 7
    %v339 = vsub.s32 0, %v338
    %v340 = vrot.slane %v335, %v339
    %v346 = vunpack.c.l.b16 %v331
    %v347 = vunpack.c.l.b16 %v332
    %v348 = vunpack.c.l.b16 %v333
    %v349 = vunpack.c.l.b16 %v334
    %v350 = vpack.c.b16 %v347, %v346
    %v351 = vpack.c.b16 %v349, %v348
    %354 = vmatprep.subr.bf16.mxu0 0
    %355 = vmatpush1.bf16.msra.mxu0 %v350
    %356 = vmatprep.subr.bf16.mxu0 0
    %357 = vmatpush1.bf16.msra.mxu0 %v351
    %358 = vmatprep.subr.bf16.mxu0 0
    %359 = vmatpush1.bf16.msra.mxu0 0
    %360 = vmatprep.subr.bf16.mxu0 0
    %361 = vmatpush1.bf16.msra.mxu0 0
    %362 = vmatprep.subr.bf16.mxu0 0
    %363 = vmatpush1.bf16.msra.mxu0 0
    %364 = vmatprep.subr.bf16.mxu0 0
    %365 = vmatpush1.bf16.msra.mxu0 0
    %366 = vmatprep.subr.bf16.mxu0 0
    %367 = vmatpush1.bf16.msra.mxu0 0
    %368 = vmatprep.subr.bf16.mxu0 0
    %369 = vmatpush1.bf16.msra.mxu0 0
    %370 = vmatprep.subr.bf16.mxu0 0
    %371 = vmatpush1.bf16.msra.mxu0 0
    %372 = vmatprep.subr.bf16.mxu0 0
    %373 = vmatpush1.bf16.msra.mxu0 0
    %374 = vmatprep.subr.bf16.mxu0 0
    %375 = vmatpush1.bf16.msra.mxu0 0
    %376 = vmatprep.subr.bf16.mxu0 0
    %377 = vmatpush1.bf16.msra.mxu0 0
    %378 = vmatprep.subr.bf16.mxu0 0
    %379 = vmatpush1.bf16.msra.mxu0 0
    %380 = vmatprep.subr.bf16.mxu0 0
    %381 = vmatpush1.bf16.msra.mxu0 0
    %382 = vmatprep.subr.bf16.mxu0 0
    %383 = vmatpush1.bf16.msra.mxu0 0
    %384 = vmatprep.subr.bf16.mxu0 0
    %385 = vmatpush1.bf16.msra.mxu0 0
    %386 = vmatprep.mubr.bf16.mxu0 0
    %387 = vmatmul.mubr.bf16.gmra.mrb[0].mxu0 %v288
    %v388 = vpop.f32.mrb[0].mxu0
    %v389 = vadd.f32 %v340, %v388
    %v390 = vpop.f32.mrb[0].mxu0
    %v391 = vpop.f32.mrb[0].mxu0
    %v392 = vadd.f32 %v340, %v391
    %v393 = vpop.f32.mrb[0].mxu0
    %394 = vdwg.mxu0
    %v395 = vpack.c.bf16 %v328, %v325
    %v396 = vld [vmem:[%s8] sm:$0x3]
    %vm397 = vcmask 31744
    %v399 = vsel %vm397, %v395, 0
    %vm401 = vcmask 1041408
    %v403 = vsel %vm401, %v396, 0
    %405 = vmatprep.subr.bf16.mxu0 0
    %406 = vmatpush1.bf16.msra.mxu0 %v403
    %407 = vmatprep.subr.bf16.mxu0 0
    %408 = vmatpush1.bf16.msra.mxu0 0
    %409 = vmatprep.subr.bf16.mxu0 0
    %410 = vmatpush1.bf16.msra.mxu0 0
    %411 = vmatprep.subr.bf16.mxu0 0
    %412 = vmatpush1.bf16.msra.mxu0 0
    %413 = vmatprep.subr.bf16.mxu0 0
    %414 = vmatpush1.bf16.msra.mxu0 0
    %415 = vmatprep.subr.bf16.mxu0 0
    %416 = vmatpush1.bf16.msra.mxu0 0
    %417 = vmatprep.subr.bf16.mxu0 0
    %418 = vmatpush1.bf16.msra.mxu0 0
    %419 = vmatprep.subr.bf16.mxu0 0
    %420 = vmatpush1.bf16.msra.mxu0 0
    %421 = vmatprep.subr.bf16.mxu0 0
    %422 = vmatpush1.bf16.msra.mxu0 0
    %423 = vmatprep.subr.bf16.mxu0 0
    %424 = vmatpush1.bf16.msra.mxu0 0
    %425 = vmatprep.subr.bf16.mxu0 0
    %426 = vmatpush1.bf16.msra.mxu0 0
    %427 = vmatprep.subr.bf16.mxu0 0
    %428 = vmatpush1.bf16.msra.mxu0 0
    %429 = vmatprep.subr.bf16.mxu0 0
    %430 = vmatpush1.bf16.msra.mxu0 0
    %431 = vmatprep.subr.bf16.mxu0 0
    %432 = vmatpush1.bf16.msra.mxu0 0
    %433 = vmatprep.subr.bf16.mxu0 0
    %434 = vmatpush1.bf16.msra.mxu0 0
    %435 = vmatprep.subr.bf16.mxu0 0
    %436 = vmatpush1.bf16.msra.mxu0 0
    %437 = vmatprep.mubr.bf16.mxu0 0
    %438 = vmatmul.mubr.bf16.gmra.mrb[0].mxu0 %v399
    %v439 = vpop.f32.mrb[0].mxu0
    %v440 = vadd.f32 0.0, %v439
    %v441 = vpop.f32.mrb[0].mxu0
    %v442 = vpop.f32.mrb[0].mxu0
    %v443 = vadd.f32 0.0, %v442
    %v444 = vpop.f32.mrb[0].mxu0
    %445 = vdwg.mxu0
    %v446 = vadd.f32 %v389, %v440
    %v447 = vadd.f32 %v392, %v443
    %v448 = vpack.c.bf16 %v447, %v446
    %v450 = vunpack.c.l.b16 %v448
    %v451 = vunpack.c.h.b16 %v448
    %v452 = vpack.c.b16 %v450, %v450
    %v453 = vpack.c.b16 %v451, %v451
    %454 = vrot.lane.b32.xlu0 %v452, 96
    %v455 = vpop.permute.xlu0 %454
    %vm456 = vcmask 64512
    %v458 = vsel %vm456, %v452, 0
    %v461 = vsel %vm456, %v455, 0
    %463 = vmatprep.subr.bf16.mxu0 0
    %464 = vmatpush1.bf16.xpose.msra.mxu0 %v461
    %465 = vmatprep.subr.bf16.mxu0 0
    %466 = vmatpush1.bf16.xpose.msra.mxu0 0
    %467 = vmatprep.subr.bf16.mxu0 0
    %468 = vmatpush1.bf16.xpose.msra.mxu0 0
    %469 = vmatprep.subr.bf16.mxu0 0
    %470 = vmatpush1.bf16.xpose.msra.mxu0 0
    %471 = vmatprep.subr.bf16.mxu0 0
    %472 = vmatpush1.bf16.xpose.msra.mxu0 0
    %473 = vmatprep.subr.bf16.mxu0 0
    %474 = vmatpush1.bf16.xpose.msra.mxu0 0
    %475 = vmatprep.subr.bf16.mxu0 0
    %476 = vmatpush1.bf16.xpose.msra.mxu0 0
    %477 = vmatprep.subr.bf16.mxu0 0
    %478 = vmatpush1.bf16.xpose.msra.mxu0 0
    %479 = vmatprep.subr.bf16.mxu0 0
    %480 = vmatpush1.bf16.xpose.msra.mxu0 0
    %481 = vmatprep.subr.bf16.mxu0 0
    %482 = vmatpush1.bf16.xpose.msra.mxu0 0
    %483 = vmatprep.subr.bf16.mxu0 0
    %484 = vmatpush1.bf16.xpose.msra.mxu0 0
    %485 = vmatprep.subr.bf16.mxu0 0
    %486 = vmatpush1.bf16.xpose.msra.mxu0 0
    %487 = vmatprep.subr.bf16.mxu0 0
    %488 = vmatpush1.bf16.xpose.msra.mxu0 0
    %489 = vmatprep.subr.bf16.mxu0 0
    %490 = vmatpush1.bf16.xpose.msra.mxu0 0
    %491 = vmatprep.subr.bf16.mxu0 0
    %492 = vmatpush1.bf16.xpose.msra.mxu0 0
    %493 = vmatprep.subr.bf16.mxu0 0
    %494 = vmatpush1.bf16.xpose.msra.mxu0 0
    %495 = vmatprep.mubr.bf16.mxu0 0
    %496 = vmatmul.mubr.bf16.gmra.mrb[0].mxu0 %v458
    %v497 = vpop.f32.mrb[0].mxu0
    %v498 = vadd.f32 0.0, %v497
    %v499 = vpop.f32.mrb[0].mxu0
    %v500 = vpop.f32.mrb[0].mxu0
    %v501 = vpop.f32.mrb[0].mxu0
    %502 = vdwg.mxu0
    %503 = vrot.lane.b32.xlu0 %v453, 96
    %v504 = vpop.permute.xlu0 %503
    %v506 = vsel %vm456, %v453, 0
    %v509 = vsel %vm456, %v504, 0
    %511 = vmatprep.subr.bf16.mxu0 0
    %512 = vmatpush1.bf16.xpose.msra.mxu0 %v509
    %513 = vmatprep.subr.bf16.mxu0 0
    %514 = vmatpush1.bf16.xpose.msra.mxu0 0
    %515 = vmatprep.subr.bf16.mxu0 0
    %516 = vmatpush1.bf16.xpose.msra.mxu0 0
    %517 = vmatprep.subr.bf16.mxu0 0
    %518 = vmatpush1.bf16.xpose.msra.mxu0 0
    %519 = vmatprep.subr.bf16.mxu0 0
    %520 = vmatpush1.bf16.xpose.msra.mxu0 0
    %521 = vmatprep.subr.bf16.mxu0 0
    %522 = vmatpush1.bf16.xpose.msra.mxu0 0
    %523 = vmatprep.subr.bf16.mxu0 0
    %524 = vmatpush1.bf16.xpose.msra.mxu0 0
    %525 = vmatprep.subr.bf16.mxu0 0
    %526 = vmatpush1.bf16.xpose.msra.mxu0 0
    %527 = vmatprep.subr.bf16.mxu0 0
    %528 = vmatpush1.bf16.xpose.msra.mxu0 0
    %529 = vmatprep.subr.bf16.mxu0 0
    %530 = vmatpush1.bf16.xpose.msra.mxu0 0
    %531 = vmatprep.subr.bf16.mxu0 0
    %532 = vmatpush1.bf16.xpose.msra.mxu0 0
    %533 = vmatprep.subr.bf16.mxu0 0
    %534 = vmatpush1.bf16.xpose.msra.mxu0 0
    %535 = vmatprep.subr.bf16.mxu0 0
    %536 = vmatpush1.bf16.xpose.msra.mxu0 0
    %537 = vmatprep.subr.bf16.mxu0 0
    %538 = vmatpush1.bf16.xpose.msra.mxu0 0
    %539 = vmatprep.subr.bf16.mxu0 0
    %540 = vmatpush1.bf16.xpose.msra.mxu0 0
    %541 = vmatprep.subr.bf16.mxu0 0
    %542 = vmatpush1.bf16.xpose.msra.mxu0 0
    %543 = vmatprep.mubr.bf16.mxu0 0
    %544 = vmatmul.mubr.bf16.gmra.mrb[0].mxu0 %v506
    %v545 = vpop.f32.mrb[0].mxu0
    %v546 = vadd.f32 0.0, %v545
    %v547 = vpop.f32.mrb[0].mxu0
    %v548 = vpop.f32.mrb[0].mxu0
    %v549 = vpop.f32.mrb[0].mxu0
    %550 = vdwg.mxu0
    %551 = vrot.lane.b32.xlu0 %v452, 120
    %v552 = vpop.permute.xlu0 %551
    %553 = vrot.lane.b32.xlu0 %v452, 88
    %v554 = vpop.permute.xlu0 %553
    %v556 = vsel %vm456, %v552, 0
    %v559 = vsel %vm456, %v554, 0
    %561 = vmatprep.subr.bf16.mxu0 0
    %562 = vmatpush1.bf16.xpose.msra.mxu0 %v559
    %563 = vmatprep.subr.bf16.mxu0 0
    %564 = vmatpush1.bf16.xpose.msra.mxu0 0
    %565 = vmatprep.subr.bf16.mxu0 0
    %566 = vmatpush1.bf16.xpose.msra.mxu0 0
    %567 = vmatprep.subr.bf16.mxu0 0
    %568 = vmatpush1.bf16.xpose.msra.mxu0 0
    %569 = vmatprep.subr.bf16.mxu0 0
    %570 = vmatpush1.bf16.xpose.msra.mxu0 0
    %571 = vmatprep.subr.bf16.mxu0 0
    %572 = vmatpush1.bf16.xpose.msra.mxu0 0
    %573 = vmatprep.subr.bf16.mxu0 0
    %574 = vmatpush1.bf16.xpose.msra.mxu0 0
    %575 = vmatprep.subr.bf16.mxu0 0
    %576 = vmatpush1.bf16.xpose.msra.mxu0 0
    %577 = vmatprep.subr.bf16.mxu0 0
    %578 = vmatpush1.bf16.xpose.msra.mxu0 0
    %579 = vmatprep.subr.bf16.mxu0 0
    %580 = vmatpush1.bf16.xpose.msra.mxu0 0
    %581 = vmatprep.subr.bf16.mxu0 0
    %582 = vmatpush1.bf16.xpose.msra.mxu0 0
    %583 = vmatprep.subr.bf16.mxu0 0
    %584 = vmatpush1.bf16.xpose.msra.mxu0 0
    %585 = vmatprep.subr.bf16.mxu0 0
    %586 = vmatpush1.bf16.xpose.msra.mxu0 0
    %587 = vmatprep.subr.bf16.mxu0 0
    %588 = vmatpush1.bf16.xpose.msra.mxu0 0
    %589 = vmatprep.subr.bf16.mxu0 0
    %590 = vmatpush1.bf16.xpose.msra.mxu0 0
    %591 = vmatprep.subr.bf16.mxu0 0
    %592 = vmatpush1.bf16.xpose.msra.mxu0 0
    %593 = vmatprep.mubr.bf16.mxu0 0
    %594 = vmatmul.mubr.bf16.gmra.mrb[0].mxu0 %v556
    %v595 = vpop.f32.mrb[0].mxu0
    %v596 = vadd.f32 0.0, %v595
    %v597 = vpop.f32.mrb[0].mxu0
    %v598 = vpop.f32.mrb[0].mxu0
    %v599 = vpop.f32.mrb[0].mxu0
    %600 = vdwg.mxu0
    %601 = vrot.lane.b32.xlu0 %v453, 120
    %v602 = vpop.permute.xlu0 %601
    %603 = vrot.lane.b32.xlu0 %v453, 88
    %v604 = vpop.permute.xlu0 %603
    %v606 = vsel %vm456, %v602, 0
    %v609 = vsel %vm456, %v604, 0
    %611 = vmatprep.subr.bf16.mxu0 0
    %612 = vmatpush1.bf16.xpose.msra.mxu0 %v609
    %613 = vmatprep.subr.bf16.mxu0 0
    %614 = vmatpush1.bf16.xpose.msra.mxu0 0
    %615 = vmatprep.subr.bf16.mxu0 0
    %616 = vmatpush1.bf16.xpose.msra.mxu0 0
    %617 = vmatprep.subr.bf16.mxu0 0
    %618 = vmatpush1.bf16.xpose.msra.mxu0 0
    %619 = vmatprep.subr.bf16.mxu0 0
    %620 = vmatpush1.bf16.xpose.msra.mxu0 0
    %621 = vmatprep.subr.bf16.mxu0 0
    %622 = vmatpush1.bf16.xpose.msra.mxu0 0
    %623 = vmatprep.subr.bf16.mxu0 0
    %624 = vmatpush1.bf16.xpose.msra.mxu0 0
    %625 = vmatprep.subr.bf16.mxu0 0
    %626 = vmatpush1.bf16.xpose.msra.mxu0 0
    %627 = vmatprep.subr.bf16.mxu0 0
    %628 = vmatpush1.bf16.xpose.msra.mxu0 0
    %629 = vmatprep.subr.bf16.mxu0 0
    %630 = vmatpush1.bf16.xpose.msra.mxu0 0
    %631 = vmatprep.subr.bf16.mxu0 0
    %632 = vmatpush1.bf16.xpose.msra.mxu0 0
    %633 = vmatprep.subr.bf16.mxu0 0
    %634 = vmatpush1.bf16.xpose.msra.mxu0 0
    %635 = vmatprep.subr.bf16.mxu0 0
    %636 = vmatpush1.bf16.xpose.msra.mxu0 0
    %637 = vmatprep.subr.bf16.mxu0 0
    %638 = vmatpush1.bf16.xpose.msra.mxu0 0
    %639 = vmatprep.subr.bf16.mxu0 0
    %640 = vmatpush1.bf16.xpose.msra.mxu0 0
    %641 = vmatprep.subr.bf16.mxu0 0
    %642 = vmatpush1.bf16.xpose.msra.mxu0 0
    %643 = vmatprep.mubr.bf16.mxu0 0
    %644 = vmatmul.mubr.bf16.gmra.mrb[0].mxu0 %v606
    %v645 = vpop.f32.mrb[0].mxu0
    %v646 = vadd.f32 0.0, %v645
    %v647 = vpop.f32.mrb[0].mxu0
    %v648 = vpop.f32.mrb[0].mxu0
    %v649 = vpop.f32.mrb[0].mxu0
    %650 = vdwg.mxu0
    %651 = vrot.lane.b32.xlu0 %v452, 112
    %v652 = vpop.permute.xlu0 %651
    %653 = vrot.lane.b32.xlu0 %v452, 80
    %v654 = vpop.permute.xlu0 %653
    %v656 = vsel %vm456, %v652, 0
    %v659 = vsel %vm456, %v654, 0
    %661 = vmatprep.subr.bf16.mxu0 0
    %662 = vmatpush1.bf16.xpose.msra.mxu0 %v659
    %663 = vmatprep.subr.bf16.mxu0 0
    %664 = vmatpush1.bf16.xpose.msra.mxu0 0
    %665 = vmatprep.subr.bf16.mxu0 0
    %666 = vmatpush1.bf16.xpose.msra.mxu0 0
    %667 = vmatprep.subr.bf16.mxu0 0
    %668 = vmatpush1.bf16.xpose.msra.mxu0 0
    %669 = vmatprep.subr.bf16.mxu0 0
    %670 = vmatpush1.bf16.xpose.msra.mxu0 0
    %671 = vmatprep.subr.bf16.mxu0 0
    %672 = vmatpush1.bf16.xpose.msra.mxu0 0
    %673 = vmatprep.subr.bf16.mxu0 0
    %674 = vmatpush1.bf16.xpose.msra.mxu0 0
    %675 = vmatprep.subr.bf16.mxu0 0
    %676 = vmatpush1.bf16.xpose.msra.mxu0 0
    %677 = vmatprep.subr.bf16.mxu0 0
    %678 = vmatpush1.bf16.xpose.msra.mxu0 0
    %679 = vmatprep.subr.bf16.mxu0 0
    %680 = vmatpush1.bf16.xpose.msra.mxu0 0
    %681 = vmatprep.subr.bf16.mxu0 0
    %682 = vmatpush1.bf16.xpose.msra.mxu0 0
    %683 = vmatprep.subr.bf16.mxu0 0
    %684 = vmatpush1.bf16.xpose.msra.mxu0 0
    %685 = vmatprep.subr.bf16.mxu0 0
    %686 = vmatpush1.bf16.xpose.msra.mxu0 0
    %687 = vmatprep.subr.bf16.mxu0 0
    %688 = vmatpush1.bf16.xpose.msra.mxu0 0
    %689 = vmatprep.subr.bf16.mxu0 0
    %690 = vmatpush1.bf16.xpose.msra.mxu0 0
    %691 = vmatprep.subr.bf16.mxu0 0
    %692 = vmatpush1.bf16.xpose.msra.mxu0 0
    %693 = vmatprep.mubr.bf16.mxu0 0
    %694 = vmatmul.mubr.bf16.gmra.mrb[0].mxu0 %v656
    %v695 = vpop.f32.mrb[0].mxu0
    %v696 = vadd.f32 0.0, %v695
    %v697 = vpop.f32.mrb[0].mxu0
    %v698 = vpop.f32.mrb[0].mxu0
    %v699 = vpop.f32.mrb[0].mxu0
    %700 = vdwg.mxu0
    %701 = vrot.lane.b32.xlu0 %v453, 112
    %v702 = vpop.permute.xlu0 %701
    %703 = vrot.lane.b32.xlu0 %v453, 80
    %v704 = vpop.permute.xlu0 %703
    %v706 = vsel %vm456, %v702, 0
    %v709 = vsel %vm456, %v704, 0
    %711 = vmatprep.subr.bf16.mxu0 0
    %712 = vmatpush1.bf16.xpose.msra.mxu0 %v709
    %713 = vmatprep.subr.bf16.mxu0 0
    %714 = vmatpush1.bf16.xpose.msra.mxu0 0
    %715 = vmatprep.subr.bf16.mxu0 0
    %716 = vmatpush1.bf16.xpose.msra.mxu0 0
    %717 = vmatprep.subr.bf16.mxu0 0
    %718 = vmatpush1.bf16.xpose.msra.mxu0 0
    %719 = vmatprep.subr.bf16.mxu0 0
    %720 = vmatpush1.bf16.xpose.msra.mxu0 0
    %721 = vmatprep.subr.bf16.mxu0 0
    %722 = vmatpush1.bf16.xpose.msra.mxu0 0
    %723 = vmatprep.subr.bf16.mxu0 0
    %724 = vmatpush1.bf16.xpose.msra.mxu0 0
    %725 = vmatprep.subr.bf16.mxu0 0
    %726 = vmatpush1.bf16.xpose.msra.mxu0 0
    %727 = vmatprep.subr.bf16.mxu0 0
    %728 = vmatpush1.bf16.xpose.msra.mxu0 0
    %729 = vmatprep.subr.bf16.mxu0 0
    %730 = vmatpush1.bf16.xpose.msra.mxu0 0
    %731 = vmatprep.subr.bf16.mxu0 0
    %732 = vmatpush1.bf16.xpose.msra.mxu0 0
    %733 = vmatprep.subr.bf16.mxu0 0
    %734 = vmatpush1.bf16.xpose.msra.mxu0 0
    %735 = vmatprep.subr.bf16.mxu0 0
    %736 = vmatpush1.bf16.xpose.msra.mxu0 0
    %737 = vmatprep.subr.bf16.mxu0 0
    %738 = vmatpush1.bf16.xpose.msra.mxu0 0
    %739 = vmatprep.subr.bf16.mxu0 0
    %740 = vmatpush1.bf16.xpose.msra.mxu0 0
    %741 = vmatprep.subr.bf16.mxu0 0
    %742 = vmatpush1.bf16.xpose.msra.mxu0 0
    %743 = vmatprep.mubr.bf16.mxu0 0
    %744 = vmatmul.mubr.bf16.gmra.mrb[0].mxu0 %v706
    %v745 = vpop.f32.mrb[0].mxu0
    %v746 = vadd.f32 0.0, %v745
    %v747 = vpop.f32.mrb[0].mxu0
    %v748 = vpop.f32.mrb[0].mxu0
    %v749 = vpop.f32.mrb[0].mxu0
    %750 = vdwg.mxu0
    %751 = vrot.lane.b32.xlu0 %v452, 104
    %v752 = vpop.permute.xlu0 %751
    %753 = vrot.lane.b32.xlu0 %v452, 72
    %v754 = vpop.permute.xlu0 %753
    %v756 = vsel %vm456, %v752, 0
    %v759 = vsel %vm456, %v754, 0
    %761 = vmatprep.subr.bf16.mxu0 0
    %762 = vmatpush1.bf16.xpose.msra.mxu0 %v759
    %763 = vmatprep.subr.bf16.mxu0 0
    %764 = vmatpush1.bf16.xpose.msra.mxu0 0
    %765 = vmatprep.subr.bf16.mxu0 0
    %766 = vmatpush1.bf16.xpose.msra.mxu0 0
    %767 = vmatprep.subr.bf16.mxu0 0
    %768 = vmatpush1.bf16.xpose.msra.mxu0 0
    %769 = vmatprep.subr.bf16.mxu0 0
    %770 = vmatpush1.bf16.xpose.msra.mxu0 0
    %771 = vmatprep.subr.bf16.mxu0 0
    %772 = vmatpush1.bf16.xpose.msra.mxu0 0
    %773 = vmatprep.subr.bf16.mxu0 0
    %774 = vmatpush1.bf16.xpose.msra.mxu0 0
    %775 = vmatprep.subr.bf16.mxu0 0
    %776 = vmatpush1.bf16.xpose.msra.mxu0 0
    %777 = vmatprep.subr.bf16.mxu0 0
    %778 = vmatpush1.bf16.xpose.msra.mxu0 0
    %779 = vmatprep.subr.bf16.mxu0 0
    %780 = vmatpush1.bf16.xpose.msra.mxu0 0
    %781 = vmatprep.subr.bf16.mxu0 0
    %782 = vmatpush1.bf16.xpose.msra.mxu0 0
    %783 = vmatprep.subr.bf16.mxu0 0
    %784 = vmatpush1.bf16.xpose.msra.mxu0 0
    %785 = vmatprep.subr.bf16.mxu0 0
    %786 = vmatpush1.bf16.xpose.msra.mxu0 0
    %787 = vmatprep.subr.bf16.mxu0 0
    %788 = vmatpush1.bf16.xpose.msra.mxu0 0
    %789 = vmatprep.subr.bf16.mxu0 0
    %790 = vmatpush1.bf16.xpose.msra.mxu0 0
    %791 = vmatprep.subr.bf16.mxu0 0
    %792 = vmatpush1.bf16.xpose.msra.mxu0 0
    %793 = vmatprep.mubr.bf16.mxu0 0
    %794 = vmatmul.mubr.bf16.gmra.mrb[0].mxu0 %v756
    %v795 = vpop.f32.mrb[0].mxu0
    %v796 = vadd.f32 0.0, %v795
    %v797 = vpop.f32.mrb[0].mxu0
    %v798 = vpop.f32.mrb[0].mxu0
    %v799 = vpop.f32.mrb[0].mxu0
    %800 = vdwg.mxu0
    %801 = vrot.lane.b32.xlu0 %v453, 104
    %v802 = vpop.permute.xlu0 %801
    %803 = vrot.lane.b32.xlu0 %v453, 72
    %v804 = vpop.permute.xlu0 %803
    %v806 = vsel %vm456, %v802, 0
    %v809 = vsel %vm456, %v804, 0
    %811 = vmatprep.subr.bf16.mxu0 0
    %812 = vmatpush1.bf16.xpose.msra.mxu0 %v809
    %813 = vmatprep.subr.bf16.mxu0 0
    %814 = vmatpush1.bf16.xpose.msra.mxu0 0
    %815 = vmatprep.subr.bf16.mxu0 0
    %816 = vmatpush1.bf16.xpose.msra.mxu0 0
    %817 = vmatprep.subr.bf16.mxu0 0
    %818 = vmatpush1.bf16.xpose.msra.mxu0 0
    %819 = vmatprep.subr.bf16.mxu0 0
    %820 = vmatpush1.bf16.xpose.msra.mxu0 0
    %821 = vmatprep.subr.bf16.mxu0 0
    %822 = vmatpush1.bf16.xpose.msra.mxu0 0
    %823 = vmatprep.subr.bf16.mxu0 0
    %824 = vmatpush1.bf16.xpose.msra.mxu0 0
    %825 = vmatprep.subr.bf16.mxu0 0
    %826 = vmatpush1.bf16.xpose.msra.mxu0 0
    %827 = vmatprep.subr.bf16.mxu0 0
    %828 = vmatpush1.bf16.xpose.msra.mxu0 0
    %829 = vmatprep.subr.bf16.mxu0 0
    %830 = vmatpush1.bf16.xpose.msra.mxu0 0
    %831 = vmatprep.subr.bf16.mxu0 0
    %832 = vmatpush1.bf16.xpose.msra.mxu0 0
    %833 = vmatprep.subr.bf16.mxu0 0
    %834 = vmatpush1.bf16.xpose.msra.mxu0 0
    %835 = vmatprep.subr.bf16.mxu0 0
    %836 = vmatpush1.bf16.xpose.msra.mxu0 0
    %837 = vmatprep.subr.bf16.mxu0 0
    %838 = vmatpush1.bf16.xpose.msra.mxu0 0
    %839 = vmatprep.subr.bf16.mxu0 0
    %840 = vmatpush1.bf16.xpose.msra.mxu0 0
    %841 = vmatprep.subr.bf16.mxu0 0
    %842 = vmatpush1.bf16.xpose.msra.mxu0 0
    %843 = vmatprep.mubr.bf16.mxu0 0
    %844 = vmatmul.mubr.bf16.gmra.mrb[0].mxu0 %v806
    %v845 = vpop.f32.mrb[0].mxu0
    %v846 = vadd.f32 0.0, %v845
    %v847 = vpop.f32.mrb[0].mxu0
    %v848 = vpop.f32.mrb[0].mxu0
    %v849 = vpop.f32.mrb[0].mxu0
    %850 = vdwg.mxu0
    %v851 = vmul.f32 %v498, 0.35355338
    %v852 = vmul.f32 %v546, 0.35355338
    %v853 = vmul.f32 %v596, 0.35355338
    %v854 = vmul.f32 %v646, 0.35355338
    %v855 = vmul.f32 %v696, 0.35355338
    %v856 = vmul.f32 %v746, 0.35355338
    %v857 = vmul.f32 %v796, 0.35355338
    %v858 = vmul.f32 %v846, 0.35355338
    %v859 = vsel %vm74, %v851, -1e+30
    %v860 = vsel %vm74, %v852, -1e+30
    %v861 = vsel %vm74, %v853, -1e+30
    %v862 = vsel %vm74, %v854, -1e+30
    %v863 = vsel %vm74, %v855, -1e+30
    %v864 = vsel %vm74, %v856, -1e+30
    %v865 = vsel %vm74, %v857, -1e+30
    %v866 = vsel %vm74, %v858, -1e+30
    %v867 = vsel %vm456, %v859, -inf
    %868 = vmax.xlane.f32.xlu0 %v867
    %v869 = vpop.xlane.xlu0 %868
    %v870 = vsel %vm456, %v860, -inf
    %871 = vmax.xlane.f32.xlu0 %v870
    %v872 = vpop.xlane.xlu0 %871
    %v873 = vsel %vm456, %v861, -inf
    %874 = vmax.xlane.f32.xlu0 %v873
    %v875 = vpop.xlane.xlu0 %874
    %v876 = vsel %vm456, %v862, -inf
    %877 = vmax.xlane.f32.xlu0 %v876
    %v878 = vpop.xlane.xlu0 %877
    %v879 = vsel %vm456, %v863, -inf
    %880 = vmax.xlane.f32.xlu0 %v879
    %v881 = vpop.xlane.xlu0 %880
    %v882 = vsel %vm456, %v864, -inf
    %883 = vmax.xlane.f32.xlu0 %v882
    %v884 = vpop.xlane.xlu0 %883
    %v885 = vsel %vm456, %v865, -inf
    %886 = vmax.xlane.f32.xlu0 %v885
    %v887 = vpop.xlane.xlu0 %886
    %v888 = vsel %vm456, %v866, -inf
    %889 = vmax.xlane.f32.xlu0 %v888
    %v890 = vpop.xlane.xlu0 %889
    %v891 = vsub.f32 %v859, %v869
    %v892 = vsub.f32 %v860, %v872
    %v893 = vsub.f32 %v861, %v875
    %v894 = vsub.f32 %v862, %v878
    %v895 = vsub.f32 %v863, %v881
    %v896 = vsub.f32 %v864, %v884
    %v897 = vsub.f32 %v865, %v887
    %v898 = vsub.f32 %v866, %v890
    %v899 = vmul.f32 %v891, 1.442695
    %v900 = vpow.pop %v899
    %v901 = vmul.f32 %v892, 1.442695
    %v902 = vpow.pop %v901
    %v903 = vmul.f32 %v893, 1.442695
    %v904 = vpow.pop %v903
    %v905 = vmul.f32 %v894, 1.442695
    %v906 = vpow.pop %v905
    %v907 = vmul.f32 %v895, 1.442695
    %v908 = vpow.pop %v907
    %v909 = vmul.f32 %v896, 1.442695
    %v910 = vpow.pop %v909
    %v911 = vmul.f32 %v897, 1.442695
    %v912 = vpow.pop %v911
    %v913 = vmul.f32 %v898, 1.442695
    %v914 = vpow.pop %v913
    %v915 = vsel %vm456, %v900, 0.0
    %916 = vadd.xlane.f32.xlu0 %v915
    %v917 = vpop.xlane.xlu0 %916
    %v918 = vsel %vm456, %v902, 0.0
    %919 = vadd.xlane.f32.xlu0 %v918
    %v920 = vpop.xlane.xlu0 %919
    %v921 = vsel %vm456, %v904, 0.0
    %922 = vadd.xlane.f32.xlu0 %v921
    %v923 = vpop.xlane.xlu0 %922
    %v924 = vsel %vm456, %v906, 0.0
    %925 = vadd.xlane.f32.xlu0 %v924
    %v926 = vpop.xlane.xlu0 %925
    %v927 = vsel %vm456, %v908, 0.0
    %928 = vadd.xlane.f32.xlu0 %v927
    %v929 = vpop.xlane.xlu0 %928
    %v930 = vsel %vm456, %v910, 0.0
    %931 = vadd.xlane.f32.xlu0 %v930
    %v932 = vpop.xlane.xlu0 %931
    %v933 = vsel %vm456, %v912, 0.0
    %934 = vadd.xlane.f32.xlu0 %v933
    %v935 = vpop.xlane.xlu0 %934
    %v936 = vsel %vm456, %v914, 0.0
    %937 = vadd.xlane.f32.xlu0 %v936
    %v938 = vpop.xlane.xlu0 %937
    %v939 = vrcp.pop %v917
    %v940 = vmul.f32 %v900, %v939
    %v941 = vrcp.pop %v920
    %v942 = vmul.f32 %v902, %v941
    %v943 = vrcp.pop %v923
    %v944 = vmul.f32 %v904, %v943
    %v945 = vrcp.pop %v926
    %v946 = vmul.f32 %v906, %v945
    %v947 = vrcp.pop %v929
    %v948 = vmul.f32 %v908, %v947
    %v949 = vrcp.pop %v932
    %v950 = vmul.f32 %v910, %v949
    %v951 = vrcp.pop %v935
    %v952 = vmul.f32 %v912, %v951
    %v953 = vrcp.pop %v938
    %v954 = vmul.f32 %v914, %v953
    %v955 = vpack.c.bf16 %v940, %v940
    %v956 = vpack.c.bf16 %v942, %v942
    %v957 = vpack.c.bf16 %v944, %v944
    %v958 = vpack.c.bf16 %v946, %v946
    %v959 = vpack.c.bf16 %v948, %v948
    %v960 = vpack.c.bf16 %v950, %v950
    %v961 = vpack.c.bf16 %v952, %v952
    %v962 = vpack.c.bf16 %v954, %v954
    %963 = vrot.lane.b32.xlu0 %v452, 64
    %v964 = vpop.permute.xlu0 %963
    %v966 = vsel %vm456, %v955, 0
    %vm968 = vcmask 1043456
    %v970 = vsel %vm968, %v964, 0
    %972 = vmatprep.subr.bf16.mxu0 0
    %973 = vmatpush1.bf16.msra.mxu0 %v970
    %974 = vmatprep.subr.bf16.mxu0 0
    %975 = vmatpush1.bf16.msra.mxu0 0
    %976 = vmatprep.subr.bf16.mxu0 0
    %977 = vmatpush1.bf16.msra.mxu0 0
    %978 = vmatprep.subr.bf16.mxu0 0
    %979 = vmatpush1.bf16.msra.mxu0 0
    %980 = vmatprep.subr.bf16.mxu0 0
    %981 = vmatpush1.bf16.msra.mxu0 0
    %982 = vmatprep.subr.bf16.mxu0 0
    %983 = vmatpush1.bf16.msra.mxu0 0
    %984 = vmatprep.subr.bf16.mxu0 0
    %985 = vmatpush1.bf16.msra.mxu0 0
    %986 = vmatprep.subr.bf16.mxu0 0
    %987 = vmatpush1.bf16.msra.mxu0 0
    %988 = vmatprep.subr.bf16.mxu0 0
    %989 = vmatpush1.bf16.msra.mxu0 0
    %990 = vmatprep.subr.bf16.mxu0 0
    %991 = vmatpush1.bf16.msra.mxu0 0
    %992 = vmatprep.subr.bf16.mxu0 0
    %993 = vmatpush1.bf16.msra.mxu0 0
    %994 = vmatprep.subr.bf16.mxu0 0
    %995 = vmatpush1.bf16.msra.mxu0 0
    %996 = vmatprep.subr.bf16.mxu0 0
    %997 = vmatpush1.bf16.msra.mxu0 0
    %998 = vmatprep.subr.bf16.mxu0 0
    %999 = vmatpush1.bf16.msra.mxu0 0
    %1000 = vmatprep.subr.bf16.mxu0 0
    %1001 = vmatpush1.bf16.msra.mxu0 0
    %1002 = vmatprep.subr.bf16.mxu0 0
    %1003 = vmatpush1.bf16.msra.mxu0 0
    %1004 = vmatprep.mubr.bf16.mxu0 0
    %1005 = vmatmul.mubr.bf16.gmra.mrb[0].mxu0 %v966
    %v1006 = vpop.f32.mrb[0].mxu0
    %v1007 = vadd.f32 0.0, %v1006
    %v1008 = vpop.f32.mrb[0].mxu0
    %v1009 = vpop.f32.mrb[0].mxu0
    %v1010 = vpop.f32.mrb[0].mxu0
    %1011 = vdwg.mxu0
    %1012 = vrot.lane.b32.xlu0 %v453, 64
    %v1013 = vpop.permute.xlu0 %1012
    %v1015 = vsel %vm456, %v956, 0
    %v1018 = vsel %vm968, %v1013, 0
    %1020 = vmatprep.subr.bf16.mxu0 0
    %1021 = vmatpush1.bf16.msra.mxu0 %v1018
    %1022 = vmatprep.subr.bf16.mxu0 0
    %1023 = vmatpush1.bf16.msra.mxu0 0
    %1024 = vmatprep.subr.bf16.mxu0 0
    %1025 = vmatpush1.bf16.msra.mxu0 0
    %1026 = vmatprep.subr.bf16.mxu0 0
    %1027 = vmatpush1.bf16.msra.mxu0 0
    %1028 = vmatprep.subr.bf16.mxu0 0
    %1029 = vmatpush1.bf16.msra.mxu0 0
    %1030 = vmatprep.subr.bf16.mxu0 0
    %1031 = vmatpush1.bf16.msra.mxu0 0
    %1032 = vmatprep.subr.bf16.mxu0 0
    %1033 = vmatpush1.bf16.msra.mxu0 0
    %1034 = vmatprep.subr.bf16.mxu0 0
    %1035 = vmatpush1.bf16.msra.mxu0 0
    %1036 = vmatprep.subr.bf16.mxu0 0
    %1037 = vmatpush1.bf16.msra.mxu0 0
    %1038 = vmatprep.subr.bf16.mxu0 0
    %1039 = vmatpush1.bf16.msra.mxu0 0
    %1040 = vmatprep.subr.bf16.mxu0 0
    %1041 = vmatpush1.bf16.msra.mxu0 0
    %1042 = vmatprep.subr.bf16.mxu0 0
    %1043 = vmatpush1.bf16.msra.mxu0 0
    %1044 = vmatprep.subr.bf16.mxu0 0
    %1045 = vmatpush1.bf16.msra.mxu0 0
    %1046 = vmatprep.subr.bf16.mxu0 0
    %1047 = vmatpush1.bf16.msra.mxu0 0
    %1048 = vmatprep.subr.bf16.mxu0 0
    %1049 = vmatpush1.bf16.msra.mxu0 0
    %1050 = vmatprep.subr.bf16.mxu0 0
    %1051 = vmatpush1.bf16.msra.mxu0 0
    %1052 = vmatprep.mubr.bf16.mxu0 0
    %1053 = vmatmul.mubr.bf16.gmra.mrb[0].mxu0 %v1015
    %v1054 = vpop.f32.mrb[0].mxu0
    %v1055 = vadd.f32 0.0, %v1054
    %v1056 = vpop.f32.mrb[0].mxu0
    %v1057 = vpop.f32.mrb[0].mxu0
    %v1058 = vpop.f32.mrb[0].mxu0
    %1059 = vdwg.mxu0
    %1060 = vrot.lane.b32.xlu0 %v452, 56
    %v1061 = vpop.permute.xlu0 %1060
    %v1063 = vsel %vm456, %v957, 0
    %v1066 = vsel %vm968, %v1061, 0
    %1068 = vmatprep.subr.bf16.mxu0 0
    %1069 = vmatpush1.bf16.msra.mxu0 %v1066
    %1070 = vmatprep.subr.bf16.mxu0 0
    %1071 = vmatpush1.bf16.msra.mxu0 0
    %1072 = vmatprep.subr.bf16.mxu0 0
    %1073 = vmatpush1.bf16.msra.mxu0 0
    %1074 = vmatprep.subr.bf16.mxu0 0
    %1075 = vmatpush1.bf16.msra.mxu0 0
    %1076 = vmatprep.subr.bf16.mxu0 0
    %1077 = vmatpush1.bf16.msra.mxu0 0
    %1078 = vmatprep.subr.bf16.mxu0 0
    %1079 = vmatpush1.bf16.msra.mxu0 0
    %1080 = vmatprep.subr.bf16.mxu0 0
    %1081 = vmatpush1.bf16.msra.mxu0 0
    %1082 = vmatprep.subr.bf16.mxu0 0
    %1083 = vmatpush1.bf16.msra.mxu0 0
    %1084 = vmatprep.subr.bf16.mxu0 0
    %1085 = vmatpush1.bf16.msra.mxu0 0
    %1086 = vmatprep.subr.bf16.mxu0 0
    %1087 = vmatpush1.bf16.msra.mxu0 0
    %1088 = vmatprep.subr.bf16.mxu0 0
    %1089 = vmatpush1.bf16.msra.mxu0 0
    %1090 = vmatprep.subr.bf16.mxu0 0
    %1091 = vmatpush1.bf16.msra.mxu0 0
    %1092 = vmatprep.subr.bf16.mxu0 0
    %1093 = vmatpush1.bf16.msra.mxu0 0
    %1094 = vmatprep.subr.bf16.mxu0 0
    %1095 = vmatpush1.bf16.msra.mxu0 0
    %1096 = vmatprep.subr.bf16.mxu0 0
    %1097 = vmatpush1.bf16.msra.mxu0 0
    %1098 = vmatprep.subr.bf16.mxu0 0
    %1099 = vmatpush1.bf16.msra.mxu0 0
    %1100 = vmatprep.mubr.bf16.mxu0 0
    %1101 = vmatmul.mubr.bf16.gmra.mrb[0].mxu0 %v1063
    %v1102 = vpop.f32.mrb[0].mxu0
    %v1103 = vadd.f32 0.0, %v1102
    %v1104 = vpop.f32.mrb[0].mxu0
    %v1105 = vpop.f32.mrb[0].mxu0
    %v1106 = vpop.f32.mrb[0].mxu0
    %1107 = vdwg.mxu0
    %1108 = vrot.lane.b32.xlu0 %v453, 56
    %v1109 = vpop.permute.xlu0 %1108
    %v1111 = vsel %vm456, %v958, 0
    %v1114 = vsel %vm968, %v1109, 0
    %1116 = vmatprep.subr.bf16.mxu0 0
    %1117 = vmatpush1.bf16.msra.mxu0 %v1114
    %1118 = vmatprep.subr.bf16.mxu0 0
    %1119 = vmatpush1.bf16.msra.mxu0 0
    %1120 = vmatprep.subr.bf16.mxu0 0
    %1121 = vmatpush1.bf16.msra.mxu0 0
    %1122 = vmatprep.subr.bf16.mxu0 0
    %1123 = vmatpush1.bf16.msra.mxu0 0
    %1124 = vmatprep.subr.bf16.mxu0 0
    %1125 = vmatpush1.bf16.msra.mxu0 0
    %1126 = vmatprep.subr.bf16.mxu0 0
    %1127 = vmatpush1.bf16.msra.mxu0 0
    %1128 = vmatprep.subr.bf16.mxu0 0
    %1129 = vmatpush1.bf16.msra.mxu0 0
    %1130 = vmatprep.subr.bf16.mxu0 0
    %1131 = vmatpush1.bf16.msra.mxu0 0
    %1132 = vmatprep.subr.bf16.mxu0 0
    %1133 = vmatpush1.bf16.msra.mxu0 0
    %1134 = vmatprep.subr.bf16.mxu0 0
    %1135 = vmatpush1.bf16.msra.mxu0 0
    %1136 = vmatprep.subr.bf16.mxu0 0
    %1137 = vmatpush1.bf16.msra.mxu0 0
    %1138 = vmatprep.subr.bf16.mxu0 0
    %1139 = vmatpush1.bf16.msra.mxu0 0
    %1140 = vmatprep.subr.bf16.mxu0 0
    %1141 = vmatpush1.bf16.msra.mxu0 0
    %1142 = vmatprep.subr.bf16.mxu0 0
    %1143 = vmatpush1.bf16.msra.mxu0 0
    %1144 = vmatprep.subr.bf16.mxu0 0
    %1145 = vmatpush1.bf16.msra.mxu0 0
    %1146 = vmatprep.subr.bf16.mxu0 0
    %1147 = vmatpush1.bf16.msra.mxu0 0
    %1148 = vmatprep.mubr.bf16.mxu0 0
    %1149 = vmatmul.mubr.bf16.gmra.mrb[0].mxu0 %v1111
    %v1150 = vpop.f32.mrb[0].mxu0
    %v1151 = vadd.f32 0.0, %v1150
    %v1152 = vpop.f32.mrb[0].mxu0
    %v1153 = vpop.f32.mrb[0].mxu0
    %v1154 = vpop.f32.mrb[0].mxu0
    %1155 = vdwg.mxu0
    %1156 = vrot.lane.b32.xlu0 %v452, 48
    %v1157 = vpop.permute.xlu0 %1156
    %v1159 = vsel %vm456, %v959, 0
    %v1162 = vsel %vm968, %v1157, 0
    %1164 = vmatprep.subr.bf16.mxu0 0
    %1165 = vmatpush1.bf16.msra.mxu0 %v1162
    %1166 = vmatprep.subr.bf16.mxu0 0
    %1167 = vmatpush1.bf16.msra.mxu0 0
    %1168 = vmatprep.subr.bf16.mxu0 0
    %1169 = vmatpush1.bf16.msra.mxu0 0
    %1170 = vmatprep.subr.bf16.mxu0 0
    %1171 = vmatpush1.bf16.msra.mxu0 0
    %1172 = vmatprep.subr.bf16.mxu0 0
    %1173 = vmatpush1.bf16.msra.mxu0 0
    %1174 = vmatprep.subr.bf16.mxu0 0
    %1175 = vmatpush1.bf16.msra.mxu0 0
    %1176 = vmatprep.subr.bf16.mxu0 0
    %1177 = vmatpush1.bf16.msra.mxu0 0
    %1178 = vmatprep.subr.bf16.mxu0 0
    %1179 = vmatpush1.bf16.msra.mxu0 0
    %1180 = vmatprep.subr.bf16.mxu0 0
    %1181 = vmatpush1.bf16.msra.mxu0 0
    %1182 = vmatprep.subr.bf16.mxu0 0
    %1183 = vmatpush1.bf16.msra.mxu0 0
    %1184 = vmatprep.subr.bf16.mxu0 0
    %1185 = vmatpush1.bf16.msra.mxu0 0
    %1186 = vmatprep.subr.bf16.mxu0 0
    %1187 = vmatpush1.bf16.msra.mxu0 0
    %1188 = vmatprep.subr.bf16.mxu0 0
    %1189 = vmatpush1.bf16.msra.mxu0 0
    %1190 = vmatprep.subr.bf16.mxu0 0
    %1191 = vmatpush1.bf16.msra.mxu0 0
    %1192 = vmatprep.subr.bf16.mxu0 0
    %1193 = vmatpush1.bf16.msra.mxu0 0
    %1194 = vmatprep.subr.bf16.mxu0 0
    %1195 = vmatpush1.bf16.msra.mxu0 0
    %1196 = vmatprep.mubr.bf16.mxu0 0
    %1197 = vmatmul.mubr.bf16.gmra.mrb[0].mxu0 %v1159
    %v1198 = vpop.f32.mrb[0].mxu0
    %v1199 = vadd.f32 0.0, %v1198
    %v1200 = vpop.f32.mrb[0].mxu0
    %v1201 = vpop.f32.mrb[0].mxu0
    %v1202 = vpop.f32.mrb[0].mxu0
    %1203 = vdwg.mxu0
    %1204 = vrot.lane.b32.xlu0 %v453, 48
    %v1205 = vpop.permute.xlu0 %1204
    %v1207 = vsel %vm456, %v960, 0
    %v1210 = vsel %vm968, %v1205, 0
    %1212 = vmatprep.subr.bf16.mxu0 0
    %1213 = vmatpush1.bf16.msra.mxu0 %v1210
    %1214 = vmatprep.subr.bf16.mxu0 0
    %1215 = vmatpush1.bf16.msra.mxu0 0
    %1216 = vmatprep.subr.bf16.mxu0 0
    %1217 = vmatpush1.bf16.msra.mxu0 0
    %1218 = vmatprep.subr.bf16.mxu0 0
    %1219 = vmatpush1.bf16.msra.mxu0 0
    %1220 = vmatprep.subr.bf16.mxu0 0
    %1221 = vmatpush1.bf16.msra.mxu0 0
    %1222 = vmatprep.subr.bf16.mxu0 0
    %1223 = vmatpush1.bf16.msra.mxu0 0
    %1224 = vmatprep.subr.bf16.mxu0 0
    %1225 = vmatpush1.bf16.msra.mxu0 0
    %1226 = vmatprep.subr.bf16.mxu0 0
    %1227 = vmatpush1.bf16.msra.mxu0 0
    %1228 = vmatprep.subr.bf16.mxu0 0
    %1229 = vmatpush1.bf16.msra.mxu0 0
    %1230 = vmatprep.subr.bf16.mxu0 0
    %1231 = vmatpush1.bf16.msra.mxu0 0
    %1232 = vmatprep.subr.bf16.mxu0 0
    %1233 = vmatpush1.bf16.msra.mxu0 0
    %1234 = vmatprep.subr.bf16.mxu0 0
    %1235 = vmatpush1.bf16.msra.mxu0 0
    %1236 = vmatprep.subr.bf16.mxu0 0
    %1237 = vmatpush1.bf16.msra.mxu0 0
    %1238 = vmatprep.subr.bf16.mxu0 0
    %1239 = vmatpush1.bf16.msra.mxu0 0
    %1240 = vmatprep.subr.bf16.mxu0 0
    %1241 = vmatpush1.bf16.msra.mxu0 0
    %1242 = vmatprep.subr.bf16.mxu0 0
    %1243 = vmatpush1.bf16.msra.mxu0 0
    %1244 = vmatprep.mubr.bf16.mxu0 0
    %1245 = vmatmul.mubr.bf16.gmra.mrb[0].mxu0 %v1207
    %v1246 = vpop.f32.mrb[0].mxu0
    %v1247 = vadd.f32 0.0, %v1246
    %v1248 = vpop.f32.mrb[0].mxu0
    %v1249 = vpop.f32.mrb[0].mxu0
    %v1250 = vpop.f32.mrb[0].mxu0
    %1251 = vdwg.mxu0
    %1252 = vrot.lane.b32.xlu0 %v452, 40
    %v1253 = vpop.permute.xlu0 %1252
    %v1255 = vsel %vm456, %v961, 0
    %v1258 = vsel %vm968, %v1253, 0
    %1260 = vmatprep.subr.bf16.mxu0 0
    %1261 = vmatpush1.bf16.msra.mxu0 %v1258
    %1262 = vmatprep.subr.bf16.mxu0 0
    %1263 = vmatpush1.bf16.msra.mxu0 0
    %1264 = vmatprep.subr.bf16.mxu0 0
    %1265 = vmatpush1.bf16.msra.mxu0 0
    %1266 = vmatprep.subr.bf16.mxu0 0
    %1267 = vmatpush1.bf16.msra.mxu0 0
    %1268 = vmatprep.subr.bf16.mxu0 0
    %1269 = vmatpush1.bf16.msra.mxu0 0
    %1270 = vmatprep.subr.bf16.mxu0 0
    %1271 = vmatpush1.bf16.msra.mxu0 0
    %1272 = vmatprep.subr.bf16.mxu0 0
    %1273 = vmatpush1.bf16.msra.mxu0 0
    %1274 = vmatprep.subr.bf16.mxu0 0
    %1275 = vmatpush1.bf16.msra.mxu0 0
    %1276 = vmatprep.subr.bf16.mxu0 0
    %1277 = vmatpush1.bf16.msra.mxu0 0
    %1278 = vmatprep.subr.bf16.mxu0 0
    %1279 = vmatpush1.bf16.msra.mxu0 0
    %1280 = vmatprep.subr.bf16.mxu0 0
    %1281 = vmatpush1.bf16.msra.mxu0 0
    %1282 = vmatprep.subr.bf16.mxu0 0
    %1283 = vmatpush1.bf16.msra.mxu0 0
    %1284 = vmatprep.subr.bf16.mxu0 0
    %1285 = vmatpush1.bf16.msra.mxu0 0
    %1286 = vmatprep.subr.bf16.mxu0 0
    %1287 = vmatpush1.bf16.msra.mxu0 0
    %1288 = vmatprep.subr.bf16.mxu0 0
    %1289 = vmatpush1.bf16.msra.mxu0 0
    %1290 = vmatprep.subr.bf16.mxu0 0
    %1291 = vmatpush1.bf16.msra.mxu0 0
    %1292 = vmatprep.mubr.bf16.mxu0 0
    %1293 = vmatmul.mubr.bf16.gmra.mrb[0].mxu0 %v1255
    %v1294 = vpop.f32.mrb[0].mxu0
    %v1295 = vadd.f32 0.0, %v1294
    %v1296 = vpop.f32.mrb[0].mxu0
    %v1297 = vpop.f32.mrb[0].mxu0
    %v1298 = vpop.f32.mrb[0].mxu0
    %1299 = vdwg.mxu0
    %1300 = vrot.lane.b32.xlu0 %v453, 40
    %v1301 = vpop.permute.xlu0 %1300
    %v1303 = vsel %vm456, %v962, 0
    %v1306 = vsel %vm968, %v1301, 0
    %1308 = vmatprep.subr.bf16.mxu0 0
    %1309 = vmatpush1.bf16.msra.mxu0 %v1306
    %1310 = vmatprep.subr.bf16.mxu0 0
    %1311 = vmatpush1.bf16.msra.mxu0 0
    %1312 = vmatprep.subr.bf16.mxu0 0
    %1313 = vmatpush1.bf16.msra.mxu0 0
    %1314 = vmatprep.subr.bf16.mxu0 0
    %1315 = vmatpush1.bf16.msra.mxu0 0
    %1316 = vmatprep.subr.bf16.mxu0 0
    %1317 = vmatpush1.bf16.msra.mxu0 0
    %1318 = vmatprep.subr.bf16.mxu0 0
    %1319 = vmatpush1.bf16.msra.mxu0 0
    %1320 = vmatprep.subr.bf16.mxu0 0
    %1321 = vmatpush1.bf16.msra.mxu0 0
    %1322 = vmatprep.subr.bf16.mxu0 0
    %1323 = vmatpush1.bf16.msra.mxu0 0
    %1324 = vmatprep.subr.bf16.mxu0 0
    %1325 = vmatpush1.bf16.msra.mxu0 0
    %1326 = vmatprep.subr.bf16.mxu0 0
    %1327 = vmatpush1.bf16.msra.mxu0 0
    %1328 = vmatprep.subr.bf16.mxu0 0
    %1329 = vmatpush1.bf16.msra.mxu0 0
    %1330 = vmatprep.subr.bf16.mxu0 0
    %1331 = vmatpush1.bf16.msra.mxu0 0
    %1332 = vmatprep.subr.bf16.mxu0 0
    %1333 = vmatpush1.bf16.msra.mxu0 0
    %1334 = vmatprep.subr.bf16.mxu0 0
    %1335 = vmatpush1.bf16.msra.mxu0 0
    %1336 = vmatprep.subr.bf16.mxu0 0
    %1337 = vmatpush1.bf16.msra.mxu0 0
    %1338 = vmatprep.subr.bf16.mxu0 0
    %1339 = vmatpush1.bf16.msra.mxu0 0
    %1340 = vmatprep.mubr.bf16.mxu0 0
    %1341 = vmatmul.mubr.bf16.gmra.mrb[0].mxu0 %v1303
    %v1342 = vpop.f32.mrb[0].mxu0
    %v1343 = vadd.f32 0.0, %v1342
    %v1344 = vpop.f32.mrb[0].mxu0
    %v1345 = vpop.f32.mrb[0].mxu0
    %v1346 = vpop.f32.mrb[0].mxu0
    %1347 = vdwg.mxu0
    %1350 = vrot.lane.b32.xlu0 %v1103, 8
    %v1351 = vpop.permute.xlu0 %1350
    %1352 = vrot.lane.b32.xlu0 %v1151, 8
    %v1353 = vpop.permute.xlu0 %1352
    %1358 = vrot.lane.b32.xlu0 %v1199, 16
    %v1359 = vpop.permute.xlu0 %1358
    %1360 = vrot.lane.b32.xlu0 %v1247, 16
    %v1361 = vpop.permute.xlu0 %1360
    %1366 = vrot.lane.b32.xlu0 %v1295, 24
    %v1367 = vpop.permute.xlu0 %1366
    %1368 = vrot.lane.b32.xlu0 %v1343, 24
    %v1369 = vpop.permute.xlu0 %1368
    %v1372 = vsel %vm456, %v1007, %v1351
    %v1373 = vsel %vm456, %v1055, %v1353
    %vm1374 = vcmask 130048
    %v1375 = vsel %vm1374, %v1372, %v1359
    %v1376 = vsel %vm1374, %v1373, %v1361
    %vm1377 = vcmask 195584
    %v1378 = vsel %vm1377, %v1375, %v1367
    %v1379 = vsel %vm1377, %v1376, %v1369
    %v1380 = vpack.c.bf16 %v1379, %v1378
    %v1381 = vld [vmem:[%s9] sm:$0xf]
    %v1382 = vld [vmem:[%s9 + $0x4] sm:$0xf]
    %v1383 = vld [vmem:[%s9 + $0x8] sm:$0xf]
    %v1384 = vld [vmem:[%s9 + $0xc] sm:$0xf]
    %v1385 = vld [vmem:[%s10] sm:$0x1]
    %v1387 = vlaneseq
    %v1388 = vshrl.u32 %v1387, 7
    %v1389 = vsub.s32 0, %v1388
    %v1390 = vrot.slane %v1385, %v1389
    %v1396 = vunpack.c.l.b16 %v1381
    %v1397 = vunpack.c.l.b16 %v1382
    %v1398 = vunpack.c.l.b16 %v1383
    %v1399 = vunpack.c.l.b16 %v1384
    %v1400 = vpack.c.b16 %v1397, %v1396
    %v1401 = vpack.c.b16 %v1399, %v1398
    %v1405 = vsel %vm226, %v1380, 0
    %1407 = vmatprep.subr.bf16.mxu0 0
    %1408 = vmatpush1.bf16.msra.mxu0 %v1400
    %1409 = vmatprep.subr.bf16.mxu0 0
    %1410 = vmatpush1.bf16.msra.mxu0 %v1401
    %1411 = vmatprep.subr.bf16.mxu0 0
    %1412 = vmatpush1.bf16.msra.mxu0 0
    %1413 = vmatprep.subr.bf16.mxu0 0
    %1414 = vmatpush1.bf16.msra.mxu0 0
    %1415 = vmatprep.subr.bf16.mxu0 0
    %1416 = vmatpush1.bf16.msra.mxu0 0
    %1417 = vmatprep.subr.bf16.mxu0 0
    %1418 = vmatpush1.bf16.msra.mxu0 0
    %1419 = vmatprep.subr.bf16.mxu0 0
    %1420 = vmatpush1.bf16.msra.mxu0 0
    %1421 = vmatprep.subr.bf16.mxu0 0
    %1422 = vmatpush1.bf16.msra.mxu0 0
    %1423 = vmatprep.subr.bf16.mxu0 0
    %1424 = vmatpush1.bf16.msra.mxu0 0
    %1425 = vmatprep.subr.bf16.mxu0 0
    %1426 = vmatpush1.bf16.msra.mxu0 0
    %1427 = vmatprep.subr.bf16.mxu0 0
    %1428 = vmatpush1.bf16.msra.mxu0 0
    %1429 = vmatprep.subr.bf16.mxu0 0
    %1430 = vmatpush1.bf16.msra.mxu0 0
    %1431 = vmatprep.subr.bf16.mxu0 0
    %1432 = vmatpush1.bf16.msra.mxu0 0
    %1433 = vmatprep.subr.bf16.mxu0 0
    %1434 = vmatpush1.bf16.msra.mxu0 0
    %1435 = vmatprep.subr.bf16.mxu0 0
    %1436 = vmatpush1.bf16.msra.mxu0 0
    %1437 = vmatprep.subr.bf16.mxu0 0
    %1438 = vmatpush1.bf16.msra.mxu0 0
    %1439 = vmatprep.mubr.bf16.mxu0 0
    %1440 = vmatmul.mubr.bf16.gmra.mrb[0].mxu0 %v1405
    %v1441 = vpop.f32.mrb[0].mxu0
    %v1442 = vadd.f32 %v1390, %v1441
    %v1443 = vpop.f32.mrb[0].mxu0
    %v1444 = vpop.f32.mrb[0].mxu0
    %v1445 = vadd.f32 %v1390, %v1444
    %v1446 = vpop.f32.mrb[0].mxu0
    %1447 = vdwg.mxu0
    %v1448 = vadd.f32 %v218, %v1442
    %v1449 = vadd.f32 %v221, %v1445
    %v1450 = vld [vmem:[%s11] sm:$0x1]
    %v1451 = vld [vmem:[%s12] sm:$0x1]
    %v1452 = vsel %vm226, %v1448, 0.0
    %1453 = vadd.xlane.f32.xlu0 %v1452
    %v1454 = vpop.xlane.xlu0 %1453
    %v1455 = vsel %vm226, %v1449, 0.0
    %1456 = vadd.xlane.f32.xlu0 %v1455
    %v1457 = vpop.xlane.xlu0 %1456
    %v1458 = vmul.f32 %v1454, %v233
    %v1459 = vmul.f32 %v1457, %v233
    %v1460 = vsub.f32 %v1448, %v1458
    %v1461 = vsub.f32 %v1449, %v1459
    %v1462 = vmul.f32 %v1460, %v1460
    %v1463 = vmul.f32 %v1461, %v1461
    %v1464 = vsel %vm226, %v1462, 0.0
    %1465 = vadd.xlane.f32.xlu0 %v1464
    %v1466 = vpop.xlane.xlu0 %1465
    %v1467 = vsel %vm226, %v1463, 0.0
    %1468 = vadd.xlane.f32.xlu0 %v1467
    %v1469 = vpop.xlane.xlu0 %1468
    %v1470 = vmul.f32 %v1466, %v233
    %v1471 = vmul.f32 %v1469, %v233
    %v1472 = vadd.f32 %v1470, 1e-06
    %v1473 = vadd.f32 %v1471, 1e-06
    %v1474 = vrsqrt.pop %v1472
    %v1475 = vrsqrt.pop %v1473
    %v1476 = vmul.f32 %v1460, %v1474
    %v1477 = vmul.f32 %v1461, %v1475
    %v1479 = vlaneseq
    %v1480 = vshrl.u32 %v1479, 7
    %v1481 = vsub.s32 0, %v1480
    %v1482 = vrot.slane %v1450, %v1481
    %v1484 = vmul.f32 %v1476, %v1482
    %v1485 = vmul.f32 %v1477, %v1482
    %v1487 = vlaneseq
    %v1488 = vshrl.u32 %v1487, 7
    %v1489 = vsub.s32 0, %v1488
    %v1490 = vrot.slane %v1451, %v1489
    %v1492 = vadd.f32 %v1484, %v1490
    %v1493 = vadd.f32 %v1485, %v1490
    %v1494 = vpack.c.bf16 %v1493, %v1492
    %v1495 = vld [vmem:[%s13] sm:$0xf]
    %v1496 = vld [vmem:[%s13 + $0x4] sm:$0xf]
    %v1497 = vld [vmem:[%s13 + $0x8] sm:$0xf]
    %v1498 = vld [vmem:[%s13 + $0xc] sm:$0xf]
    %v1499 = vld [vmem:[%s14] sm:$0x1]
    %v1501 = vlaneseq
    %v1502 = vshrl.u32 %v1501, 7
    %v1503 = vsub.s32 0, %v1502
    %v1504 = vrot.slane %v1499, %v1503
    %v1510 = vunpack.c.l.b16 %v1495
    %v1511 = vunpack.c.l.b16 %v1496
    %v1512 = vunpack.c.l.b16 %v1497
    %v1513 = vunpack.c.l.b16 %v1498
    %v1514 = vpack.c.b16 %v1511, %v1510
    %v1515 = vpack.c.b16 %v1513, %v1512
    %v1519 = vsel %vm226, %v1494, 0
    %1521 = vmatprep.subr.bf16.mxu0 0
    %1522 = vmatpush1.bf16.msra.mxu0 %v1514
    %1523 = vmatprep.subr.bf16.mxu0 0
    %1524 = vmatpush1.bf16.msra.mxu0 %v1515
    %1525 = vmatprep.subr.bf16.mxu0 0
    %1526 = vmatpush1.bf16.msra.mxu0 0
    %1527 = vmatprep.subr.bf16.mxu0 0
    %1528 = vmatpush1.bf16.msra.mxu0 0
    %1529 = vmatprep.subr.bf16.mxu0 0
    %1530 = vmatpush1.bf16.msra.mxu0 0
    %1531 = vmatprep.subr.bf16.mxu0 0
    %1532 = vmatpush1.bf16.msra.mxu0 0
    %1533 = vmatprep.subr.bf16.mxu0 0
    %1534 = vmatpush1.bf16.msra.mxu0 0
    %1535 = vmatprep.subr.bf16.mxu0 0
    %1536 = vmatpush1.bf16.msra.mxu0 0
    %1537 = vmatprep.subr.bf16.mxu0 0
    %1538 = vmatpush1.bf16.msra.mxu0 0
    %1539 = vmatprep.subr.bf16.mxu0 0
    %1540 = vmatpush1.bf16.msra.mxu0 0
    %1541 = vmatprep.subr.bf16.mxu0 0
    %1542 = vmatpush1.bf16.msra.mxu0 0
    %1543 = vmatprep.subr.bf16.mxu0 0
    %1544 = vmatpush1.bf16.msra.mxu0 0
    %1545 = vmatprep.subr.bf16.mxu0 0
    %1546 = vmatpush1.bf16.msra.mxu0 0
    %1547 = vmatprep.subr.bf16.mxu0 0
    %1548 = vmatpush1.bf16.msra.mxu0 0
    %1549 = vmatprep.subr.bf16.mxu0 0
    %1550 = vmatpush1.bf16.msra.mxu0 0
    %1551 = vmatprep.subr.bf16.mxu0 0
    %1552 = vmatpush1.bf16.msra.mxu0 0
    %1553 = vmatprep.mubr.bf16.mxu0 0
    %1554 = vmatmul.mubr.bf16.gmra.mrb[0].mxu0 %v1519
    %v1555 = vpop.f32.mrb[0].mxu0
    %v1556 = vadd.f32 %v1504, %v1555
    %v1557 = vpop.f32.mrb[0].mxu0
    %v1558 = vpop.f32.mrb[0].mxu0
    %v1559 = vadd.f32 %v1504, %v1558
    %v1560 = vpop.f32.mrb[0].mxu0
    %1561 = vdwg.mxu0
    %v1562 = vmul.f32 %v1556, 0.5
    %v1563 = vmul.f32 %v1559, 0.5
    %v1564 = vmul.f32 %v1556, 0.044715
    %v1565 = vmul.f32 %v1559, 0.044715
    %v1566 = vmul.f32 %v1564, %v1556
    %v1567 = vmul.f32 %v1565, %v1559
    %v1568 = vmul.f32 %v1566, %v1556
    %v1569 = vmul.f32 %v1567, %v1559
    %v1570 = vadd.f32 %v1556, %v1568
    %v1571 = vadd.f32 %v1559, %v1569
    %v1572 = vmul.f32 %v1570, 0.7978846
    %v1573 = vmul.f32 %v1571, 0.7978846
    %v1574 = vtanh.pop %v1572
    %v1575 = vtanh.pop %v1573
    %v1576 = vadd.f32 %v1574, 1.0
    %v1577 = vadd.f32 %v1575, 1.0
    %v1578 = vmul.f32 %v1562, %v1576
    %v1579 = vmul.f32 %v1563, %v1577
    %v1580 = vpack.c.bf16 %v1579, %v1578
    %v1581 = vld [vmem:[%s15] sm:$0xf]
    %v1582 = vld [vmem:[%s15 + $0x4] sm:$0xf]
    %v1583 = vld [vmem:[%s15 + $0x8] sm:$0xf]
    %v1584 = vld [vmem:[%s15 + $0xc] sm:$0xf]
    %v1585 = vld [vmem:[%s15 + $0x10] sm:$0xf]
    %v1586 = vld [vmem:[%s15 + $0x14] sm:$0xf]
    %v1587 = vld [vmem:[%s15 + $0x18] sm:$0xf]
    %v1588 = vld [vmem:[%s15 + $0x1c] sm:$0xf]
    %v1589 = vld [vmem:[%s16] sm:$0x1]
    %v1591 = vlaneseq
    %v1592 = vshrl.u32 %v1591, 7
    %v1593 = vsub.s32 0, %v1592
    %v1594 = vrot.slane %v1589, %v1593
    %v1604 = vunpack.c.l.b16 %v1581
    %v1605 = vunpack.c.l.b16 %v1582
    %v1606 = vunpack.c.l.b16 %v1583
    %v1607 = vunpack.c.l.b16 %v1584
    %v1608 = vunpack.c.l.b16 %v1585
    %v1609 = vunpack.c.l.b16 %v1586
    %v1610 = vunpack.c.l.b16 %v1587
    %v1611 = vunpack.c.l.b16 %v1588
    %v1612 = vpack.c.b16 %v1605, %v1604
    %v1613 = vpack.c.b16 %v1607, %v1606
    %v1614 = vpack.c.b16 %v1609, %v1608
    %v1615 = vpack.c.b16 %v1611, %v1610
    %v1621 = vsel %vm179, %v1580, 0
    %1623 = vmatprep.subr.bf16.mxu0 0
    %1624 = vmatpush1.bf16.msra.mxu0 %v1612
    %1625 = vmatprep.subr.bf16.mxu0 0
    %1626 = vmatpush1.bf16.msra.mxu0 %v1613
    %1627 = vmatprep.subr.bf16.mxu0 0
    %1628 = vmatpush1.bf16.msra.mxu0 %v1614
    %1629 = vmatprep.subr.bf16.mxu0 0
    %1630 = vmatpush1.bf16.msra.mxu0 %v1615
    %1631 = vmatprep.subr.bf16.mxu0 0
    %1632 = vmatpush1.bf16.msra.mxu0 0
    %1633 = vmatprep.subr.bf16.mxu0 0
    %1634 = vmatpush1.bf16.msra.mxu0 0
    %1635 = vmatprep.subr.bf16.mxu0 0
    %1636 = vmatpush1.bf16.msra.mxu0 0
    %1637 = vmatprep.subr.bf16.mxu0 0
    %1638 = vmatpush1.bf16.msra.mxu0 0
    %1639 = vmatprep.subr.bf16.mxu0 0
    %1640 = vmatpush1.bf16.msra.mxu0 0
    %1641 = vmatprep.subr.bf16.mxu0 0
    %1642 = vmatpush1.bf16.msra.mxu0 0
    %1643 = vmatprep.subr.bf16.mxu0 0
    %1644 = vmatpush1.bf16.msra.mxu0 0
    %1645 = vmatprep.subr.bf16.mxu0 0
    %1646 = vmatpush1.bf16.msra.mxu0 0
    %1647 = vmatprep.subr.bf16.mxu0 0
    %1648 = vmatpush1.bf16.msra.mxu0 0
    %1649 = vmatprep.subr.bf16.mxu0 0
    %1650 = vmatpush1.bf16.msra.mxu0 0
    %1651 = vmatprep.subr.bf16.mxu0 0
    %1652 = vmatpush1.bf16.msra.mxu0 0
    %1653 = vmatprep.subr.bf16.mxu0 0
    %1654 = vmatpush1.bf16.msra.mxu0 0
    %1655 = vmatprep.mubr.bf16.mxu0 0
    %1656 = vmatmul.mubr.bf16.gmra.mrb[0].mxu0 %v1621
    %v1657 = vpop.f32.mrb[0].mxu0
    %v1658 = vadd.f32 %v1594, %v1657
    %v1659 = vpop.f32.mrb[0].mxu0
    %v1660 = vpop.f32.mrb[0].mxu0
    %v1661 = vadd.f32 %v1594, %v1660
    %v1662 = vpop.f32.mrb[0].mxu0
    %1663 = vdwg.mxu0
    %v1664 = vadd.f32 %v1448, %v1658
    %v1665 = vadd.f32 %v1449, %v1661
    %s1666 = scalar_lea.vmem %s3, 1
    %v1667 = vld [vmem:[%s1666] sm:$0x1]
    %s1668 = scalar_lea.vmem %s4, 1
    %v1669 = vld [vmem:[%s1668] sm:$0x1]
    %v1670 = vsel %vm226, %v1664, 0.0
    %1671 = vadd.xlane.f32.xlu0 %v1670
    %v1672 = vpop.xlane.xlu0 %1671
    %v1673 = vsel %vm226, %v1665, 0.0
    %1674 = vadd.xlane.f32.xlu0 %v1673
    %v1675 = vpop.xlane.xlu0 %1674
    %v1676 = vmul.f32 %v1672, %v233
    %v1677 = vmul.f32 %v1675, %v233
    %v1678 = vsub.f32 %v1664, %v1676
    %v1679 = vsub.f32 %v1665, %v1677
    %v1680 = vmul.f32 %v1678, %v1678
    %v1681 = vmul.f32 %v1679, %v1679
    %v1682 = vsel %vm226, %v1680, 0.0
    %1683 = vadd.xlane.f32.xlu0 %v1682
    %v1684 = vpop.xlane.xlu0 %1683
    %v1685 = vsel %vm226, %v1681, 0.0
    %1686 = vadd.xlane.f32.xlu0 %v1685
    %v1687 = vpop.xlane.xlu0 %1686
    %v1688 = vmul.f32 %v1684, %v233
    %v1689 = vmul.f32 %v1687, %v233
    %v1690 = vadd.f32 %v1688, 1e-06
    %v1691 = vadd.f32 %v1689, 1e-06
    %v1692 = vrsqrt.pop %v1690
    %v1693 = vrsqrt.pop %v1691
    %v1694 = vmul.f32 %v1678, %v1692
    %v1695 = vmul.f32 %v1679, %v1693
    %v1697 = vlaneseq
    %v1698 = vshrl.u32 %v1697, 7
    %v1699 = vsub.s32 0, %v1698
    %v1700 = vrot.slane %v1667, %v1699
    %v1702 = vmul.f32 %v1694, %v1700
    %v1703 = vmul.f32 %v1695, %v1700
    %v1705 = vlaneseq
    %v1706 = vshrl.u32 %v1705, 7
    %v1707 = vsub.s32 0, %v1706
    %v1708 = vrot.slane %v1669, %v1707
    %v1710 = vadd.f32 %v1702, %v1708
    %v1711 = vadd.f32 %v1703, %v1708
    %v1712 = vpack.c.bf16 %v1711, %v1710
    %s1713 = scalar_lea.vmem %s7, 16
    %v1714 = vld [vmem:[%s1713] sm:$0xf]
    %v1715 = vld [vmem:[%s1713 + $0x4] sm:$0xf]
    %v1716 = vld [vmem:[%s1713 + $0x8] sm:$0xf]
    %v1717 = vld [vmem:[%s1713 + $0xc] sm:$0xf]
    %v1722 = vunpack.c.l.b16 %v1714
    %v1723 = vunpack.c.l.b16 %v1715
    %v1724 = vunpack.c.l.b16 %v1716
    %v1725 = vunpack.c.l.b16 %v1717
    %v1726 = vpack.c.b16 %v1723, %v1722
    %v1727 = vpack.c.b16 %v1725, %v1724
    %v1731 = vsel %vm226, %v1712, 0
    %1733 = vmatprep.subr.bf16.mxu0 0
    %1734 = vmatpush1.bf16.msra.mxu0 %v1726
    %1735 = vmatprep.subr.bf16.mxu0 0
    %1736 = vmatpush1.bf16.msra.mxu0 %v1727
    %1737 = vmatprep.subr.bf16.mxu0 0
    %1738 = vmatpush1.bf16.msra.mxu0 0
    %1739 = vmatprep.subr.bf16.mxu0 0
    %1740 = vmatpush1.bf16.msra.mxu0 0
    %1741 = vmatprep.subr.bf16.mxu0 0
    %1742 = vmatpush1.bf16.msra.mxu0 0
    %1743 = vmatprep.subr.bf16.mxu0 0
    %1744 = vmatpush1.bf16.msra.mxu0 0
    %1745 = vmatprep.subr.bf16.mxu0 0
    %1746 = vmatpush1.bf16.msra.mxu0 0
    %1747 = vmatprep.subr.bf16.mxu0 0
    %1748 = vmatpush1.bf16.msra.mxu0 0
    %1749 = vmatprep.subr.bf16.mxu0 0
    %1750 = vmatpush1.bf16.msra.mxu0 0
    %1751 = vmatprep.subr.bf16.mxu0 0
    %1752 = vmatpush1.bf16.msra.mxu0 0
    %1753 = vmatprep.subr.bf16.mxu0 0
    %1754 = vmatpush1.bf16.msra.mxu0 0
    %1755 = vmatprep.subr.bf16.mxu0 0
    %1756 = vmatpush1.bf16.msra.mxu0 0
    %1757 = vmatprep.subr.bf16.mxu0 0
    %1758 = vmatpush1.bf16.msra.mxu0 0
    %1759 = vmatprep.subr.bf16.mxu0 0
    %1760 = vmatpush1.bf16.msra.mxu0 0
    %1761 = vmatprep.subr.bf16.mxu0 0
    %1762 = vmatpush1.bf16.msra.mxu0 0
    %1763 = vmatprep.subr.bf16.mxu0 0
    %1764 = vmatpush1.bf16.msra.mxu0 0
    %1765 = vmatprep.mubr.bf16.mxu0 0
    %1766 = vmatmul.mubr.bf16.gmra.mrb[0].mxu0 %v1731
    %v1767 = vpop.f32.mrb[0].mxu0
    %v1768 = vadd.f32 0.0, %v1767
    %v1769 = vpop.f32.mrb[0].mxu0
    %v1770 = vpop.f32.mrb[0].mxu0
    %v1771 = vadd.f32 0.0, %v1770
    %v1772 = vpop.f32.mrb[0].mxu0
    %1773 = vdwg.mxu0
    %s1774 = scalar_lea.vmem %s5, 16
    %v1775 = vld [vmem:[%s1774] sm:$0xf]
    %v1776 = vld [vmem:[%s1774 + $0x4] sm:$0xf]
    %v1777 = vld [vmem:[%s1774 + $0x8] sm:$0xf]
    %v1778 = vld [vmem:[%s1774 + $0xc] sm:$0xf]
    %s1779 = scalar_lea.vmem %s6, 1
    %v1780 = vld [vmem:[%s1779] sm:$0x1]
    %v1782 = vlaneseq
    %v1783 = vshrl.u32 %v1782, 7
    %v1784 = vsub.s32 0, %v1783
    %v1785 = vrot.slane %v1780, %v1784
    %v1791 = vunpack.c.l.b16 %v1775
    %v1792 = vunpack.c.l.b16 %v1776
    %v1793 = vunpack.c.l.b16 %v1777
    %v1794 = vunpack.c.l.b16 %v1778
    %v1795 = vpack.c.b16 %v1792, %v1791
    %v1796 = vpack.c.b16 %v1794, %v1793
    %1799 = vmatprep.subr.bf16.mxu0 0
    %1800 = vmatpush1.bf16.msra.mxu0 %v1795
    %1801 = vmatprep.subr.bf16.mxu0 0
    %1802 = vmatpush1.bf16.msra.mxu0 %v1796
    %1803 = vmatprep.subr.bf16.mxu0 0
    %1804 = vmatpush1.bf16.msra.mxu0 0
    %1805 = vmatprep.subr.bf16.mxu0 0
    %1806 = vmatpush1.bf16.msra.mxu0 0
    %1807 = vmatprep.subr.bf16.mxu0 0
    %1808 = vmatpush1.bf16.msra.mxu0 0
    %1809 = vmatprep.subr.bf16.mxu0 0
    %1810 = vmatpush1.bf16.msra.mxu0 0
    %1811 = vmatprep.subr.bf16.mxu0 0
    %1812 = vmatpush1.bf16.msra.mxu0 0
    %1813 = vmatprep.subr.bf16.mxu0 0
    %1814 = vmatpush1.bf16.msra.mxu0 0
    %1815 = vmatprep.subr.bf16.mxu0 0
    %1816 = vmatpush1.bf16.msra.mxu0 0
    %1817 = vmatprep.subr.bf16.mxu0 0
    %1818 = vmatpush1.bf16.msra.mxu0 0
    %1819 = vmatprep.subr.bf16.mxu0 0
    %1820 = vmatpush1.bf16.msra.mxu0 0
    %1821 = vmatprep.subr.bf16.mxu0 0
    %1822 = vmatpush1.bf16.msra.mxu0 0
    %1823 = vmatprep.subr.bf16.mxu0 0
    %1824 = vmatpush1.bf16.msra.mxu0 0
    %1825 = vmatprep.subr.bf16.mxu0 0
    %1826 = vmatpush1.bf16.msra.mxu0 0
    %1827 = vmatprep.subr.bf16.mxu0 0
    %1828 = vmatpush1.bf16.msra.mxu0 0
    %1829 = vmatprep.subr.bf16.mxu0 0
    %1830 = vmatpush1.bf16.msra.mxu0 0
    %1831 = vmatprep.mubr.bf16.mxu0 0
    %1832 = vmatmul.mubr.bf16.gmra.mrb[0].mxu0 %v1731
    %v1833 = vpop.f32.mrb[0].mxu0
    %v1834 = vadd.f32 %v1785, %v1833
    %v1835 = vpop.f32.mrb[0].mxu0
    %v1836 = vpop.f32.mrb[0].mxu0
    %v1837 = vadd.f32 %v1785, %v1836
    %v1838 = vpop.f32.mrb[0].mxu0
    %1839 = vdwg.mxu0
    %v1840 = vpack.c.bf16 %v1771, %v1768
    %s1841 = scalar_lea.vmem %s8, 2
    %v1842 = vld [vmem:[%s1841] sm:$0x3]
    %v1844 = vsel %vm397, %v1840, 0
    %v1847 = vsel %vm401, %v1842, 0
    %1849 = vmatprep.subr.bf16.mxu0 0
    %1850 = vmatpush1.bf16.msra.mxu0 %v1847
    %1851 = vmatprep.subr.bf16.mxu0 0
    %1852 = vmatpush1.bf16.msra.mxu0 0
    %1853 = vmatprep.subr.bf16.mxu0 0
    %1854 = vmatpush1.bf16.msra.mxu0 0
    %1855 = vmatprep.subr.bf16.mxu0 0
    %1856 = vmatpush1.bf16.msra.mxu0 0
    %1857 = vmatprep.subr.bf16.mxu0 0
    %1858 = vmatpush1.bf16.msra.mxu0 0
    %1859 = vmatprep.subr.bf16.mxu0 0
    %1860 = vmatpush1.bf16.msra.mxu0 0
    %1861 = vmatprep.subr.bf16.mxu0 0
    %1862 = vmatpush1.bf16.msra.mxu0 0
    %1863 = vmatprep.subr.bf16.mxu0 0
    %1864 = vmatpush1.bf16.msra.mxu0 0
    %1865 = vmatprep.subr.bf16.mxu0 0
    %1866 = vmatpush1.bf16.msra.mxu0 0
    %1867 = vmatprep.subr.bf16.mxu0 0
    %1868 = vmatpush1.bf16.msra.mxu0 0
    %1869 = vmatprep.subr.bf16.mxu0 0
    %1870 = vmatpush1.bf16.msra.mxu0 0
    %1871 = vmatprep.subr.bf16.mxu0 0
    %1872 = vmatpush1.bf16.msra.mxu0 0
    %1873 = vmatprep.subr.bf16.mxu0 0
    %1874 = vmatpush1.bf16.msra.mxu0 0
    %1875 = vmatprep.subr.bf16.mxu0 0
    %1876 = vmatpush1.bf16.msra.mxu0 0
    %1877 = vmatprep.subr.bf16.mxu0 0
    %1878 = vmatpush1.bf16.msra.mxu0 0
    %1879 = vmatprep.subr.bf16.mxu0 0
    %1880 = vmatpush1.bf16.msra.mxu0 0
    %1881 = vmatprep.mubr.bf16.mxu0 0
    %1882 = vmatmul.mubr.bf16.gmra.mrb[0].mxu0 %v1844
    %v1883 = vpop.f32.mrb[0].mxu0
    %v1884 = vadd.f32 0.0, %v1883
    %v1885 = vpop.f32.mrb[0].mxu0
    %v1886 = vpop.f32.mrb[0].mxu0
    %v1887 = vadd.f32 0.0, %v1886
    %v1888 = vpop.f32.mrb[0].mxu0
    %1889 = vdwg.mxu0
    %v1890 = vadd.f32 %v1834, %v1884
    %v1891 = vadd.f32 %v1837, %v1887
    %v1892 = vpack.c.bf16 %v1891, %v1890
    %v1894 = vunpack.c.l.b16 %v1892
    %v1895 = vunpack.c.h.b16 %v1892
    %v1896 = vpack.c.b16 %v1894, %v1894
    %v1897 = vpack.c.b16 %v1895, %v1895
    %1898 = vrot.lane.b32.xlu0 %v1896, 96
    %v1899 = vpop.permute.xlu0 %1898
    %v1901 = vsel %vm456, %v1896, 0
    %v1904 = vsel %vm456, %v1899, 0
    %1906 = vmatprep.subr.bf16.mxu0 0
    %1907 = vmatpush1.bf16.xpose.msra.mxu0 %v1904
    %1908 = vmatprep.subr.bf16.mxu0 0
    %1909 = vmatpush1.bf16.xpose.msra.mxu0 0
    %1910 = vmatprep.subr.bf16.mxu0 0
    %1911 = vmatpush1.bf16.xpose.msra.mxu0 0
    %1912 = vmatprep.subr.bf16.mxu0 0
    %1913 = vmatpush1.bf16.xpose.msra.mxu0 0
    %1914 = vmatprep.subr.bf16.mxu0 0
    %1915 = vmatpush1.bf16.xpose.msra.mxu0 0
    %1916 = vmatprep.subr.bf16.mxu0 0
    %1917 = vmatpush1.bf16.xpose.msra.mxu0 0
    %1918 = vmatprep.subr.bf16.mxu0 0
    %1919 = vmatpush1.bf16.xpose.msra.mxu0 0
    %1920 = vmatprep.subr.bf16.mxu0 0
    %1921 = vmatpush1.bf16.xpose.msra.mxu0 0
    %1922 = vmatprep.subr.bf16.mxu0 0
    %1923 = vmatpush1.bf16.xpose.msra.mxu0 0
    %1924 = vmatprep.subr.bf16.mxu0 0
    %1925 = vmatpush1.bf16.xpose.msra.mxu0 0
    %1926 = vmatprep.subr.bf16.mxu0 0
    %1927 = vmatpush1.bf16.xpose.msra.mxu0 0
    %1928 = vmatprep.subr.bf16.mxu0 0
    %1929 = vmatpush1.bf16.xpose.msra.mxu0 0
    %1930 = vmatprep.subr.bf16.mxu0 0
    %1931 = vmatpush1.bf16.xpose.msra.mxu0 0
    %1932 = vmatprep.subr.bf16.mxu0 0
    %1933 = vmatpush1.bf16.xpose.msra.mxu0 0
    %1934 = vmatprep.subr.bf16.mxu0 0
    %1935 = vmatpush1.bf16.xpose.msra.mxu0 0
    %1936 = vmatprep.subr.bf16.mxu0 0
    %1937 = vmatpush1.bf16.xpose.msra.mxu0 0
    %1938 = vmatprep.mubr.bf16.mxu0 0
    %1939 = vmatmul.mubr.bf16.gmra.mrb[0].mxu0 %v1901
    %v1940 = vpop.f32.mrb[0].mxu0
    %v1941 = vadd.f32 0.0, %v1940
    %v1942 = vpop.f32.mrb[0].mxu0
    %v1943 = vpop.f32.mrb[0].mxu0
    %v1944 = vpop.f32.mrb[0].mxu0
    %1945 = vdwg.mxu0
    %1946 = vrot.lane.b32.xlu0 %v1897, 96
    %v1947 = vpop.permute.xlu0 %1946
    %v1949 = vsel %vm456, %v1897, 0
    %v1952 = vsel %vm456, %v1947, 0
    %1954 = vmatprep.subr.bf16.mxu0 0
    %1955 = vmatpush1.bf16.xpose.msra.mxu0 %v1952
    %1956 = vmatprep.subr.bf16.mxu0 0
    %1957 = vmatpush1.bf16.xpose.msra.mxu0 0
    %1958 = vmatprep.subr.bf16.mxu0 0
    %1959 = vmatpush1.bf16.xpose.msra.mxu0 0
    %1960 = vmatprep.subr.bf16.mxu0 0
    %1961 = vmatpush1.bf16.xpose.msra.mxu0 0
    %1962 = vmatprep.subr.bf16.mxu0 0
    %1963 = vmatpush1.bf16.xpose.msra.mxu0 0
    %1964 = vmatprep.subr.bf16.mxu0 0
    %1965 = vmatpush1.bf16.xpose.msra.mxu0 0
    %1966 = vmatprep.subr.bf16.mxu0 0
    %1967 = vmatpush1.bf16.xpose.msra.mxu0 0
    %1968 = vmatprep.subr.bf16.mxu0 0
    %1969 = vmatpush1.bf16.xpose.msra.mxu0 0
    %1970 = vmatprep.subr.bf16.mxu0 0
    %1971 = vmatpush1.bf16.xpose.msra.mxu0 0
    %1972 = vmatprep.subr.bf16.mxu0 0
    %1973 = vmatpush1.bf16.xpose.msra.mxu0 0
    %1974 = vmatprep.subr.bf16.mxu0 0
    %1975 = vmatpush1.bf16.xpose.msra.mxu0 0
    %1976 = vmatprep.subr.bf16.mxu0 0
    %1977 = vmatpush1.bf16.xpose.msra.mxu0 0
    %1978 = vmatprep.subr.bf16.mxu0 0
    %1979 = vmatpush1.bf16.xpose.msra.mxu0 0
    %1980 = vmatprep.subr.bf16.mxu0 0
    %1981 = vmatpush1.bf16.xpose.msra.mxu0 0
    %1982 = vmatprep.subr.bf16.mxu0 0
    %1983 = vmatpush1.bf16.xpose.msra.mxu0 0
    %1984 = vmatprep.subr.bf16.mxu0 0
    %1985 = vmatpush1.bf16.xpose.msra.mxu0 0
    %1986 = vmatprep.mubr.bf16.mxu0 0
    %1987 = vmatmul.mubr.bf16.gmra.mrb[0].mxu0 %v1949
    %v1988 = vpop.f32.mrb[0].mxu0
    %v1989 = vadd.f32 0.0, %v1988
    %v1990 = vpop.f32.mrb[0].mxu0
    %v1991 = vpop.f32.mrb[0].mxu0
    %v1992 = vpop.f32.mrb[0].mxu0
    %1993 = vdwg.mxu0
    %1994 = vrot.lane.b32.xlu0 %v1896, 120
    %v1995 = vpop.permute.xlu0 %1994
    %1996 = vrot.lane.b32.xlu0 %v1896, 88
    %v1997 = vpop.permute.xlu0 %1996
    %v1999 = vsel %vm456, %v1995, 0
    %v2002 = vsel %vm456, %v1997, 0
    %2004 = vmatprep.subr.bf16.mxu0 0
    %2005 = vmatpush1.bf16.xpose.msra.mxu0 %v2002
    %2006 = vmatprep.subr.bf16.mxu0 0
    %2007 = vmatpush1.bf16.xpose.msra.mxu0 0
    %2008 = vmatprep.subr.bf16.mxu0 0
    %2009 = vmatpush1.bf16.xpose.msra.mxu0 0
    %2010 = vmatprep.subr.bf16.mxu0 0
    %2011 = vmatpush1.bf16.xpose.msra.mxu0 0
    %2012 = vmatprep.subr.bf16.mxu0 0
    %2013 = vmatpush1.bf16.xpose.msra.mxu0 0
    %2014 = vmatprep.subr.bf16.mxu0 0
    %2015 = vmatpush1.bf16.xpose.msra.mxu0 0
    %2016 = vmatprep.subr.bf16.mxu0 0
    %2017 = vmatpush1.bf16.xpose.msra.mxu0 0
    %2018 = vmatprep.subr.bf16.mxu0 0
    %2019 = vmatpush1.bf16.xpose.msra.mxu0 0
    %2020 = vmatprep.subr.bf16.mxu0 0
    %2021 = vmatpush1.bf16.xpose.msra.mxu0 0
    %2022 = vmatprep.subr.bf16.mxu0 0
    %2023 = vmatpush1.bf16.xpose.msra.mxu0 0
    %2024 = vmatprep.subr.bf16.mxu0 0
    %2025 = vmatpush1.bf16.xpose.msra.mxu0 0
    %2026 = vmatprep.subr.bf16.mxu0 0
    %2027 = vmatpush1.bf16.xpose.msra.mxu0 0
    %2028 = vmatprep.subr.bf16.mxu0 0
    %2029 = vmatpush1.bf16.xpose.msra.mxu0 0
    %2030 = vmatprep.subr.bf16.mxu0 0
    %2031 = vmatpush1.bf16.xpose.msra.mxu0 0
    %2032 = vmatprep.subr.bf16.mxu0 0
    %2033 = vmatpush1.bf16.xpose.msra.mxu0 0
    %2034 = vmatprep.subr.bf16.mxu0 0
    %2035 = vmatpush1.bf16.xpose.msra.mxu0 0
    %2036 = vmatprep.mubr.bf16.mxu0 0
    %2037 = vmatmul.mubr.bf16.gmra.mrb[0].mxu0 %v1999
    %v2038 = vpop.f32.mrb[0].mxu0
    %v2039 = vadd.f32 0.0, %v2038
    %v2040 = vpop.f32.mrb[0].mxu0
    %v2041 = vpop.f32.mrb[0].mxu0
    %v2042 = vpop.f32.mrb[0].mxu0
    %2043 = vdwg.mxu0
    %2044 = vrot.lane.b32.xlu0 %v1897, 120
    %v2045 = vpop.permute.xlu0 %2044
    %2046 = vrot.lane.b32.xlu0 %v1897, 88
    %v2047 = vpop.permute.xlu0 %2046
    %v2049 = vsel %vm456, %v2045, 0
    %v2052 = vsel %vm456, %v2047, 0
    %2054 = vmatprep.subr.bf16.mxu0 0
    %2055 = vmatpush1.bf16.xpose.msra.mxu0 %v2052
    %2056 = vmatprep.subr.bf16.mxu0 0
    %2057 = vmatpush1.bf16.xpose.msra.mxu0 0
    %2058 = vmatprep.subr.bf16.mxu0 0
    %2059 = vmatpush1.bf16.xpose.msra.mxu0 0
    %2060 = vmatprep.subr.bf16.mxu0 0
    %2061 = vmatpush1.bf16.xpose.msra.mxu0 0
    %2062 = vmatprep.subr.bf16.mxu0 0
    %2063 = vmatpush1.bf16.xpose.msra.mxu0 0
    %2064 = vmatprep.subr.bf16.mxu0 0
    %2065 = vmatpush1.bf16.xpose.msra.mxu0 0
    %2066 = vmatprep.subr.bf16.mxu0 0
    %2067 = vmatpush1.bf16.xpose.msra.mxu0 0
    %2068 = vmatprep.subr.bf16.mxu0 0
    %2069 = vmatpush1.bf16.xpose.msra.mxu0 0
    %2070 = vmatprep.subr.bf16.mxu0 0
    %2071 = vmatpush1.bf16.xpose.msra.mxu0 0
    %2072 = vmatprep.subr.bf16.mxu0 0
    %2073 = vmatpush1.bf16.xpose.msra.mxu0 0
    %2074 = vmatprep.subr.bf16.mxu0 0
    %2075 = vmatpush1.bf16.xpose.msra.mxu0 0
    %2076 = vmatprep.subr.bf16.mxu0 0
    %2077 = vmatpush1.bf16.xpose.msra.mxu0 0
    %2078 = vmatprep.subr.bf16.mxu0 0
    %2079 = vmatpush1.bf16.xpose.msra.mxu0 0
    %2080 = vmatprep.subr.bf16.mxu0 0
    %2081 = vmatpush1.bf16.xpose.msra.mxu0 0
    %2082 = vmatprep.subr.bf16.mxu0 0
    %2083 = vmatpush1.bf16.xpose.msra.mxu0 0
    %2084 = vmatprep.subr.bf16.mxu0 0
    %2085 = vmatpush1.bf16.xpose.msra.mxu0 0
    %2086 = vmatprep.mubr.bf16.mxu0 0
    %2087 = vmatmul.mubr.bf16.gmra.mrb[0].mxu0 %v2049
    %v2088 = vpop.f32.mrb[0].mxu0
    %v2089 = vadd.f32 0.0, %v2088
    %v2090 = vpop.f32.mrb[0].mxu0
    %v2091 = vpop.f32.mrb[0].mxu0
    %v2092 = vpop.f32.mrb[0].mxu0
    %2093 = vdwg.mxu0
    %2094 = vrot.lane.b32.xlu0 %v1896, 112
    %v2095 = vpop.permute.xlu0 %2094
    %2096 = vrot.lane.b32.xlu0 %v1896, 80
    %v2097 = vpop.permute.xlu0 %2096
    %v2099 = vsel %vm456, %v2095, 0
    %v2102 = vsel %vm456, %v2097, 0
    %2104 = vmatprep.subr.bf16.mxu0 0
    %2105 = vmatpush1.bf16.xpose.msra.mxu0 %v2102
    %2106 = vmatprep.subr.bf16.mxu0 0
    %2107 = vmatpush1.bf16.xpose.msra.mxu0 0
    %2108 = vmatprep.subr.bf16.mxu0 0
    %2109 = vmatpush1.bf16.xpose.msra.mxu0 0
    %2110 = vmatprep.subr.bf16.mxu0 0
    %2111 = vmatpush1.bf16.xpose.msra.mxu0 0
    %2112 = vmatprep.subr.bf16.mxu0 0
    %2113 = vmatpush1.bf16.xpose.msra.mxu0 0
    %2114 = vmatprep.subr.bf16.mxu0 0
    %2115 = vmatpush1.bf16.xpose.msra.mxu0 0
    %2116 = vmatprep.subr.bf16.mxu0 0
    %2117 = vmatpush1.bf16.xpose.msra.mxu0 0
    %2118 = vmatprep.subr.bf16.mxu0 0
    %2119 = vmatpush1.bf16.xpose.msra.mxu0 0
    %2120 = vmatprep.subr.bf16.mxu0 0
    %2121 = vmatpush1.bf16.xpose.msra.mxu0 0
    %2122 = vmatprep.subr.bf16.mxu0 0
    %2123 = vmatpush1.bf16.xpose.msra.mxu0 0
    %2124 = vmatprep.subr.bf16.mxu0 0
    %2125 = vmatpush1.bf16.xpose.msra.mxu0 0
    %2126 = vmatprep.subr.bf16.mxu0 0
    %2127 = vmatpush1.bf16.xpose.msra.mxu0 0
    %2128 = vmatprep.subr.bf16.mxu0 0
    %2129 = vmatpush1.bf16.xpose.msra.mxu0 0
    %2130 = vmatprep.subr.bf16.mxu0 0
    %2131 = vmatpush1.bf16.xpose.msra.mxu0 0
    %2132 = vmatprep.subr.bf16.mxu0 0
    %2133 = vmatpush1.bf16.xpose.msra.mxu0 0
    %2134 = vmatprep.subr.bf16.mxu0 0
    %2135 = vmatpush1.bf16.xpose.msra.mxu0 0
    %2136 = vmatprep.mubr.bf16.mxu0 0
    %2137 = vmatmul.mubr.bf16.gmra.mrb[0].mxu0 %v2099
    %v2138 = vpop.f32.mrb[0].mxu0
    %v2139 = vadd.f32 0.0, %v2138
    %v2140 = vpop.f32.mrb[0].mxu0
    %v2141 = vpop.f32.mrb[0].mxu0
    %v2142 = vpop.f32.mrb[0].mxu0
    %2143 = vdwg.mxu0
    %2144 = vrot.lane.b32.xlu0 %v1897, 112
    %v2145 = vpop.permute.xlu0 %2144
    %2146 = vrot.lane.b32.xlu0 %v1897, 80
    %v2147 = vpop.permute.xlu0 %2146
    %v2149 = vsel %vm456, %v2145, 0
    %v2152 = vsel %vm456, %v2147, 0
    %2154 = vmatprep.subr.bf16.mxu0 0
    %2155 = vmatpush1.bf16.xpose.msra.mxu0 %v2152
    %2156 = vmatprep.subr.bf16.mxu0 0
    %2157 = vmatpush1.bf16.xpose.msra.mxu0 0
    %2158 = vmatprep.subr.bf16.mxu0 0
    %2159 = vmatpush1.bf16.xpose.msra.mxu0 0
    %2160 = vmatprep.subr.bf16.mxu0 0
    %2161 = vmatpush1.bf16.xpose.msra.mxu0 0
    %2162 = vmatprep.subr.bf16.mxu0 0
    %2163 = vmatpush1.bf16.xpose.msra.mxu0 0
    %2164 = vmatprep.subr.bf16.mxu0 0
    %2165 = vmatpush1.bf16.xpose.msra.mxu0 0
    %2166 = vmatprep.subr.bf16.mxu0 0
    %2167 = vmatpush1.bf16.xpose.msra.mxu0 0
    %2168 = vmatprep.subr.bf16.mxu0 0
    %2169 = vmatpush1.bf16.xpose.msra.mxu0 0
    %2170 = vmatprep.subr.bf16.mxu0 0
    %2171 = vmatpush1.bf16.xpose.msra.mxu0 0
    %2172 = vmatprep.subr.bf16.mxu0 0
    %2173 = vmatpush1.bf16.xpose.msra.mxu0 0
    %2174 = vmatprep.subr.bf16.mxu0 0
    %2175 = vmatpush1.bf16.xpose.msra.mxu0 0
    %2176 = vmatprep.subr.bf16.mxu0 0
    %2177 = vmatpush1.bf16.xpose.msra.mxu0 0
    %2178 = vmatprep.subr.bf16.mxu0 0
    %2179 = vmatpush1.bf16.xpose.msra.mxu0 0
    %2180 = vmatprep.subr.bf16.mxu0 0
    %2181 = vmatpush1.bf16.xpose.msra.mxu0 0
    %2182 = vmatprep.subr.bf16.mxu0 0
    %2183 = vmatpush1.bf16.xpose.msra.mxu0 0
    %2184 = vmatprep.subr.bf16.mxu0 0
    %2185 = vmatpush1.bf16.xpose.msra.mxu0 0
    %2186 = vmatprep.mubr.bf16.mxu0 0
    %2187 = vmatmul.mubr.bf16.gmra.mrb[0].mxu0 %v2149
    %v2188 = vpop.f32.mrb[0].mxu0
    %v2189 = vadd.f32 0.0, %v2188
    %v2190 = vpop.f32.mrb[0].mxu0
    %v2191 = vpop.f32.mrb[0].mxu0
    %v2192 = vpop.f32.mrb[0].mxu0
    %2193 = vdwg.mxu0
    %2194 = vrot.lane.b32.xlu0 %v1896, 104
    %v2195 = vpop.permute.xlu0 %2194
    %2196 = vrot.lane.b32.xlu0 %v1896, 72
    %v2197 = vpop.permute.xlu0 %2196
    %v2199 = vsel %vm456, %v2195, 0
    %v2202 = vsel %vm456, %v2197, 0
    %2204 = vmatprep.subr.bf16.mxu0 0
    %2205 = vmatpush1.bf16.xpose.msra.mxu0 %v2202
    %2206 = vmatprep.subr.bf16.mxu0 0
    %2207 = vmatpush1.bf16.xpose.msra.mxu0 0
    %2208 = vmatprep.subr.bf16.mxu0 0
    %2209 = vmatpush1.bf16.xpose.msra.mxu0 0
    %2210 = vmatprep.subr.bf16.mxu0 0
    %2211 = vmatpush1.bf16.xpose.msra.mxu0 0
    %2212 = vmatprep.subr.bf16.mxu0 0
    %2213 = vmatpush1.bf16.xpose.msra.mxu0 0
    %2214 = vmatprep.subr.bf16.mxu0 0
    %2215 = vmatpush1.bf16.xpose.msra.mxu0 0
    %2216 = vmatprep.subr.bf16.mxu0 0
    %2217 = vmatpush1.bf16.xpose.msra.mxu0 0
    %2218 = vmatprep.subr.bf16.mxu0 0
    %2219 = vmatpush1.bf16.xpose.msra.mxu0 0
    %2220 = vmatprep.subr.bf16.mxu0 0
    %2221 = vmatpush1.bf16.xpose.msra.mxu0 0
    %2222 = vmatprep.subr.bf16.mxu0 0
    %2223 = vmatpush1.bf16.xpose.msra.mxu0 0
    %2224 = vmatprep.subr.bf16.mxu0 0
    %2225 = vmatpush1.bf16.xpose.msra.mxu0 0
    %2226 = vmatprep.subr.bf16.mxu0 0
    %2227 = vmatpush1.bf16.xpose.msra.mxu0 0
    %2228 = vmatprep.subr.bf16.mxu0 0
    %2229 = vmatpush1.bf16.xpose.msra.mxu0 0
    %2230 = vmatprep.subr.bf16.mxu0 0
    %2231 = vmatpush1.bf16.xpose.msra.mxu0 0
    %2232 = vmatprep.subr.bf16.mxu0 0
    %2233 = vmatpush1.bf16.xpose.msra.mxu0 0
    %2234 = vmatprep.subr.bf16.mxu0 0
    %2235 = vmatpush1.bf16.xpose.msra.mxu0 0
    %2236 = vmatprep.mubr.bf16.mxu0 0
    %2237 = vmatmul.mubr.bf16.gmra.mrb[0].mxu0 %v2199
    %v2238 = vpop.f32.mrb[0].mxu0
    %v2239 = vadd.f32 0.0, %v2238
    %v2240 = vpop.f32.mrb[0].mxu0
    %v2241 = vpop.f32.mrb[0].mxu0
    %v2242 = vpop.f32.mrb[0].mxu0
    %2243 = vdwg.mxu0
    %2244 = vrot.lane.b32.xlu0 %v1897, 104
    %v2245 = vpop.permute.xlu0 %2244
    %2246 = vrot.lane.b32.xlu0 %v1897, 72
    %v2247 = vpop.permute.xlu0 %2246
    %v2249 = vsel %vm456, %v2245, 0
    %v2252 = vsel %vm456, %v2247, 0
    %2254 = vmatprep.subr.bf16.mxu0 0
    %2255 = vmatpush1.bf16.xpose.msra.mxu0 %v2252
    %2256 = vmatprep.subr.bf16.mxu0 0
    %2257 = vmatpush1.bf16.xpose.msra.mxu0 0
    %2258 = vmatprep.subr.bf16.mxu0 0
    %2259 = vmatpush1.bf16.xpose.msra.mxu0 0
    %2260 = vmatprep.subr.bf16.mxu0 0
    %2261 = vmatpush1.bf16.xpose.msra.mxu0 0
    %2262 = vmatprep.subr.bf16.mxu0 0
    %2263 = vmatpush1.bf16.xpose.msra.mxu0 0
    %2264 = vmatprep.subr.bf16.mxu0 0
    %2265 = vmatpush1.bf16.xpose.msra.mxu0 0
    %2266 = vmatprep.subr.bf16.mxu0 0
    %2267 = vmatpush1.bf16.xpose.msra.mxu0 0
    %2268 = vmatprep.subr.bf16.mxu0 0
    %2269 = vmatpush1.bf16.xpose.msra.mxu0 0
    %2270 = vmatprep.subr.bf16.mxu0 0
    %2271 = vmatpush1.bf16.xpose.msra.mxu0 0
    %2272 = vmatprep.subr.bf16.mxu0 0
    %2273 = vmatpush1.bf16.xpose.msra.mxu0 0
    %2274 = vmatprep.subr.bf16.mxu0 0
    %2275 = vmatpush1.bf16.xpose.msra.mxu0 0
    %2276 = vmatprep.subr.bf16.mxu0 0
    %2277 = vmatpush1.bf16.xpose.msra.mxu0 0
    %2278 = vmatprep.subr.bf16.mxu0 0
    %2279 = vmatpush1.bf16.xpose.msra.mxu0 0
    %2280 = vmatprep.subr.bf16.mxu0 0
    %2281 = vmatpush1.bf16.xpose.msra.mxu0 0
    %2282 = vmatprep.subr.bf16.mxu0 0
    %2283 = vmatpush1.bf16.xpose.msra.mxu0 0
    %2284 = vmatprep.subr.bf16.mxu0 0
    %2285 = vmatpush1.bf16.xpose.msra.mxu0 0
    %2286 = vmatprep.mubr.bf16.mxu0 0
    %2287 = vmatmul.mubr.bf16.gmra.mrb[0].mxu0 %v2249
    %v2288 = vpop.f32.mrb[0].mxu0
    %v2289 = vadd.f32 0.0, %v2288
    %v2290 = vpop.f32.mrb[0].mxu0
    %v2291 = vpop.f32.mrb[0].mxu0
    %v2292 = vpop.f32.mrb[0].mxu0
    %2293 = vdwg.mxu0
    %v2294 = vmul.f32 %v1941, 0.35355338
    %v2295 = vmul.f32 %v1989, 0.35355338
    %v2296 = vmul.f32 %v2039, 0.35355338
    %v2297 = vmul.f32 %v2089, 0.35355338
    %v2298 = vmul.f32 %v2139, 0.35355338
    %v2299 = vmul.f32 %v2189, 0.35355338
    %v2300 = vmul.f32 %v2239, 0.35355338
    %v2301 = vmul.f32 %v2289, 0.35355338
    %v2302 = vsel %vm74, %v2294, -1e+30
    %v2303 = vsel %vm74, %v2295, -1e+30
    %v2304 = vsel %vm74, %v2296, -1e+30
    %v2305 = vsel %vm74, %v2297, -1e+30
    %v2306 = vsel %vm74, %v2298, -1e+30
    %v2307 = vsel %vm74, %v2299, -1e+30
    %v2308 = vsel %vm74, %v2300, -1e+30
    %v2309 = vsel %vm74, %v2301, -1e+30
    %v2310 = vsel %vm456, %v2302, -inf
    %2311 = vmax.xlane.f32.xlu0 %v2310
    %v2312 = vpop.xlane.xlu0 %2311
    %v2313 = vsel %vm456, %v2303, -inf
    %2314 = vmax.xlane.f32.xlu0 %v2313
    %v2315 = vpop.xlane.xlu0 %2314
    %v2316 = vsel %vm456, %v2304, -inf
    %2317 = vmax.xlane.f32.xlu0 %v2316
    %v2318 = vpop.xlane.xlu0 %2317
    %v2319 = vsel %vm456, %v2305, -inf
    %2320 = vmax.xlane.f32.xlu0 %v2319
    %v2321 = vpop.xlane.xlu0 %2320
    %v2322 = vsel %vm456, %v2306, -inf
    %2323 = vmax.xlane.f32.xlu0 %v2322
    %v2324 = vpop.xlane.xlu0 %2323
    %v2325 = vsel %vm456, %v2307, -inf
    %2326 = vmax.xlane.f32.xlu0 %v2325
    %v2327 = vpop.xlane.xlu0 %2326
    %v2328 = vsel %vm456, %v2308, -inf
    %2329 = vmax.xlane.f32.xlu0 %v2328
    %v2330 = vpop.xlane.xlu0 %2329
    %v2331 = vsel %vm456, %v2309, -inf
    %2332 = vmax.xlane.f32.xlu0 %v2331
    %v2333 = vpop.xlane.xlu0 %2332
    %v2334 = vsub.f32 %v2302, %v2312
    %v2335 = vsub.f32 %v2303, %v2315
    %v2336 = vsub.f32 %v2304, %v2318
    %v2337 = vsub.f32 %v2305, %v2321
    %v2338 = vsub.f32 %v2306, %v2324
    %v2339 = vsub.f32 %v2307, %v2327
    %v2340 = vsub.f32 %v2308, %v2330
    %v2341 = vsub.f32 %v2309, %v2333
    %v2342 = vmul.f32 %v2334, 1.442695
    %v2343 = vpow.pop %v2342
    %v2344 = vmul.f32 %v2335, 1.442695
    %v2345 = vpow.pop %v2344
    %v2346 = vmul.f32 %v2336, 1.442695
    %v2347 = vpow.pop %v2346
    %v2348 = vmul.f32 %v2337, 1.442695
    %v2349 = vpow.pop %v2348
    %v2350 = vmul.f32 %v2338, 1.442695
    %v2351 = vpow.pop %v2350
    %v2352 = vmul.f32 %v2339, 1.442695
    %v2353 = vpow.pop %v2352
    %v2354 = vmul.f32 %v2340, 1.442695
    %v2355 = vpow.pop %v2354
    %v2356 = vmul.f32 %v2341, 1.442695
    %v2357 = vpow.pop %v2356
    %v2358 = vsel %vm456, %v2343, 0.0
    %2359 = vadd.xlane.f32.xlu0 %v2358
    %v2360 = vpop.xlane.xlu0 %2359
    %v2361 = vsel %vm456, %v2345, 0.0
    %2362 = vadd.xlane.f32.xlu0 %v2361
    %v2363 = vpop.xlane.xlu0 %2362
    %v2364 = vsel %vm456, %v2347, 0.0
    %2365 = vadd.xlane.f32.xlu0 %v2364
    %v2366 = vpop.xlane.xlu0 %2365
    %v2367 = vsel %vm456, %v2349, 0.0
    %2368 = vadd.xlane.f32.xlu0 %v2367
    %v2369 = vpop.xlane.xlu0 %2368
    %v2370 = vsel %vm456, %v2351, 0.0
    %2371 = vadd.xlane.f32.xlu0 %v2370
    %v2372 = vpop.xlane.xlu0 %2371
    %v2373 = vsel %vm456, %v2353, 0.0
    %2374 = vadd.xlane.f32.xlu0 %v2373
    %v2375 = vpop.xlane.xlu0 %2374
    %v2376 = vsel %vm456, %v2355, 0.0
    %2377 = vadd.xlane.f32.xlu0 %v2376
    %v2378 = vpop.xlane.xlu0 %2377
    %v2379 = vsel %vm456, %v2357, 0.0
    %2380 = vadd.xlane.f32.xlu0 %v2379
    %v2381 = vpop.xlane.xlu0 %2380
    %v2382 = vrcp.pop %v2360
    %v2383 = vmul.f32 %v2343, %v2382
    %v2384 = vrcp.pop %v2363
    %v2385 = vmul.f32 %v2345, %v2384
    %v2386 = vrcp.pop %v2366
    %v2387 = vmul.f32 %v2347, %v2386
    %v2388 = vrcp.pop %v2369
    %v2389 = vmul.f32 %v2349, %v2388
    %v2390 = vrcp.pop %v2372
    %v2391 = vmul.f32 %v2351, %v2390
    %v2392 = vrcp.pop %v2375
    %v2393 = vmul.f32 %v2353, %v2392
    %v2394 = vrcp.pop %v2378
    %v2395 = vmul.f32 %v2355, %v2394
    %v2396 = vrcp.pop %v2381
    %v2397 = vmul.f32 %v2357, %v2396
    %v2398 = vpack.c.bf16 %v2383, %v2383
    %v2399 = vpack.c.bf16 %v2385, %v2385
    %v2400 = vpack.c.bf16 %v2387, %v2387
    %v2401 = vpack.c.bf16 %v2389, %v2389
    %v2402 = vpack.c.bf16 %v2391, %v2391
    %v2403 = vpack.c.bf16 %v2393, %v2393
    %v2404 = vpack.c.bf16 %v2395, %v2395
    %v2405 = vpack.c.bf16 %v2397, %v2397
    %2406 = vrot.lane.b32.xlu0 %v1896, 64
    %v2407 = vpop.permute.xlu0 %2406
    %v2409 = vsel %vm456, %v2398, 0
    %v2412 = vsel %vm968, %v2407, 0
    %2414 = vmatprep.subr.bf16.mxu0 0
    %2415 = vmatpush1.bf16.msra.mxu0 %v2412
    %2416 = vmatprep.subr.bf16.mxu0 0
    %2417 = vmatpush1.bf16.msra.mxu0 0
    %2418 = vmatprep.subr.bf16.mxu0 0
    %2419 = vmatpush1.bf16.msra.mxu0 0
    %2420 = vmatprep.subr.bf16.mxu0 0
    %2421 = vmatpush1.bf16.msra.mxu0 0
    %2422 = vmatprep.subr.bf16.mxu0 0
    %2423 = vmatpush1.bf16.msra.mxu0 0
    %2424 = vmatprep.subr.bf16.mxu0 0
    %2425 = vmatpush1.bf16.msra.mxu0 0
    %2426 = vmatprep.subr.bf16.mxu0 0
    %2427 = vmatpush1.bf16.msra.mxu0 0
    %2428 = vmatprep.subr.bf16.mxu0 0
    %2429 = vmatpush1.bf16.msra.mxu0 0
    %2430 = vmatprep.subr.bf16.mxu0 0
    %2431 = vmatpush1.bf16.msra.mxu0 0
    %2432 = vmatprep.subr.bf16.mxu0 0
    %2433 = vmatpush1.bf16.msra.mxu0 0
    %2434 = vmatprep.subr.bf16.mxu0 0
    %2435 = vmatpush1.bf16.msra.mxu0 0
    %2436 = vmatprep.subr.bf16.mxu0 0
    %2437 = vmatpush1.bf16.msra.mxu0 0
    %2438 = vmatprep.subr.bf16.mxu0 0
    %2439 = vmatpush1.bf16.msra.mxu0 0
    %2440 = vmatprep.subr.bf16.mxu0 0
    %2441 = vmatpush1.bf16.msra.mxu0 0
    %2442 = vmatprep.subr.bf16.mxu0 0
    %2443 = vmatpush1.bf16.msra.mxu0 0
    %2444 = vmatprep.subr.bf16.mxu0 0
    %2445 = vmatpush1.bf16.msra.mxu0 0
    %2446 = vmatprep.mubr.bf16.mxu0 0
    %2447 = vmatmul.mubr.bf16.gmra.mrb[0].mxu0 %v2409
    %v2448 = vpop.f32.mrb[0].mxu0
    %v2449 = vadd.f32 0.0, %v2448
    %v2450 = vpop.f32.mrb[0].mxu0
    %v2451 = vpop.f32.mrb[0].mxu0
    %v2452 = vpop.f32.mrb[0].mxu0
    %2453 = vdwg.mxu0
    %2454 = vrot.lane.b32.xlu0 %v1897, 64
    %v2455 = vpop.permute.xlu0 %2454
    %v2457 = vsel %vm456, %v2399, 0
    %v2460 = vsel %vm968, %v2455, 0
    %2462 = vmatprep.subr.bf16.mxu0 0
    %2463 = vmatpush1.bf16.msra.mxu0 %v2460
    %2464 = vmatprep.subr.bf16.mxu0 0
    %2465 = vmatpush1.bf16.msra.mxu0 0
    %2466 = vmatprep.subr.bf16.mxu0 0
    %2467 = vmatpush1.bf16.msra.mxu0 0
    %2468 = vmatprep.subr.bf16.mxu0 0
    %2469 = vmatpush1.bf16.msra.mxu0 0
    %2470 = vmatprep.subr.bf16.mxu0 0
    %2471 = vmatpush1.bf16.msra.mxu0 0
    %2472 = vmatprep.subr.bf16.mxu0 0
    %2473 = vmatpush1.bf16.msra.mxu0 0
    %2474 = vmatprep.subr.bf16.mxu0 0
    %2475 = vmatpush1.bf16.msra.mxu0 0
    %2476 = vmatprep.subr.bf16.mxu0 0
    %2477 = vmatpush1.bf16.msra.mxu0 0
    %2478 = vmatprep.subr.bf16.mxu0 0
    %2479 = vmatpush1.bf16.msra.mxu0 0
    %2480 = vmatprep.subr.bf16.mxu0 0
    %2481 = vmatpush1.bf16.msra.mxu0 0
    %2482 = vmatprep.subr.bf16.mxu0 0
    %2483 = vmatpush1.bf16.msra.mxu0 0
    %2484 = vmatprep.subr.bf16.mxu0 0
    %2485 = vmatpush1.bf16.msra.mxu0 0
    %2486 = vmatprep.subr.bf16.mxu0 0
    %2487 = vmatpush1.bf16.msra.mxu0 0
    %2488 = vmatprep.subr.bf16.mxu0 0
    %2489 = vmatpush1.bf16.msra.mxu0 0
    %2490 = vmatprep.subr.bf16.mxu0 0
    %2491 = vmatpush1.bf16.msra.mxu0 0
    %2492 = vmatprep.subr.bf16.mxu0 0
    %2493 = vmatpush1.bf16.msra.mxu0 0
    %2494 = vmatprep.mubr.bf16.mxu0 0
    %2495 = vmatmul.mubr.bf16.gmra.mrb[0].mxu0 %v2457
    %v2496 = vpop.f32.mrb[0].mxu0
    %v2497 = vadd.f32 0.0, %v2496
    %v2498 = vpop.f32.mrb[0].mxu0
    %v2499 = vpop.f32.mrb[0].mxu0
    %v2500 = vpop.f32.mrb[0].mxu0
    %2501 = vdwg.mxu0
    %2502 = vrot.lane.b32.xlu0 %v1896, 56
    %v2503 = vpop.permute.xlu0 %2502
    %v2505 = vsel %vm456, %v2400, 0
    %v2508 = vsel %vm968, %v2503, 0
    %2510 = vmatprep.subr.bf16.mxu0 0
    %2511 = vmatpush1.bf16.msra.mxu0 %v2508
    %2512 = vmatprep.subr.bf16.mxu0 0
    %2513 = vmatpush1.bf16.msra.mxu0 0
    %2514 = vmatprep.subr.bf16.mxu0 0
    %2515 = vmatpush1.bf16.msra.mxu0 0
    %2516 = vmatprep.subr.bf16.mxu0 0
    %2517 = vmatpush1.bf16.msra.mxu0 0
    %2518 = vmatprep.subr.bf16.mxu0 0
    %2519 = vmatpush1.bf16.msra.mxu0 0
    %2520 = vmatprep.subr.bf16.mxu0 0
    %2521 = vmatpush1.bf16.msra.mxu0 0
    %2522 = vmatprep.subr.bf16.mxu0 0
    %2523 = vmatpush1.bf16.msra.mxu0 0
    %2524 = vmatprep.subr.bf16.mxu0 0
    %2525 = vmatpush1.bf16.msra.mxu0 0
    %2526 = vmatprep.subr.bf16.mxu0 0
    %2527 = vmatpush1.bf16.msra.mxu0 0
    %2528 = vmatprep.subr.bf16.mxu0 0
    %2529 = vmatpush1.bf16.msra.mxu0 0
    %2530 = vmatprep.subr.bf16.mxu0 0
    %2531 = vmatpush1.bf16.msra.mxu0 0
    %2532 = vmatprep.subr.bf16.mxu0 0
    %2533 = vmatpush1.bf16.msra.mxu0 0
    %2534 = vmatprep.subr.bf16.mxu0 0
    %2535 = vmatpush1.bf16.msra.mxu0 0
    %2536 = vmatprep.subr.bf16.mxu0 0
    %2537 = vmatpush1.bf16.msra.mxu0 0
    %2538 = vmatprep.subr.bf16.mxu0 0
    %2539 = vmatpush1.bf16.msra.mxu0 0
    %2540 = vmatprep.subr.bf16.mxu0 0
    %2541 = vmatpush1.bf16.msra.mxu0 0
    %2542 = vmatprep.mubr.bf16.mxu0 0
    %2543 = vmatmul.mubr.bf16.gmra.mrb[0].mxu0 %v2505
    %v2544 = vpop.f32.mrb[0].mxu0
    %v2545 = vadd.f32 0.0, %v2544
    %v2546 = vpop.f32.mrb[0].mxu0
    %v2547 = vpop.f32.mrb[0].mxu0
    %v2548 = vpop.f32.mrb[0].mxu0
    %2549 = vdwg.mxu0
    %2550 = vrot.lane.b32.xlu0 %v1897, 56
    %v2551 = vpop.permute.xlu0 %2550
    %v2553 = vsel %vm456, %v2401, 0
    %v2556 = vsel %vm968, %v2551, 0
    %2558 = vmatprep.subr.bf16.mxu0 0
    %2559 = vmatpush1.bf16.msra.mxu0 %v2556
    %2560 = vmatprep.subr.bf16.mxu0 0
    %2561 = vmatpush1.bf16.msra.mxu0 0
    %2562 = vmatprep.subr.bf16.mxu0 0
    %2563 = vmatpush1.bf16.msra.mxu0 0
    %2564 = vmatprep.subr.bf16.mxu0 0
    %2565 = vmatpush1.bf16.msra.mxu0 0
    %2566 = vmatprep.subr.bf16.mxu0 0
    %2567 = vmatpush1.bf16.msra.mxu0 0
    %2568 = vmatprep.subr.bf16.mxu0 0
    %2569 = vmatpush1.bf16.msra.mxu0 0
    %2570 = vmatprep.subr.bf16.mxu0 0
    %2571 = vmatpush1.bf16.msra.mxu0 0
    %2572 = vmatprep.subr.bf16.mxu0 0
    %2573 = vmatpush1.bf16.msra.mxu0 0
    %2574 = vmatprep.subr.bf16.mxu0 0
    %2575 = vmatpush1.bf16.msra.mxu0 0
    %2576 = vmatprep.subr.bf16.mxu0 0
    %2577 = vmatpush1.bf16.msra.mxu0 0
    %2578 = vmatprep.subr.bf16.mxu0 0
    %2579 = vmatpush1.bf16.msra.mxu0 0
    %2580 = vmatprep.subr.bf16.mxu0 0
    %2581 = vmatpush1.bf16.msra.mxu0 0
    %2582 = vmatprep.subr.bf16.mxu0 0
    %2583 = vmatpush1.bf16.msra.mxu0 0
    %2584 = vmatprep.subr.bf16.mxu0 0
    %2585 = vmatpush1.bf16.msra.mxu0 0
    %2586 = vmatprep.subr.bf16.mxu0 0
    %2587 = vmatpush1.bf16.msra.mxu0 0
    %2588 = vmatprep.subr.bf16.mxu0 0
    %2589 = vmatpush1.bf16.msra.mxu0 0
    %2590 = vmatprep.mubr.bf16.mxu0 0
    %2591 = vmatmul.mubr.bf16.gmra.mrb[0].mxu0 %v2553
    %v2592 = vpop.f32.mrb[0].mxu0
    %v2593 = vadd.f32 0.0, %v2592
    %v2594 = vpop.f32.mrb[0].mxu0
    %v2595 = vpop.f32.mrb[0].mxu0
    %v2596 = vpop.f32.mrb[0].mxu0
    %2597 = vdwg.mxu0
    %2598 = vrot.lane.b32.xlu0 %v1896, 48
    %v2599 = vpop.permute.xlu0 %2598
    %v2601 = vsel %vm456, %v2402, 0
    %v2604 = vsel %vm968, %v2599, 0
    %2606 = vmatprep.subr.bf16.mxu0 0
    %2607 = vmatpush1.bf16.msra.mxu0 %v2604
    %2608 = vmatprep.subr.bf16.mxu0 0
    %2609 = vmatpush1.bf16.msra.mxu0 0
    %2610 = vmatprep.subr.bf16.mxu0 0
    %2611 = vmatpush1.bf16.msra.mxu0 0
    %2612 = vmatprep.subr.bf16.mxu0 0
    %2613 = vmatpush1.bf16.msra.mxu0 0
    %2614 = vmatprep.subr.bf16.mxu0 0
    %2615 = vmatpush1.bf16.msra.mxu0 0
    %2616 = vmatprep.subr.bf16.mxu0 0
    %2617 = vmatpush1.bf16.msra.mxu0 0
    %2618 = vmatprep.subr.bf16.mxu0 0
    %2619 = vmatpush1.bf16.msra.mxu0 0
    %2620 = vmatprep.subr.bf16.mxu0 0
    %2621 = vmatpush1.bf16.msra.mxu0 0
    %2622 = vmatprep.subr.bf16.mxu0 0
    %2623 = vmatpush1.bf16.msra.mxu0 0
    %2624 = vmatprep.subr.bf16.mxu0 0
    %2625 = vmatpush1.bf16.msra.mxu0 0
    %2626 = vmatprep.subr.bf16.mxu0 0
    %2627 = vmatpush1.bf16.msra.mxu0 0
    %2628 = vmatprep.subr.bf16.mxu0 0
    %2629 = vmatpush1.bf16.msra.mxu0 0
    %2630 = vmatprep.subr.bf16.mxu0 0
    %2631 = vmatpush1.bf16.msra.mxu0 0
    %2632 = vmatprep.subr.bf16.mxu0 0
    %2633 = vmatpush1.bf16.msra.mxu0 0
    %2634 = vmatprep.subr.bf16.mxu0 0
    %2635 = vmatpush1.bf16.msra.mxu0 0
    %2636 = vmatprep.subr.bf16.mxu0 0
    %2637 = vmatpush1.bf16.msra.mxu0 0
    %2638 = vmatprep.mubr.bf16.mxu0 0
    %2639 = vmatmul.mubr.bf16.gmra.mrb[0].mxu0 %v2601
    %v2640 = vpop.f32.mrb[0].mxu0
    %v2641 = vadd.f32 0.0, %v2640
    %v2642 = vpop.f32.mrb[0].mxu0
    %v2643 = vpop.f32.mrb[0].mxu0
    %v2644 = vpop.f32.mrb[0].mxu0
    %2645 = vdwg.mxu0
    %2646 = vrot.lane.b32.xlu0 %v1897, 48
    %v2647 = vpop.permute.xlu0 %2646
    %v2649 = vsel %vm456, %v2403, 0
    %v2652 = vsel %vm968, %v2647, 0
    %2654 = vmatprep.subr.bf16.mxu0 0
    %2655 = vmatpush1.bf16.msra.mxu0 %v2652
    %2656 = vmatprep.subr.bf16.mxu0 0
    %2657 = vmatpush1.bf16.msra.mxu0 0
    %2658 = vmatprep.subr.bf16.mxu0 0
    %2659 = vmatpush1.bf16.msra.mxu0 0
    %2660 = vmatprep.subr.bf16.mxu0 0
    %2661 = vmatpush1.bf16.msra.mxu0 0
    %2662 = vmatprep.subr.bf16.mxu0 0
    %2663 = vmatpush1.bf16.msra.mxu0 0
    %2664 = vmatprep.subr.bf16.mxu0 0
    %2665 = vmatpush1.bf16.msra.mxu0 0
    %2666 = vmatprep.subr.bf16.mxu0 0
    %2667 = vmatpush1.bf16.msra.mxu0 0
    %2668 = vmatprep.subr.bf16.mxu0 0
    %2669 = vmatpush1.bf16.msra.mxu0 0
    %2670 = vmatprep.subr.bf16.mxu0 0
    %2671 = vmatpush1.bf16.msra.mxu0 0
    %2672 = vmatprep.subr.bf16.mxu0 0
    %2673 = vmatpush1.bf16.msra.mxu0 0
    %2674 = vmatprep.subr.bf16.mxu0 0
    %2675 = vmatpush1.bf16.msra.mxu0 0
    %2676 = vmatprep.subr.bf16.mxu0 0
    %2677 = vmatpush1.bf16.msra.mxu0 0
    %2678 = vmatprep.subr.bf16.mxu0 0
    %2679 = vmatpush1.bf16.msra.mxu0 0
    %2680 = vmatprep.subr.bf16.mxu0 0
    %2681 = vmatpush1.bf16.msra.mxu0 0
    %2682 = vmatprep.subr.bf16.mxu0 0
    %2683 = vmatpush1.bf16.msra.mxu0 0
    %2684 = vmatprep.subr.bf16.mxu0 0
    %2685 = vmatpush1.bf16.msra.mxu0 0
    %2686 = vmatprep.mubr.bf16.mxu0 0
    %2687 = vmatmul.mubr.bf16.gmra.mrb[0].mxu0 %v2649
    %v2688 = vpop.f32.mrb[0].mxu0
    %v2689 = vadd.f32 0.0, %v2688
    %v2690 = vpop.f32.mrb[0].mxu0
    %v2691 = vpop.f32.mrb[0].mxu0
    %v2692 = vpop.f32.mrb[0].mxu0
    %2693 = vdwg.mxu0
    %2694 = vrot.lane.b32.xlu0 %v1896, 40
    %v2695 = vpop.permute.xlu0 %2694
    %v2697 = vsel %vm456, %v2404, 0
    %v2700 = vsel %vm968, %v2695, 0
    %2702 = vmatprep.subr.bf16.mxu0 0
    %2703 = vmatpush1.bf16.msra.mxu0 %v2700
    %2704 = vmatprep.subr.bf16.mxu0 0
    %2705 = vmatpush1.bf16.msra.mxu0 0
    %2706 = vmatprep.subr.bf16.mxu0 0
    %2707 = vmatpush1.bf16.msra.mxu0 0
    %2708 = vmatprep.subr.bf16.mxu0 0
    %2709 = vmatpush1.bf16.msra.mxu0 0
    %2710 = vmatprep.subr.bf16.mxu0 0
    %2711 = vmatpush1.bf16.msra.mxu0 0
    %2712 = vmatprep.subr.bf16.mxu0 0
    %2713 = vmatpush1.bf16.msra.mxu0 0
    %2714 = vmatprep.subr.bf16.mxu0 0
    %2715 = vmatpush1.bf16.msra.mxu0 0
    %2716 = vmatprep.subr.bf16.mxu0 0
    %2717 = vmatpush1.bf16.msra.mxu0 0
    %2718 = vmatprep.subr.bf16.mxu0 0
    %2719 = vmatpush1.bf16.msra.mxu0 0
    %2720 = vmatprep.subr.bf16.mxu0 0
    %2721 = vmatpush1.bf16.msra.mxu0 0
    %2722 = vmatprep.subr.bf16.mxu0 0
    %2723 = vmatpush1.bf16.msra.mxu0 0
    %2724 = vmatprep.subr.bf16.mxu0 0
    %2725 = vmatpush1.bf16.msra.mxu0 0
    %2726 = vmatprep.subr.bf16.mxu0 0
    %2727 = vmatpush1.bf16.msra.mxu0 0
    %2728 = vmatprep.subr.bf16.mxu0 0
    %2729 = vmatpush1.bf16.msra.mxu0 0
    %2730 = vmatprep.subr.bf16.mxu0 0
    %2731 = vmatpush1.bf16.msra.mxu0 0
    %2732 = vmatprep.subr.bf16.mxu0 0
    %2733 = vmatpush1.bf16.msra.mxu0 0
    %2734 = vmatprep.mubr.bf16.mxu0 0
    %2735 = vmatmul.mubr.bf16.gmra.mrb[0].mxu0 %v2697
    %v2736 = vpop.f32.mrb[0].mxu0
    %v2737 = vadd.f32 0.0, %v2736
    %v2738 = vpop.f32.mrb[0].mxu0
    %v2739 = vpop.f32.mrb[0].mxu0
    %v2740 = vpop.f32.mrb[0].mxu0
    %2741 = vdwg.mxu0
    %2742 = vrot.lane.b32.xlu0 %v1897, 40
    %v2743 = vpop.permute.xlu0 %2742
    %v2745 = vsel %vm456, %v2405, 0
    %v2748 = vsel %vm968, %v2743, 0
    %2750 = vmatprep.subr.bf16.mxu0 0
    %2751 = vmatpush1.bf16.msra.mxu0 %v2748
    %2752 = vmatprep.subr.bf16.mxu0 0
    %2753 = vmatpush1.bf16.msra.mxu0 0
    %2754 = vmatprep.subr.bf16.mxu0 0
    %2755 = vmatpush1.bf16.msra.mxu0 0
    %2756 = vmatprep.subr.bf16.mxu0 0
    %2757 = vmatpush1.bf16.msra.mxu0 0
    %2758 = vmatprep.subr.bf16.mxu0 0
    %2759 = vmatpush1.bf16.msra.mxu0 0
    %2760 = vmatprep.subr.bf16.mxu0 0
    %2761 = vmatpush1.bf16.msra.mxu0 0
    %2762 = vmatprep.subr.bf16.mxu0 0
    %2763 = vmatpush1.bf16.msra.mxu0 0
    %2764 = vmatprep.subr.bf16.mxu0 0
    %2765 = vmatpush1.bf16.msra.mxu0 0
    %2766 = vmatprep.subr.bf16.mxu0 0
    %2767 = vmatpush1.bf16.msra.mxu0 0
    %2768 = vmatprep.subr.bf16.mxu0 0
    %2769 = vmatpush1.bf16.msra.mxu0 0
    %2770 = vmatprep.subr.bf16.mxu0 0
    %2771 = vmatpush1.bf16.msra.mxu0 0
    %2772 = vmatprep.subr.bf16.mxu0 0
    %2773 = vmatpush1.bf16.msra.mxu0 0
    %2774 = vmatprep.subr.bf16.mxu0 0
    %2775 = vmatpush1.bf16.msra.mxu0 0
    %2776 = vmatprep.subr.bf16.mxu0 0
    %2777 = vmatpush1.bf16.msra.mxu0 0
    %2778 = vmatprep.subr.bf16.mxu0 0
    %2779 = vmatpush1.bf16.msra.mxu0 0
    %2780 = vmatprep.subr.bf16.mxu0 0
    %2781 = vmatpush1.bf16.msra.mxu0 0
    %2782 = vmatprep.mubr.bf16.mxu0 0
    %2783 = vmatmul.mubr.bf16.gmra.mrb[0].mxu0 %v2745
    %v2784 = vpop.f32.mrb[0].mxu0
    %v2785 = vadd.f32 0.0, %v2784
    %v2786 = vpop.f32.mrb[0].mxu0
    %v2787 = vpop.f32.mrb[0].mxu0
    %v2788 = vpop.f32.mrb[0].mxu0
    %2789 = vdwg.mxu0
    %2792 = vrot.lane.b32.xlu0 %v2545, 8
    %v2793 = vpop.permute.xlu0 %2792
    %2794 = vrot.lane.b32.xlu0 %v2593, 8
    %v2795 = vpop.permute.xlu0 %2794
    %2800 = vrot.lane.b32.xlu0 %v2641, 16
    %v2801 = vpop.permute.xlu0 %2800
    %2802 = vrot.lane.b32.xlu0 %v2689, 16
    %v2803 = vpop.permute.xlu0 %2802
    %2808 = vrot.lane.b32.xlu0 %v2737, 24
    %v2809 = vpop.permute.xlu0 %2808
    %2810 = vrot.lane.b32.xlu0 %v2785, 24
    %v2811 = vpop.permute.xlu0 %2810
    %v2814 = vsel %vm456, %v2449, %v2793
    %v2815 = vsel %vm456, %v2497, %v2795
    %v2816 = vsel %vm1374, %v2814, %v2801
    %v2817 = vsel %vm1374, %v2815, %v2803
    %v2818 = vsel %vm1377, %v2816, %v2809
    %v2819 = vsel %vm1377, %v2817, %v2811
    %v2820 = vpack.c.bf16 %v2819, %v2818
    %s2821 = scalar_lea.vmem %s9, 16
    %v2822 = vld [vmem:[%s2821] sm:$0xf]
    %v2823 = vld [vmem:[%s2821 + $0x4] sm:$0xf]
    %v2824 = vld [vmem:[%s2821 + $0x8] sm:$0xf]
    %v2825 = vld [vmem:[%s2821 + $0xc] sm:$0xf]
    %s2826 = scalar_lea.vmem %s10, 1
    %v2827 = vld [vmem:[%s2826] sm:$0x1]
    %v2829 = vlaneseq
    %v2830 = vshrl.u32 %v2829, 7
    %v2831 = vsub.s32 0, %v2830
    %v2832 = vrot.slane %v2827, %v2831
    %v2838 = vunpack.c.l.b16 %v2822
    %v2839 = vunpack.c.l.b16 %v2823
    %v2840 = vunpack.c.l.b16 %v2824
    %v2841 = vunpack.c.l.b16 %v2825
    %v2842 = vpack.c.b16 %v2839, %v2838
    %v2843 = vpack.c.b16 %v2841, %v2840
    %v2847 = vsel %vm226, %v2820, 0
    %2849 = vmatprep.subr.bf16.mxu0 0
    %2850 = vmatpush1.bf16.msra.mxu0 %v2842
    %2851 = vmatprep.subr.bf16.mxu0 0
    %2852 = vmatpush1.bf16.msra.mxu0 %v2843
    %2853 = vmatprep.subr.bf16.mxu0 0
    %2854 = vmatpush1.bf16.msra.mxu0 0
    %2855 = vmatprep.subr.bf16.mxu0 0
    %2856 = vmatpush1.bf16.msra.mxu0 0
    %2857 = vmatprep.subr.bf16.mxu0 0
    %2858 = vmatpush1.bf16.msra.mxu0 0
    %2859 = vmatprep.subr.bf16.mxu0 0
    %2860 = vmatpush1.bf16.msra.mxu0 0
    %2861 = vmatprep.subr.bf16.mxu0 0
    %2862 = vmatpush1.bf16.msra.mxu0 0
    %2863 = vmatprep.subr.bf16.mxu0 0
    %2864 = vmatpush1.bf16.msra.mxu0 0
    %2865 = vmatprep.subr.bf16.mxu0 0
    %2866 = vmatpush1.bf16.msra.mxu0 0
    %2867 = vmatprep.subr.bf16.mxu0 0
    %2868 = vmatpush1.bf16.msra.mxu0 0
    %2869 = vmatprep.subr.bf16.mxu0 0
    %2870 = vmatpush1.bf16.msra.mxu0 0
    %2871 = vmatprep.subr.bf16.mxu0 0
    %2872 = vmatpush1.bf16.msra.mxu0 0
    %2873 = vmatprep.subr.bf16.mxu0 0
    %2874 = vmatpush1.bf16.msra.mxu0 0
    %2875 = vmatprep.subr.bf16.mxu0 0
    %2876 = vmatpush1.bf16.msra.mxu0 0
    %2877 = vmatprep.subr.bf16.mxu0 0
    %2878 = vmatpush1.bf16.msra.mxu0 0
    %2879 = vmatprep.subr.bf16.mxu0 0
    %2880 = vmatpush1.bf16.msra.mxu0 0
    %2881 = vmatprep.mubr.bf16.mxu0 0
    %2882 = vmatmul.mubr.bf16.gmra.mrb[0].mxu0 %v2847
    %v2883 = vpop.f32.mrb[0].mxu0
    %v2884 = vadd.f32 %v2832, %v2883
    %v2885 = vpop.f32.mrb[0].mxu0
    %v2886 = vpop.f32.mrb[0].mxu0
    %v2887 = vadd.f32 %v2832, %v2886
    %v2888 = vpop.f32.mrb[0].mxu0
    %2889 = vdwg.mxu0
    %v2890 = vadd.f32 %v1664, %v2884
    %v2891 = vadd.f32 %v1665, %v2887
    %v2892 = vadd.f32 %v2383, %v2387
    %v2893 = vadd.f32 %v2385, %v2389
    %v2894 = vadd.f32 %v2892, %v2391
    %v2895 = vadd.f32 %v2893, %v2393
    %v2896 = vadd.f32 %v2894, %v2395
    %v2897 = vadd.f32 %v2895, %v2397
    %v2898 = vmul.f32 %v2896, 0.25
    %v2899 = vmul.f32 %v2897, 0.25
    %2900 = vst.msk [vmem:[%s22] sm:$0xff] %vm456, %v2898
    %2901 = vst.msk [vmem:[%s22 + $0x8] sm:$0xff] %vm456, %v2899
    %s2902 = scalar_lea.vmem %s11, 1
    %v2903 = vld [vmem:[%s2902] sm:$0x1]
    %s2904 = scalar_lea.vmem %s12, 1
    %v2905 = vld [vmem:[%s2904] sm:$0x1]
    %v2906 = vsel %vm226, %v2890, 0.0
    %2907 = vadd.xlane.f32.xlu0 %v2906
    %v2908 = vpop.xlane.xlu0 %2907
    %v2909 = vsel %vm226, %v2891, 0.0
    %2910 = vadd.xlane.f32.xlu0 %v2909
    %v2911 = vpop.xlane.xlu0 %2910
    %v2912 = vmul.f32 %v2908, %v233
    %v2913 = vmul.f32 %v2911, %v233
    %v2914 = vsub.f32 %v2890, %v2912
    %v2915 = vsub.f32 %v2891, %v2913
    %v2916 = vmul.f32 %v2914, %v2914
    %v2917 = vmul.f32 %v2915, %v2915
    %v2918 = vsel %vm226, %v2916, 0.0
    %2919 = vadd.xlane.f32.xlu0 %v2918
    %v2920 = vpop.xlane.xlu0 %2919
    %v2921 = vsel %vm226, %v2917, 0.0
    %2922 = vadd.xlane.f32.xlu0 %v2921
    %v2923 = vpop.xlane.xlu0 %2922
    %v2924 = vmul.f32 %v2920, %v233
    %v2925 = vmul.f32 %v2923, %v233
    %v2926 = vadd.f32 %v2924, 1e-06
    %v2927 = vadd.f32 %v2925, 1e-06
    %v2928 = vrsqrt.pop %v2926
    %v2929 = vrsqrt.pop %v2927
    %v2930 = vmul.f32 %v2914, %v2928
    %v2931 = vmul.f32 %v2915, %v2929
    %v2933 = vlaneseq
    %v2934 = vshrl.u32 %v2933, 7
    %v2935 = vsub.s32 0, %v2934
    %v2936 = vrot.slane %v2903, %v2935
    %v2938 = vmul.f32 %v2930, %v2936
    %v2939 = vmul.f32 %v2931, %v2936
    %v2941 = vlaneseq
    %v2942 = vshrl.u32 %v2941, 7
    %v2943 = vsub.s32 0, %v2942
    %v2944 = vrot.slane %v2905, %v2943
    %v2946 = vadd.f32 %v2938, %v2944
    %v2947 = vadd.f32 %v2939, %v2944
    %v2948 = vpack.c.bf16 %v2947, %v2946
    %s2949 = scalar_lea.vmem %s13, 16
    %v2950 = vld [vmem:[%s2949] sm:$0xf]
    %v2951 = vld [vmem:[%s2949 + $0x4] sm:$0xf]
    %v2952 = vld [vmem:[%s2949 + $0x8] sm:$0xf]
    %v2953 = vld [vmem:[%s2949 + $0xc] sm:$0xf]
    %s2954 = scalar_lea.vmem %s14, 1
    %v2955 = vld [vmem:[%s2954] sm:$0x1]
    %v2957 = vlaneseq
    %v2958 = vshrl.u32 %v2957, 7
    %v2959 = vsub.s32 0, %v2958
    %v2960 = vrot.slane %v2955, %v2959
    %v2966 = vunpack.c.l.b16 %v2950
    %v2967 = vunpack.c.l.b16 %v2951
    %v2968 = vunpack.c.l.b16 %v2952
    %v2969 = vunpack.c.l.b16 %v2953
    %v2970 = vpack.c.b16 %v2967, %v2966
    %v2971 = vpack.c.b16 %v2969, %v2968
    %v2975 = vsel %vm226, %v2948, 0
    %2977 = vmatprep.subr.bf16.mxu0 0
    %2978 = vmatpush1.bf16.msra.mxu0 %v2970
    %2979 = vmatprep.subr.bf16.mxu0 0
    %2980 = vmatpush1.bf16.msra.mxu0 %v2971
    %2981 = vmatprep.subr.bf16.mxu0 0
    %2982 = vmatpush1.bf16.msra.mxu0 0
    %2983 = vmatprep.subr.bf16.mxu0 0
    %2984 = vmatpush1.bf16.msra.mxu0 0
    %2985 = vmatprep.subr.bf16.mxu0 0
    %2986 = vmatpush1.bf16.msra.mxu0 0
    %2987 = vmatprep.subr.bf16.mxu0 0
    %2988 = vmatpush1.bf16.msra.mxu0 0
    %2989 = vmatprep.subr.bf16.mxu0 0
    %2990 = vmatpush1.bf16.msra.mxu0 0
    %2991 = vmatprep.subr.bf16.mxu0 0
    %2992 = vmatpush1.bf16.msra.mxu0 0
    %2993 = vmatprep.subr.bf16.mxu0 0
    %2994 = vmatpush1.bf16.msra.mxu0 0
    %2995 = vmatprep.subr.bf16.mxu0 0
    %2996 = vmatpush1.bf16.msra.mxu0 0
    %2997 = vmatprep.subr.bf16.mxu0 0
    %2998 = vmatpush1.bf16.msra.mxu0 0
    %2999 = vmatprep.subr.bf16.mxu0 0
    %3000 = vmatpush1.bf16.msra.mxu0 0
    %3001 = vmatprep.subr.bf16.mxu0 0
    %3002 = vmatpush1.bf16.msra.mxu0 0
    %3003 = vmatprep.subr.bf16.mxu0 0
    %3004 = vmatpush1.bf16.msra.mxu0 0
    %3005 = vmatprep.subr.bf16.mxu0 0
    %3006 = vmatpush1.bf16.msra.mxu0 0
    %3007 = vmatprep.subr.bf16.mxu0 0
    %3008 = vmatpush1.bf16.msra.mxu0 0
    %3009 = vmatprep.mubr.bf16.mxu0 0
    %3010 = vmatmul.mubr.bf16.gmra.mrb[0].mxu0 %v2975
    %v3011 = vpop.f32.mrb[0].mxu0
    %v3012 = vadd.f32 %v2960, %v3011
    %v3013 = vpop.f32.mrb[0].mxu0
    %v3014 = vpop.f32.mrb[0].mxu0
    %v3015 = vadd.f32 %v2960, %v3014
    %v3016 = vpop.f32.mrb[0].mxu0
    %3017 = vdwg.mxu0
    %v3018 = vmul.f32 %v3012, 0.5
    %v3019 = vmul.f32 %v3015, 0.5
    %v3020 = vmul.f32 %v3012, 0.044715
    %v3021 = vmul.f32 %v3015, 0.044715
    %v3022 = vmul.f32 %v3020, %v3012
    %v3023 = vmul.f32 %v3021, %v3015
    %v3024 = vmul.f32 %v3022, %v3012
    %v3025 = vmul.f32 %v3023, %v3015
    %v3026 = vadd.f32 %v3012, %v3024
    %v3027 = vadd.f32 %v3015, %v3025
    %v3028 = vmul.f32 %v3026, 0.7978846
    %v3029 = vmul.f32 %v3027, 0.7978846
    %v3030 = vtanh.pop %v3028
    %v3031 = vtanh.pop %v3029
    %v3032 = vadd.f32 %v3030, 1.0
    %v3033 = vadd.f32 %v3031, 1.0
    %v3034 = vmul.f32 %v3018, %v3032
    %v3035 = vmul.f32 %v3019, %v3033
    %v3036 = vpack.c.bf16 %v3035, %v3034
    %s3037 = scalar_lea.vmem %s15, 32
    %v3038 = vld [vmem:[%s3037] sm:$0xf]
    %v3039 = vld [vmem:[%s3037 + $0x4] sm:$0xf]
    %v3040 = vld [vmem:[%s3037 + $0x8] sm:$0xf]
    %v3041 = vld [vmem:[%s3037 + $0xc] sm:$0xf]
    %v3042 = vld [vmem:[%s3037 + $0x10] sm:$0xf]
    %v3043 = vld [vmem:[%s3037 + $0x14] sm:$0xf]
    %v3044 = vld [vmem:[%s3037 + $0x18] sm:$0xf]
    %v3045 = vld [vmem:[%s3037 + $0x1c] sm:$0xf]
    %s3046 = scalar_lea.vmem %s16, 1
    %v3047 = vld [vmem:[%s3046] sm:$0x1]
    %v3049 = vlaneseq
    %v3050 = vshrl.u32 %v3049, 7
    %v3051 = vsub.s32 0, %v3050
    %v3052 = vrot.slane %v3047, %v3051
    %v3062 = vunpack.c.l.b16 %v3038
    %v3063 = vunpack.c.l.b16 %v3039
    %v3064 = vunpack.c.l.b16 %v3040
    %v3065 = vunpack.c.l.b16 %v3041
    %v3066 = vunpack.c.l.b16 %v3042
    %v3067 = vunpack.c.l.b16 %v3043
    %v3068 = vunpack.c.l.b16 %v3044
    %v3069 = vunpack.c.l.b16 %v3045
    %v3070 = vpack.c.b16 %v3063, %v3062
    %v3071 = vpack.c.b16 %v3065, %v3064
    %v3072 = vpack.c.b16 %v3067, %v3066
    %v3073 = vpack.c.b16 %v3069, %v3068
    %v3079 = vsel %vm179, %v3036, 0
    %3081 = vmatprep.subr.bf16.mxu0 0
    %3082 = vmatpush1.bf16.msra.mxu0 %v3070
    %3083 = vmatprep.subr.bf16.mxu0 0
    %3084 = vmatpush1.bf16.msra.mxu0 %v3071
    %3085 = vmatprep.subr.bf16.mxu0 0
    %3086 = vmatpush1.bf16.msra.mxu0 %v3072
    %3087 = vmatprep.subr.bf16.mxu0 0
    %3088 = vmatpush1.bf16.msra.mxu0 %v3073
    %3089 = vmatprep.subr.bf16.mxu0 0
    %3090 = vmatpush1.bf16.msra.mxu0 0
    %3091 = vmatprep.subr.bf16.mxu0 0
    %3092 = vmatpush1.bf16.msra.mxu0 0
    %3093 = vmatprep.subr.bf16.mxu0 0
    %3094 = vmatpush1.bf16.msra.mxu0 0
    %3095 = vmatprep.subr.bf16.mxu0 0
    %3096 = vmatpush1.bf16.msra.mxu0 0
    %3097 = vmatprep.subr.bf16.mxu0 0
    %3098 = vmatpush1.bf16.msra.mxu0 0
    %3099 = vmatprep.subr.bf16.mxu0 0
    %3100 = vmatpush1.bf16.msra.mxu0 0
    %3101 = vmatprep.subr.bf16.mxu0 0
    %3102 = vmatpush1.bf16.msra.mxu0 0
    %3103 = vmatprep.subr.bf16.mxu0 0
    %3104 = vmatpush1.bf16.msra.mxu0 0
    %3105 = vmatprep.subr.bf16.mxu0 0
    %3106 = vmatpush1.bf16.msra.mxu0 0
    %3107 = vmatprep.subr.bf16.mxu0 0
    %3108 = vmatpush1.bf16.msra.mxu0 0
    %3109 = vmatprep.subr.bf16.mxu0 0
    %3110 = vmatpush1.bf16.msra.mxu0 0
    %3111 = vmatprep.subr.bf16.mxu0 0
    %3112 = vmatpush1.bf16.msra.mxu0 0
    %3113 = vmatprep.mubr.bf16.mxu0 0
    %3114 = vmatmul.mubr.bf16.gmra.mrb[0].mxu0 %v3079
    %v3115 = vpop.f32.mrb[0].mxu0
    %v3116 = vadd.f32 %v3052, %v3115
    %v3117 = vpop.f32.mrb[0].mxu0
    %v3118 = vpop.f32.mrb[0].mxu0
    %v3119 = vadd.f32 %v3052, %v3118
    %v3120 = vpop.f32.mrb[0].mxu0
    %3121 = vdwg.mxu0
    %v3122 = vadd.f32 %v2890, %v3116
    %v3123 = vadd.f32 %v2891, %v3119
    %v3124 = vld [vmem:[%s17] sm:$0x1]
    %v3125 = vld [vmem:[%s18] sm:$0x1]
    %v3128 = vrot.slane %v3123, 7
    %vm3129 = vcmask 1041409
    %v3130 = vsel %vm3129, %v3128, %v3122
    %vm3132 = vcmask 254976
    %v3133 = vsel %vm3132, %v3130, 0.0
    %3134 = vadd.xlane.f32.xlu0 %v3133
    %v3135 = vpop.xlane.xlu0 %3134
    %v3136 = vmul.f32 %v3135, %v233
    %v3138 = vrot.slane %v3136, 1
    %v3141 = vsub.f32 %v3122, %v3136
    %v3142 = vsub.f32 %v3123, %v3138
    %v3143 = vmul.f32 %v3141, %v3141
    %v3144 = vmul.f32 %v3142, %v3142
    %v3147 = vrot.slane %v3144, 7
    %v3148 = vsel %vm3129, %v3147, %v3143
    %v3150 = vsel %vm3132, %v3148, 0.0
    %3151 = vadd.xlane.f32.xlu0 %v3150
    %v3152 = vpop.xlane.xlu0 %3151
    %v3153 = vmul.f32 %v3152, %v233
    %v3154 = vadd.f32 %v3153, 1e-06
    %v3155 = vrsqrt.pop %v3154
    %v3157 = vrot.slane %v3155, 1
    %v3160 = vmul.f32 %v3141, %v3155
    %v3161 = vmul.f32 %v3142, %v3157
    %v3163 = vlaneseq
    %v3164 = vshrl.u32 %v3163, 7
    %v3165 = vsub.s32 0, %v3164
    %v3166 = vrot.slane %v3124, %v3165
    %v3168 = vmul.f32 %v3160, %v3166
    %v3169 = vmul.f32 %v3161, %v3166
    %v3171 = vlaneseq
    %v3172 = vshrl.u32 %v3171, 7
    %v3173 = vsub.s32 0, %v3172
    %v3174 = vrot.slane %v3125, %v3173
    %v3176 = vadd.f32 %v3168, %v3174
    %v3177 = vadd.f32 %v3169, %v3174
    %v3178 = vpack.c.bf16 %v3176, %v3176
    %v3179 = vpack.c.bf16 %v3177, %v3177
    %v3180 = vld [vmem:[%s19] sm:$0xf]
    %v3181 = vld [vmem:[%s19 + $0x4] sm:$0xf]
    %v3182 = vld [vmem:[%s19 + $0x8] sm:$0xf]
    %v3183 = vld [vmem:[%s19 + $0xc] sm:$0xf]
    %v3184 = vld [vmem:[%s20] sm:$0x1]
    %v3186 = vlaneseq
    %v3187 = vshrl.u32 %v3186, 7
    %v3188 = vsub.s32 0, %v3187
    %v3189 = vrot.slane %v3184, %v3188
    %v3193 = vunpack.c.l.b16 %v3178
    %v3194 = vunpack.c.l.b16 %v3179
    %v3195 = vrot.slane %v3194, 7
    %v3196 = vsel %vm3129, %v3195, %v3193
    %v3197 = vpack.c.b16 %v3196, %v3196
    %v3202 = vunpack.c.l.b16 %v3180
    %v3203 = vunpack.c.l.b16 %v3181
    %v3204 = vunpack.c.l.b16 %v3182
    %v3205 = vunpack.c.l.b16 %v3183
    %v3206 = vpack.c.b16 %v3203, %v3202
    %v3207 = vpack.c.b16 %v3205, %v3204
    %v3211 = vsel %vm226, %v3197, 0
    %3213 = vmatprep.subr.bf16.mxu0 0
    %3214 = vmatpush1.bf16.msra.mxu0 %v3206
    %3215 = vmatprep.subr.bf16.mxu0 0
    %3216 = vmatpush1.bf16.msra.mxu0 %v3207
    %3217 = vmatprep.subr.bf16.mxu0 0
    %3218 = vmatpush1.bf16.msra.mxu0 0
    %3219 = vmatprep.subr.bf16.mxu0 0
    %3220 = vmatpush1.bf16.msra.mxu0 0
    %3221 = vmatprep.subr.bf16.mxu0 0
    %3222 = vmatpush1.bf16.msra.mxu0 0
    %3223 = vmatprep.subr.bf16.mxu0 0
    %3224 = vmatpush1.bf16.msra.mxu0 0
    %3225 = vmatprep.subr.bf16.mxu0 0
    %3226 = vmatpush1.bf16.msra.mxu0 0
    %3227 = vmatprep.subr.bf16.mxu0 0
    %3228 = vmatpush1.bf16.msra.mxu0 0
    %3229 = vmatprep.subr.bf16.mxu0 0
    %3230 = vmatpush1.bf16.msra.mxu0 0
    %3231 = vmatprep.subr.bf16.mxu0 0
    %3232 = vmatpush1.bf16.msra.mxu0 0
    %3233 = vmatprep.subr.bf16.mxu0 0
    %3234 = vmatpush1.bf16.msra.mxu0 0
    %3235 = vmatprep.subr.bf16.mxu0 0
    %3236 = vmatpush1.bf16.msra.mxu0 0
    %3237 = vmatprep.subr.bf16.mxu0 0
    %3238 = vmatpush1.bf16.msra.mxu0 0
    %3239 = vmatprep.subr.bf16.mxu0 0
    %3240 = vmatpush1.bf16.msra.mxu0 0
    %3241 = vmatprep.subr.bf16.mxu0 0
    %3242 = vmatpush1.bf16.msra.mxu0 0
    %3243 = vmatprep.subr.bf16.mxu0 0
    %3244 = vmatpush1.bf16.msra.mxu0 0
    %3245 = vmatprep.mubr.bf16.mxu0 0
    %3246 = vmatmul.mubr.bf16.gmra.mrb[0].mxu0 %v3211
    %v3247 = vpop.f32.mrb[0].mxu0
    %v3248 = vadd.f32 %v3189, %v3247
    %v3249 = vpop.f32.mrb[0].mxu0
    %v3250 = vpop.f32.mrb[0].mxu0
    %v3251 = vpop.f32.mrb[0].mxu0
    %3252 = vdwg.mxu0
    %3253 = vst [vmem:[#allocation2] sm:$0x3] %v3248
    // Predicated region
    $region86: #{net_forward.1} parent=1 // pred_check
      _
    $region87: #{net_forward.1} parent=1 // pred_check_branch
      %3255 = sbr.rel (0) target = $region89
    $region88: #{net_forward.1} parent=1 // pred_region
      %s3257 = ssub.s32 32, 32
      %3258 = vsyncadd [#allocation3], %s3257
      %s3260 = sshll.u32 [#allocation2], 4
      %s3261 = int_to_ptr.vmem [resolvable:$true] %s3260
      %3263 = dma.vmem_to_hbm [thread:$0]  %s3261, 32, %s21, [#allocation3]
    $region89: #{net_forward.1} parent=1 // pred_fallthru
      _
    // Predicated region
    $region90: #{net_forward.1} parent=1 // pred_check
      _
    $region91: #{net_forward.1} parent=1 // pred_check_branch
      %3265 = sbr.rel (0) target = $region93
    $region92: #{net_forward.1} parent=1 // pred_region
      _
    $region93: #{net_forward.1} parent=1 // pred_fallthru
      _
    // Predicated region
    $region94: #{net_forward.1} parent=1 // pred_check
      _
    $region95: #{net_forward.1} parent=1 // pred_check_branch
      %3267 = sbr.rel (0) target = $region97
    $region96: #{net_forward.1} parent=1 // pred_region
      %3268 = dma.done [#allocation3], 32
    $region97: #{net_forward.1} parent=1 // pred_fallthru
      _
    // Predicated region
    $region98: #{net_forward.1} parent=1 // pred_check
      _
    $region99: #{net_forward.1} parent=1 // pred_check_branch
      %3270 = sbr.rel (0) target = $region101
    $region100: #{net_forward.1} parent=1 // pred_region
      _
    $region101: #{net_forward.1} parent=1 // pred_fallthru
      _
    %3271 = vsyncpa [#allocation3], 1

</llo_original>
